<compile_context>
chip_gen: v7x
topology: tpu7x:2x2x1
jax: 0.10.0
libtpu: 0.0.40
codegen_flags: <defaults>
</compile_context>

<pallas_src>
import math

import jax
import jax.numpy as jnp
from jax import lax
from jax.experimental import pallas as pl
from jax.experimental.pallas import tpu as pltpu

# ----------------------------- model config (small) -----------------------------
B = 2          # batch
S = 8          # sequence length
H = 32         # hidden size
N_HEADS = 4
HEAD_DIM = H // N_HEADS
INTER = 64     # MLP intermediate size
VOCAB = 64
VOCAB_PAD = 128            # lane-dense padded lm_head width
N_LAYERS = 2
EPS = 1e-6
NEG_INF = -1e9


# ----------------------------- in-kernel helpers ---------------------------------
def _rmsnorm(x, w):
    """Gemma RMSNorm with (1 + weight); all in f32."""
    var = jnp.mean(x * x, axis=-1, keepdims=True)
    return x * lax.rsqrt(var + EPS) * (1.0 + w)


def _gelu_tanh(x):
    return 0.5 * x * (1.0 + jnp.tanh(0.7978845608028654 * (x + 0.044715 * x * x * x)))


# --------------------- single fused whole-network kernel -------------------------
def _gemma_kernel(h_ref, mask_ref, cos_ref, sin_ref, tgt_ref,
                  ln1_ref, wqkv_ref, wo_ref, ln2_ref, wgu_ref, wd_ref,
                  fnorm_ref, lmw_ref,
                  logits_ref, stats_ref):
    """Whole Gemma forward for one batch element (grid axis = batch)."""
    h = h_ref[0]                                        # (S, H) f32 residual stream
    seq, hid = h.shape

    # RoPE cos/sin tiled to all heads (built ONCE, reused by every layer).
    cos = jnp.concatenate([cos_ref[0]] * N_HEADS, axis=-1)     # (S, H) f32
    sin = jnp.concatenate([sin_ref[0]] * N_HEADS, axis=-1)

    # Causal + key-padding additive bias, built ONCE in-kernel (no [B,S,S] HBM mask).
    key_ok = mask_ref[0]                                # (1, S) int32
    row = lax.broadcasted_iota(jnp.int32, (seq, seq), 0)
    col = lax.broadcasted_iota(jnp.int32, (seq, seq), 1)
    bias = jnp.where((row >= col) & (key_ok > 0), 0.0, NEG_INF)   # (S, S) f32

    scale = 1.0 / math.sqrt(HEAD_DIM)
    dims_qk = (((1,), (1,)), ((), ()))                  # q @ k^T without forming k.T

    for li in range(N_LAYERS):                          # static layer loop (weights in VMEM)
        # ---- attention block: RMSNorm fused into {Q,K,V,Q@rot,K@rot} projection ----
        xb = _rmsnorm(h, ln1_ref[li]).astype(jnp.bfloat16)
        proj = jnp.dot(xb, wqkv_ref[li], preferred_element_type=jnp.float32)  # (S, 5H)

        # RoPE: rotate_half is folded into the projection weights (cols 3H:5H),
        # so applying it here is pure elementwise VPU work.
        q_all = proj[:, 0 * hid:1 * hid] * cos + proj[:, 3 * hid:4 * hid] * sin
        k_all = proj[:, 1 * hid:2 * hid] * cos + proj[:, 4 * hid:5 * hid] * sin
        v_all = proj[:, 2 * hid:3 * hid]

        # bf16 casts + softmax scale hoisted out of the head loop.
        qb = (q_all * scale).astype(jnp.bfloat16)
        kb = k_all.astype(jnp.bfloat16)
        vb = v_all.astype(jnp.bfloat16)

        ctx_heads = []
        for hh in range(N_HEADS):                       # static unrolled head loop
            lo = hh * HEAD_DIM
            s = lax.dot_general(qb[:, lo:lo + HEAD_DIM], kb[:, lo:lo + HEAD_DIM],
                                dims_qk, preferred_element_type=jnp.float32) + bias
            s = s - jnp.max(s, axis=-1, keepdims=True)
            p = jnp.exp(s)
            p = p * pl.reciprocal(jnp.sum(p, axis=-1, keepdims=True), approx=True)
            ctx_heads.append(jnp.dot(p.astype(jnp.bfloat16), vb[:, lo:lo + HEAD_DIM],
                                     preferred_element_type=jnp.float32))     # (S, D)

        # Single output projection on the concatenated heads (1 matmul, not 4).
        ctx = jnp.concatenate(ctx_heads, axis=-1).astype(jnp.bfloat16)         # (S, H)
        h = h + jnp.dot(ctx, wo_ref[li], preferred_element_type=jnp.float32)

        # ---- MLP block: fused gate+up matmul (lane-dense N = 2*INTER = 128) ----
        yb = _rmsnorm(h, ln2_ref[li]).astype(jnp.bfloat16)
        gu = jnp.dot(yb, wgu_ref[li], preferred_element_type=jnp.float32)      # (S, 2I)
        g = gu[:, :INTER]
        u = gu[:, INTER:]
        mlp = jnp.dot((_gelu_tanh(g) * u).astype(jnp.bfloat16), wd_ref[li],
                      preferred_element_type=jnp.float32)
        h = h + mlp

    # ---- final RMSNorm + tied lm_head (padded to lane-dense 128) + shifted CE ----
    xb = _rmsnorm(h, fnorm_ref[...]).astype(jnp.bfloat16)
    logits = jnp.dot(xb, lmw_ref[...], preferred_element_type=jnp.float32)     # (S, VP)
    logits_ref[0] = logits                              # unmasked lane-dense store

    vcol = lax.broadcasted_iota(jnp.int32, logits.shape, 1)
    lmask = jnp.where(vcol < VOCAB, logits, NEG_INF)    # hide pad columns from LSE
    m = jnp.max(lmask, axis=-1, keepdims=True)
    lse = jnp.log(jnp.sum(jnp.exp(lmask - m), axis=-1, keepdims=True)) + m

    tgt = tgt_ref[0]                                    # (S, 1) int32 shifted labels
    tgt_logit = jnp.sum(jnp.where(vcol == tgt, logits, 0.0), axis=-1, keepdims=True)
    valid = (tgt >= 0).astype(jnp.float32)              # ignore_index = -100
    per_tok = (lse - tgt_logit) * valid                 # (S, 1)

    loss_sum = jnp.sum(per_tok, axis=(0, 1), keepdims=True)    # (1, 1)
    valid_sum = jnp.sum(valid, axis=(0, 1), keepdims=True)     # (1, 1)
    stats_ref[0] = jnp.concatenate([loss_sum, valid_sum], axis=-1)   # (1, 2)


def pallas_gemma_fwd(h, mask3, cos, sin, tgt, params, lm_w_pad):
    per_b = lambda b: (b, 0, 0)
    full3 = lambda b: (0, 0, 0)
    full2 = lambda b: (0, 0)
    return pl.pallas_call(
        _gemma_kernel,
        out_shape=(jax.ShapeDtypeStruct((B, S, VOCAB_PAD), jnp.float32),
                   jax.ShapeDtypeStruct((B, 1, 2), jnp.float32)),
        grid=(B,),
        in_specs=[
            pl.BlockSpec((1, S, H), per_b),                         # embedded tokens
            pl.BlockSpec((1, 1, S), per_b),                         # attn_mask (B,1,S)
            pl.BlockSpec((1, S, HEAD_DIM), per_b),                  # cos (per-head, tiled in-kernel)
            pl.BlockSpec((1, S, HEAD_DIM), per_b),                  # sin
            pl.BlockSpec((1, S, 1), per_b),                         # shifted labels
            pl.BlockSpec((N_LAYERS, 1, H), full3),                  # ln1 (stacked)
            pl.BlockSpec((N_LAYERS, H, 5 * H), full3),              # [Wq|Wk|Wv|WqP|WkP]
            pl.BlockSpec((N_LAYERS, H, H), full3),                  # Wo
            pl.BlockSpec((N_LAYERS, 1, H), full3),                  # ln2
            pl.BlockSpec((N_LAYERS, H, 2 * INTER), full3),          # [Wg|Wu]
            pl.BlockSpec((N_LAYERS, INTER, H), full3),              # Wd
            pl.BlockSpec((1, H), full2),                            # final norm
            pl.BlockSpec((H, VOCAB_PAD), full2),                    # tied lm_head (padded)
        ],
        out_specs=(pl.BlockSpec((1, S, VOCAB_PAD), per_b),
                   pl.BlockSpec((1, 1, 2), per_b)),
        compiler_params=pltpu.CompilerParams(dimension_semantics=("parallel",)),
    )(h, mask3, cos, sin, tgt,
      params["ln1"], params["wqkv5"], params["wo"], params["ln2"],
      params["wgu"], params["wd"], params["final_norm"], lm_w_pad)


# ----------------------------- params --------------------------------------------
def init_params(key):
    def nrm(k, shape, scale=0.02):
        return scale * jax.random.normal(k, shape, dtype=jnp.float32)

    # rotate_half as a block-diagonal (per-head) column permutation with sign.
    half = HEAD_DIM // 2
    P = jnp.zeros((HEAD_DIM, HEAD_DIM), jnp.float32)
    P = P.at[half:, :half].set(-jnp.eye(half, dtype=jnp.float32))
    P = P.at[:half, half:].set(jnp.eye(half, dtype=jnp.float32))
    P_H = jnp.kron(jnp.eye(N_HEADS, dtype=jnp.float32), P)          # (H, H)

    keys = jax.random.split(key, 1 + N_LAYERS)
    wqkv5_l, wo_l, wgu_l, wd_l = [], [], [], []
    for li in range(N_LAYERS):
        k = jax.random.split(keys[1 + li], 7)
        wq = nrm(k[0], (H, H))
        wk = nrm(k[1], (H, H))
        wv = nrm(k[2], (H, H))
        wqkv5_l.append(jnp.concatenate([wq, wk, wv, wq @ P_H, wk @ P_H], axis=1))
        wo_l.append(nrm(k[3], (H, H)))
        wgu_l.append(jnp.concatenate([nrm(k[4], (H, INTER)), nrm(k[5], (H, INTER))], axis=1))
        wd_l.append(nrm(k[6], (INTER, H)))

    return {
        "embed": nrm(keys[0], (VOCAB, H)),
        "final_norm": jnp.zeros((1, H), jnp.float32),
        "ln1": jnp.zeros((N_LAYERS, 1, H), jnp.float32),
        "ln2": jnp.zeros((N_LAYERS, 1, H), jnp.float32),
        "wqkv5": jnp.stack(wqkv5_l).astype(jnp.bfloat16),           # (L, H, 5H)
        "wo": jnp.stack(wo_l).astype(jnp.bfloat16),                 # (L, H, H)
        "wgu": jnp.stack(wgu_l).astype(jnp.bfloat16),               # (L, H, 2I)
        "wd": jnp.stack(wd_l).astype(jnp.bfloat16),                 # (L, I, H)
    }


# ----------------------------- forward (glue) ------------------------------------
def gemma_forward(params, input_ids, attn_mask, position_ids, labels):
    """'end2end' path of gemma.forward: returns (loss, logits)."""
    # embedding lookup + Gemma sqrt(H) scaling (gather stays in XLA glue)
    h = jnp.take(params["embed"], input_ids, axis=0) * jnp.sqrt(jnp.float32(H))  # (B,S,H)

    # RoPE cos/sin tables (base=10000), built once for all layers, per-head width only
    half = HEAD_DIM // 2
    inv_freq = 1.0 / (10000.0 ** (jnp.arange(0, half, dtype=jnp.float32) / half))
    freqs = position_ids.astype(jnp.float32)[:, :, None] * inv_freq[None, None, :]
    cos = jnp.concatenate([jnp.cos(freqs)] * 2, axis=-1)            # (B, S, HEAD_DIM)
    sin = jnp.concatenate([jnp.sin(freqs)] * 2, axis=-1)
    mask3 = attn_mask.astype(jnp.int32).reshape(B, 1, S)

    # shifted causal-LM targets: position t predicts labels[t+1]; -100 ignored
    tgt = jnp.concatenate([labels[:, 1:], jnp.full((B, 1), -100, labels.dtype)], axis=1)
    tgt = tgt.astype(jnp.int32).reshape(B, S, 1)

    # tied lm_head, zero-padded to a lane-dense 128 columns
    lm_w = params["embed"].T.astype(jnp.bfloat16)                   # (H, VOCAB)
    lm_w_pad = jnp.pad(lm_w, ((0, 0), (0, VOCAB_PAD - VOCAB)))      # (H, 128)

    logits_pad, stats = pallas_gemma_fwd(h, mask3, cos, sin, tgt, params, lm_w_pad)
    loss = jnp.sum(stats[:, 0, 0]) / jnp.maximum(jnp.sum(stats[:, 0, 1]), 1.0)
    logits = logits_pad[:, :, :VOCAB]
    return loss, logits


# TODO(synk): generate_chat / generate_demo (autoregressive decoding with KV cache)
# are inference loops outside the single forward pass and are not implemented here.


if __name__ == "__main__":
    key = jax.random.PRNGKey(0)
    pkey, ikey = jax.random.split(key)
    params = init_params(pkey)

    input_ids = jax.random.randint(ikey, (B, S), 0, VOCAB, dtype=jnp.int32)
    attn_mask = jnp.ones((B, S), jnp.int32).at[1, S - 2:].set(0)   # pad tail of sample 1
    position_ids = jnp.broadcast_to(jnp.arange(S, dtype=jnp.int32)[None], (B, S))
    labels = jnp.where(attn_mask == 1, input_ids, -100)

    loss, logits = jax.jit(gemma_forward)(params, input_ids, attn_mask, position_ids, labels)
    jax.block_until_ready((loss, logits))
    assert logits.shape == (B, S, VOCAB)
    assert bool(jnp.isfinite(loss))
    print("KERNEL_OK")
</pallas_src>

<mosaic_0001>
module attributes {stable_mosaic.version = 11 : i64} {
  func.func @_gemma_kernel(%arg0: i32, %arg1: memref<1x8x32xf32, #tpu.memory_space<vmem>>, %arg2: memref<1x1x8xi32, #tpu.memory_space<vmem>>, %arg3: memref<1x8x8xf32, #tpu.memory_space<vmem>>, %arg4: memref<1x8x8xf32, #tpu.memory_space<vmem>>, %arg5: memref<1x8x1xi32, #tpu.memory_space<vmem>>, %arg6: memref<2x1x32xf32, #tpu.memory_space<vmem>>, %arg7: memref<2x32x160xbf16, #tpu.memory_space<vmem>>, %arg8: memref<2x32x32xbf16, #tpu.memory_space<vmem>>, %arg9: memref<2x1x32xf32, #tpu.memory_space<vmem>>, %arg10: memref<2x32x128xbf16, #tpu.memory_space<vmem>>, %arg11: memref<2x64x32xbf16, #tpu.memory_space<vmem>>, %arg12: memref<1x32xf32, #tpu.memory_space<vmem>>, %arg13: memref<32x128xbf16, #tpu.memory_space<vmem>>, %arg14: memref<1x8x128xf32, #tpu.memory_space<vmem>>, %arg15: memref<1x1x2xf32, #tpu.memory_space<vmem>>) attributes {dimension_semantics = [#tpu.dimension_semantics<parallel>], iteration_bounds = array<i64: 2>, scalar_prefetch = 0 : i64, scratch_operands = 0 : i64, tpu.core_type = #tpu.core_type<tc>, window_params = [{transform_indices = @transform_0, window_bounds = array<i64: 1, 8, 32>}, {transform_indices = @transform_1, window_bounds = array<i64: 1, 1, 8>}, {transform_indices = @transform_2, window_bounds = array<i64: 1, 8, 8>}, {transform_indices = @transform_3, window_bounds = array<i64: 1, 8, 8>}, {transform_indices = @transform_4, window_bounds = array<i64: 1, 8, 1>}, {pipeline_mode = #tpu.pipeline_mode<synchronous>, transform_indices = @transform_5, window_bounds = array<i64: 2, 1, 32>}, {pipeline_mode = #tpu.pipeline_mode<synchronous>, transform_indices = @transform_6, window_bounds = array<i64: 2, 32, 160>}, {pipeline_mode = #tpu.pipeline_mode<synchronous>, transform_indices = @transform_7, window_bounds = array<i64: 2, 32, 32>}, {pipeline_mode = #tpu.pipeline_mode<synchronous>, transform_indices = @transform_8, window_bounds = array<i64: 2, 1, 32>}, {pipeline_mode = #tpu.pipeline_mode<synchronous>, transform_indices = @transform_9, window_bounds = array<i64: 2, 32, 128>}, {pipeline_mode = #tpu.pipeline_mode<synchronous>, transform_indices = @transform_10, window_bounds = array<i64: 2, 64, 32>}, {pipeline_mode = #tpu.pipeline_mode<synchronous>, transform_indices = @transform_11, window_bounds = array<i64: 1, 32>}, {pipeline_mode = #tpu.pipeline_mode<synchronous>, transform_indices = @transform_12, window_bounds = array<i64: 32, 128>}, {transform_indices = @transform_13, window_bounds = array<i64: 1, 8, 128>}, {transform_indices = @transform_14, window_bounds = array<i64: 1, 1, 2>}]} {
    %c0 = arith.constant 0 : index
    %c0_0 = arith.constant 0 : index
    %c0_1 = arith.constant 0 : index
    %0 = vector.load %arg1[%c0, %c0_0, %c0_1] : memref<1x8x32xf32, #tpu.memory_space<vmem>>, vector<1x8x32xf32>
    %1 = vector.shape_cast %0 : vector<1x8x32xf32> to vector<8x32xf32>
    %c0_2 = arith.constant 0 : index
    %c0_3 = arith.constant 0 : index
    %c0_4 = arith.constant 0 : index
    %2 = vector.load %arg3[%c0_2, %c0_3, %c0_4] : memref<1x8x8xf32, #tpu.memory_space<vmem>>, vector<1x8x8xf32>
    %3 = vector.shape_cast %2 : vector<1x8x8xf32> to vector<8x8xf32>
    %4 = tpu.concatenate %3, %3, %3, %3 in 1 : vector<8x8xf32>, vector<8x8xf32>, vector<8x8xf32>, vector<8x8xf32> -> vector<8x32xf32>
    %c0_5 = arith.constant 0 : index
    %c0_6 = arith.constant 0 : index
    %c0_7 = arith.constant 0 : index
    %5 = vector.load %arg4[%c0_5, %c0_6, %c0_7] : memref<1x8x8xf32, #tpu.memory_space<vmem>>, vector<1x8x8xf32>
    %6 = vector.shape_cast %5 : vector<1x8x8xf32> to vector<8x8xf32>
    %7 = tpu.concatenate %6, %6, %6, %6 in 1 : vector<8x8xf32>, vector<8x8xf32>, vector<8x8xf32>, vector<8x8xf32> -> vector<8x32xf32>
    %c0_8 = arith.constant 0 : index
    %c0_9 = arith.constant 0 : index
    %c0_10 = arith.constant 0 : index
    %8 = vector.load %arg2[%c0_8, %c0_9, %c0_10] : memref<1x1x8xi32, #tpu.memory_space<vmem>>, vector<1x1x8xi32>
    %9 = vector.shape_cast %8 : vector<1x1x8xi32> to vector<1x8xi32>
    %10 = tpu.iota {dimensions = array<i32: 0>} : vector<8x8xi32>
    %11 = tpu.iota {dimensions = array<i32: 1>} : vector<8x8xi32>
    %12 = arith.cmpi sge, %10, %11 : vector<8x8xi32>
    %c0_i32 = arith.constant 0 : i32
    %13 = vector.broadcast %c0_i32 : i32 to vector<1x8xi32>
    %14 = arith.cmpi sgt, %9, %13 : vector<1x8xi32>
    %15 = vector.broadcast %14 : vector<1x8xi1> to vector<8x8xi1>
    %16 = arith.andi %12, %15 : vector<8x8xi1>
    %cst = arith.constant 0.000000e+00 : f32
    %cst_11 = arith.constant -1.000000e+09 : f32
    %17 = vector.broadcast %cst : f32 to vector<8x8xf32>
    %18 = vector.broadcast %cst_11 : f32 to vector<8x8xf32>
    %19 = arith.select %16, %17, %18 : vector<8x8xi1>, vector<8x8xf32>
    %c0_12 = arith.constant 0 : index
    %c0_13 = arith.constant 0 : index
    %c0_14 = arith.constant 0 : index
    %20 = vector.load %arg6[%c0_12, %c0_13, %c0_14] : memref<2x1x32xf32, #tpu.memory_space<vmem>>, vector<1x1x32xf32>
    %21 = vector.shape_cast %20 : vector<1x1x32xf32> to vector<1x32xf32>
    %22 = arith.mulf %1, %1 : vector<8x32xf32>
    %cst_15 = arith.constant dense<0.000000e+00> : vector<8xf32>
    %23 = vector.multi_reduction <add>, %22, %cst_15 [1] : vector<8x32xf32> to vector<8xf32>
    %24 = vector.shape_cast %23 : vector<8xf32> to vector<8x1xf32>
    %cst_16 = arith.constant 3.200000e+01 : f32
    %25 = vector.broadcast %cst_16 : f32 to vector<8x1xf32>
    %26 = arith.divf %24, %25 : vector<8x1xf32>
    %cst_17 = arith.constant 9.99999997E-7 : f32
    %27 = vector.broadcast %cst_17 : f32 to vector<8x1xf32>
    %28 = arith.addf %26, %27 : vector<8x1xf32>
    %29 = math.rsqrt %28 : vector<8x1xf32>
    %30 = vector.broadcast %29 : vector<8x1xf32> to vector<8x32xf32>
    %31 = arith.mulf %1, %30 : vector<8x32xf32>
    %cst_18 = arith.constant 1.000000e+00 : f32
    %32 = vector.broadcast %cst_18 : f32 to vector<1x32xf32>
    %33 = arith.addf %32, %21 : vector<1x32xf32>
    %34 = vector.broadcast %33 : vector<1x32xf32> to vector<8x32xf32>
    %35 = arith.mulf %31, %34 : vector<8x32xf32>
    %36 = arith.truncf %35 : vector<8x32xf32> to vector<8x32xbf16>
    %c0_19 = arith.constant 0 : index
    %c0_20 = arith.constant 0 : index
    %c0_21 = arith.constant 0 : index
    %37 = vector.load %arg7[%c0_19, %c0_20, %c0_21] : memref<2x32x160xbf16, #tpu.memory_space<vmem>>, vector<1x32x160xbf16>
    %38 = vector.shape_cast %37 : vector<1x32x160xbf16> to vector<32x160xbf16>
    %cst_22 = arith.constant dense<0.000000e+00> : vector<8x160xf32>
    %39 = tpu.matmul %36, %38, %cst_22 {dimension_numbers = #tpu.dot_dimension_numbers<[1], [0], [0], [1], [0, 0, 1, 1], [], []>} : vector<8x32xbf16>, vector<32x160xbf16>, vector<8x160xf32> -> vector<8x160xf32>
    %40 = vector.extract_strided_slice %39 {offsets = [0, 0], sizes = [8, 32], strides = [1, 1]} : vector<8x160xf32> to vector<8x32xf32>
    %41 = arith.mulf %40, %4 : vector<8x32xf32>
    %42 = vector.extract_strided_slice %39 {offsets = [0, 96], sizes = [8, 32], strides = [1, 1]} : vector<8x160xf32> to vector<8x32xf32>
    %43 = arith.mulf %42, %7 : vector<8x32xf32>
    %44 = arith.addf %41, %43 : vector<8x32xf32>
    %45 = vector.extract_strided_slice %39 {offsets = [0, 32], sizes = [8, 32], strides = [1, 1]} : vector<8x160xf32> to vector<8x32xf32>
    %46 = arith.mulf %45, %4 : vector<8x32xf32>
    %47 = vector.extract_strided_slice %39 {offsets = [0, 128], sizes = [8, 32], strides = [1, 1]} : vector<8x160xf32> to vector<8x32xf32>
    %48 = arith.mulf %47, %7 : vector<8x32xf32>
    %49 = arith.addf %46, %48 : vector<8x32xf32>
    %50 = vector.extract_strided_slice %39 {offsets = [0, 64], sizes = [8, 32], strides = [1, 1]} : vector<8x160xf32> to vector<8x32xf32>
    %cst_23 = arith.constant 0.353553385 : f32
    %51 = vector.broadcast %cst_23 : f32 to vector<8x32xf32>
    %52 = arith.mulf %44, %51 : vector<8x32xf32>
    %53 = arith.truncf %52 : vector<8x32xf32> to vector<8x32xbf16>
    %54 = arith.truncf %49 : vector<8x32xf32> to vector<8x32xbf16>
    %55 = arith.truncf %50 : vector<8x32xf32> to vector<8x32xbf16>
    %56 = vector.extract_strided_slice %53 {offsets = [0, 0], sizes = [8, 8], strides = [1, 1]} : vector<8x32xbf16> to vector<8x8xbf16>
    %57 = vector.extract_strided_slice %54 {offsets = [0, 0], sizes = [8, 8], strides = [1, 1]} : vector<8x32xbf16> to vector<8x8xbf16>
    %cst_24 = arith.constant dense<0.000000e+00> : vector<8x8xf32>
    %58 = tpu.matmul %56, %57, %cst_24 {dimension_numbers = #tpu.dot_dimension_numbers<[1], [1], [0], [0], [0, 0, 1, 0], [], []>} : vector<8x8xbf16>, vector<8x8xbf16>, vector<8x8xf32> -> vector<8x8xf32>
    %59 = arith.addf %58, %19 : vector<8x8xf32>
    %cst_25 = arith.constant dense<0xFF800000> : vector<8xf32>
    %60 = vector.multi_reduction <maximumf>, %59, %cst_25 [1] : vector<8x8xf32> to vector<8xf32>
    %61 = vector.shape_cast %60 : vector<8xf32> to vector<8x1xf32>
    %62 = vector.broadcast %61 : vector<8x1xf32> to vector<8x8xf32>
    %63 = arith.subf %59, %62 : vector<8x8xf32>
    %64 = math.exp %63 : vector<8x8xf32>
    %cst_26 = arith.constant dense<0.000000e+00> : vector<8xf32>
    %65 = vector.multi_reduction <add>, %64, %cst_26 [1] : vector<8x8xf32> to vector<8xf32>
    %66 = vector.shape_cast %65 : vector<8xf32> to vector<8x1xf32>
    %67 = tpu.reciprocal %66 {approx = true} : vector<8x1xf32> -> vector<8x1xf32>
    %68 = vector.broadcast %67 : vector<8x1xf32> to vector<8x8xf32>
    %69 = arith.mulf %64, %68 : vector<8x8xf32>
    %70 = arith.truncf %69 : vector<8x8xf32> to vector<8x8xbf16>
    %71 = vector.extract_strided_slice %55 {offsets = [0, 0], sizes = [8, 8], strides = [1, 1]} : vector<8x32xbf16> to vector<8x8xbf16>
    %cst_27 = arith.constant dense<0.000000e+00> : vector<8x8xf32>
    %72 = tpu.matmul %70, %71, %cst_27 {dimension_numbers = #tpu.dot_dimension_numbers<[1], [0], [0], [1], [0, 0, 1, 1], [], []>} : vector<8x8xbf16>, vector<8x8xbf16>, vector<8x8xf32> -> vector<8x8xf32>
    %73 = vector.extract_strided_slice %53 {offsets = [0, 8], sizes = [8, 8], strides = [1, 1]} : vector<8x32xbf16> to vector<8x8xbf16>
    %74 = vector.extract_strided_slice %54 {offsets = [0, 8], sizes = [8, 8], strides = [1, 1]} : vector<8x32xbf16> to vector<8x8xbf16>
    %cst_28 = arith.constant dense<0.000000e+00> : vector<8x8xf32>
    %75 = tpu.matmul %73, %74, %cst_28 {dimension_numbers = #tpu.dot_dimension_numbers<[1], [1], [0], [0], [0, 0, 1, 0], [], []>} : vector<8x8xbf16>, vector<8x8xbf16>, vector<8x8xf32> -> vector<8x8xf32>
    %76 = arith.addf %75, %19 : vector<8x8xf32>
    %cst_29 = arith.constant dense<0xFF800000> : vector<8xf32>
    %77 = vector.multi_reduction <maximumf>, %76, %cst_29 [1] : vector<8x8xf32> to vector<8xf32>
    %78 = vector.shape_cast %77 : vector<8xf32> to vector<8x1xf32>
    %79 = vector.broadcast %78 : vector<8x1xf32> to vector<8x8xf32>
    %80 = arith.subf %76, %79 : vector<8x8xf32>
    %81 = math.exp %80 : vector<8x8xf32>
    %cst_30 = arith.constant dense<0.000000e+00> : vector<8xf32>
    %82 = vector.multi_reduction <add>, %81, %cst_30 [1] : vector<8x8xf32> to vector<8xf32>
    %83 = vector.shape_cast %82 : vector<8xf32> to vector<8x1xf32>
    %84 = tpu.reciprocal %83 {approx = true} : vector<8x1xf32> -> vector<8x1xf32>
    %85 = vector.broadcast %84 : vector<8x1xf32> to vector<8x8xf32>
    %86 = arith.mulf %81, %85 : vector<8x8xf32>
    %87 = arith.truncf %86 : vector<8x8xf32> to vector<8x8xbf16>
    %88 = vector.extract_strided_slice %55 {offsets = [0, 8], sizes = [8, 8], strides = [1, 1]} : vector<8x32xbf16> to vector<8x8xbf16>
    %cst_31 = arith.constant dense<0.000000e+00> : vector<8x8xf32>
    %89 = tpu.matmul %87, %88, %cst_31 {dimension_numbers = #tpu.dot_dimension_numbers<[1], [0], [0], [1], [0, 0, 1, 1], [], []>} : vector<8x8xbf16>, vector<8x8xbf16>, vector<8x8xf32> -> vector<8x8xf32>
    %90 = vector.extract_strided_slice %53 {offsets = [0, 16], sizes = [8, 8], strides = [1, 1]} : vector<8x32xbf16> to vector<8x8xbf16>
    %91 = vector.extract_strided_slice %54 {offsets = [0, 16], sizes = [8, 8], strides = [1, 1]} : vector<8x32xbf16> to vector<8x8xbf16>
    %cst_32 = arith.constant dense<0.000000e+00> : vector<8x8xf32>
    %92 = tpu.matmul %90, %91, %cst_32 {dimension_numbers = #tpu.dot_dimension_numbers<[1], [1], [0], [0], [0, 0, 1, 0], [], []>} : vector<8x8xbf16>, vector<8x8xbf16>, vector<8x8xf32> -> vector<8x8xf32>
    %93 = arith.addf %92, %19 : vector<8x8xf32>
    %cst_33 = arith.constant dense<0xFF800000> : vector<8xf32>
    %94 = vector.multi_reduction <maximumf>, %93, %cst_33 [1] : vector<8x8xf32> to vector<8xf32>
    %95 = vector.shape_cast %94 : vector<8xf32> to vector<8x1xf32>
    %96 = vector.broadcast %95 : vector<8x1xf32> to vector<8x8xf32>
    %97 = arith.subf %93, %96 : vector<8x8xf32>
    %98 = math.exp %97 : vector<8x8xf32>
    %cst_34 = arith.constant dense<0.000000e+00> : vector<8xf32>
    %99 = vector.multi_reduction <add>, %98, %cst_34 [1] : vector<8x8xf32> to vector<8xf32>
    %100 = vector.shape_cast %99 : vector<8xf32> to vector<8x1xf32>
    %101 = tpu.reciprocal %100 {approx = true} : vector<8x1xf32> -> vector<8x1xf32>
    %102 = vector.broadcast %101 : vector<8x1xf32> to vector<8x8xf32>
    %103 = arith.mulf %98, %102 : vector<8x8xf32>
    %104 = arith.truncf %103 : vector<8x8xf32> to vector<8x8xbf16>
    %105 = vector.extract_strided_slice %55 {offsets = [0, 16], sizes = [8, 8], strides = [1, 1]} : vector<8x32xbf16> to vector<8x8xbf16>
    %cst_35 = arith.constant dense<0.000000e+00> : vector<8x8xf32>
    %106 = tpu.matmul %104, %105, %cst_35 {dimension_numbers = #tpu.dot_dimension_numbers<[1], [0], [0], [1], [0, 0, 1, 1], [], []>} : vector<8x8xbf16>, vector<8x8xbf16>, vector<8x8xf32> -> vector<8x8xf32>
    %107 = vector.extract_strided_slice %53 {offsets = [0, 24], sizes = [8, 8], strides = [1, 1]} : vector<8x32xbf16> to vector<8x8xbf16>
    %108 = vector.extract_strided_slice %54 {offsets = [0, 24], sizes = [8, 8], strides = [1, 1]} : vector<8x32xbf16> to vector<8x8xbf16>
    %cst_36 = arith.constant dense<0.000000e+00> : vector<8x8xf32>
    %109 = tpu.matmul %107, %108, %cst_36 {dimension_numbers = #tpu.dot_dimension_numbers<[1], [1], [0], [0], [0, 0, 1, 0], [], []>} : vector<8x8xbf16>, vector<8x8xbf16>, vector<8x8xf32> -> vector<8x8xf32>
    %110 = arith.addf %109, %19 : vector<8x8xf32>
    %cst_37 = arith.constant dense<0xFF800000> : vector<8xf32>
    %111 = vector.multi_reduction <maximumf>, %110, %cst_37 [1] : vector<8x8xf32> to vector<8xf32>
    %112 = vector.shape_cast %111 : vector<8xf32> to vector<8x1xf32>
    %113 = vector.broadcast %112 : vector<8x1xf32> to vector<8x8xf32>
    %114 = arith.subf %110, %113 : vector<8x8xf32>
    %115 = math.exp %114 : vector<8x8xf32>
    %cst_38 = arith.constant dense<0.000000e+00> : vector<8xf32>
    %116 = vector.multi_reduction <add>, %115, %cst_38 [1] : vector<8x8xf32> to vector<8xf32>
    %117 = vector.shape_cast %116 : vector<8xf32> to vector<8x1xf32>
    %118 = tpu.reciprocal %117 {approx = true} : vector<8x1xf32> -> vector<8x1xf32>
    %119 = vector.broadcast %118 : vector<8x1xf32> to vector<8x8xf32>
    %120 = arith.mulf %115, %119 : vector<8x8xf32>
    %121 = arith.truncf %120 : vector<8x8xf32> to vector<8x8xbf16>
    %122 = vector.extract_strided_slice %55 {offsets = [0, 24], sizes = [8, 8], strides = [1, 1]} : vector<8x32xbf16> to vector<8x8xbf16>
    %cst_39 = arith.constant dense<0.000000e+00> : vector<8x8xf32>
    %123 = tpu.matmul %121, %122, %cst_39 {dimension_numbers = #tpu.dot_dimension_numbers<[1], [0], [0], [1], [0, 0, 1, 1], [], []>} : vector<8x8xbf16>, vector<8x8xbf16>, vector<8x8xf32> -> vector<8x8xf32>
    %124 = tpu.concatenate %72, %89, %106, %123 in 1 : vector<8x8xf32>, vector<8x8xf32>, vector<8x8xf32>, vector<8x8xf32> -> vector<8x32xf32>
    %125 = arith.truncf %124 : vector<8x32xf32> to vector<8x32xbf16>
    %c0_40 = arith.constant 0 : index
    %c0_41 = arith.constant 0 : index
    %c0_42 = arith.constant 0 : index
    %126 = vector.load %arg8[%c0_40, %c0_41, %c0_42] : memref<2x32x32xbf16, #tpu.memory_space<vmem>>, vector<1x32x32xbf16>
    %127 = vector.shape_cast %126 : vector<1x32x32xbf16> to vector<32x32xbf16>
    %cst_43 = arith.constant dense<0.000000e+00> : vector<8x32xf32>
    %128 = tpu.matmul %125, %127, %cst_43 {dimension_numbers = #tpu.dot_dimension_numbers<[1], [0], [0], [1], [0, 0, 1, 1], [], []>} : vector<8x32xbf16>, vector<32x32xbf16>, vector<8x32xf32> -> vector<8x32xf32>
    %129 = arith.addf %1, %128 : vector<8x32xf32>
    %c0_44 = arith.constant 0 : index
    %c0_45 = arith.constant 0 : index
    %c0_46 = arith.constant 0 : index
    %130 = vector.load %arg9[%c0_44, %c0_45, %c0_46] : memref<2x1x32xf32, #tpu.memory_space<vmem>>, vector<1x1x32xf32>
    %131 = vector.shape_cast %130 : vector<1x1x32xf32> to vector<1x32xf32>
    %132 = arith.mulf %129, %129 : vector<8x32xf32>
    %cst_47 = arith.constant dense<0.000000e+00> : vector<8xf32>
    %133 = vector.multi_reduction <add>, %132, %cst_47 [1] : vector<8x32xf32> to vector<8xf32>
    %134 = vector.shape_cast %133 : vector<8xf32> to vector<8x1xf32>
    %cst_48 = arith.constant 3.200000e+01 : f32
    %135 = vector.broadcast %cst_48 : f32 to vector<8x1xf32>
    %136 = arith.divf %134, %135 : vector<8x1xf32>
    %cst_49 = arith.constant 9.99999997E-7 : f32
    %137 = vector.broadcast %cst_49 : f32 to vector<8x1xf32>
    %138 = arith.addf %136, %137 : vector<8x1xf32>
    %139 = math.rsqrt %138 : vector<8x1xf32>
    %140 = vector.broadcast %139 : vector<8x1xf32> to vector<8x32xf32>
    %141 = arith.mulf %129, %140 : vector<8x32xf32>
    %cst_50 = arith.constant 1.000000e+00 : f32
    %142 = vector.broadcast %cst_50 : f32 to vector<1x32xf32>
    %143 = arith.addf %142, %131 : vector<1x32xf32>
    %144 = vector.broadcast %143 : vector<1x32xf32> to vector<8x32xf32>
    %145 = arith.mulf %141, %144 : vector<8x32xf32>
    %146 = arith.truncf %145 : vector<8x32xf32> to vector<8x32xbf16>
    %c0_51 = arith.constant 0 : index
    %c0_52 = arith.constant 0 : index
    %c0_53 = arith.constant 0 : index
    %147 = vector.load %arg10[%c0_51, %c0_52, %c0_53] : memref<2x32x128xbf16, #tpu.memory_space<vmem>>, vector<1x32x128xbf16>
    %148 = vector.shape_cast %147 : vector<1x32x128xbf16> to vector<32x128xbf16>
    %cst_54 = arith.constant dense<0.000000e+00> : vector<8x128xf32>
    %149 = tpu.matmul %146, %148, %cst_54 {dimension_numbers = #tpu.dot_dimension_numbers<[1], [0], [0], [1], [0, 0, 1, 1], [], []>} : vector<8x32xbf16>, vector<32x128xbf16>, vector<8x128xf32> -> vector<8x128xf32>
    %150 = vector.extract_strided_slice %149 {offsets = [0, 0], sizes = [8, 64], strides = [1, 1]} : vector<8x128xf32> to vector<8x64xf32>
    %151 = vector.extract_strided_slice %149 {offsets = [0, 64], sizes = [8, 64], strides = [1, 1]} : vector<8x128xf32> to vector<8x64xf32>
    %cst_55 = arith.constant 5.000000e-01 : f32
    %152 = vector.broadcast %cst_55 : f32 to vector<8x64xf32>
    %153 = arith.mulf %152, %150 : vector<8x64xf32>
    %cst_56 = arith.constant 4.471500e-02 : f32
    %154 = vector.broadcast %cst_56 : f32 to vector<8x64xf32>
    %155 = arith.mulf %154, %150 : vector<8x64xf32>
    %156 = arith.mulf %155, %150 : vector<8x64xf32>
    %157 = arith.mulf %156, %150 : vector<8x64xf32>
    %158 = arith.addf %150, %157 : vector<8x64xf32>
    %cst_57 = arith.constant 0.797884583 : f32
    %159 = vector.broadcast %cst_57 : f32 to vector<8x64xf32>
    %160 = arith.mulf %159, %158 : vector<8x64xf32>
    %161 = math.tanh %160 : vector<8x64xf32>
    %cst_58 = arith.constant 1.000000e+00 : f32
    %162 = vector.broadcast %cst_58 : f32 to vector<8x64xf32>
    %163 = arith.addf %162, %161 : vector<8x64xf32>
    %164 = arith.mulf %153, %163 : vector<8x64xf32>
    %165 = arith.mulf %164, %151 : vector<8x64xf32>
    %166 = arith.truncf %165 : vector<8x64xf32> to vector<8x64xbf16>
    %c0_59 = arith.constant 0 : index
    %c0_60 = arith.constant 0 : index
    %c0_61 = arith.constant 0 : index
    %167 = vector.load %arg11[%c0_59, %c0_60, %c0_61] : memref<2x64x32xbf16, #tpu.memory_space<vmem>>, vector<1x64x32xbf16>
    %168 = vector.shape_cast %167 : vector<1x64x32xbf16> to vector<64x32xbf16>
    %cst_62 = arith.constant dense<0.000000e+00> : vector<8x32xf32>
    %169 = tpu.matmul %166, %168, %cst_62 {dimension_numbers = #tpu.dot_dimension_numbers<[1], [0], [0], [1], [0, 0, 1, 1], [], []>} : vector<8x64xbf16>, vector<64x32xbf16>, vector<8x32xf32> -> vector<8x32xf32>
    %170 = arith.addf %129, %169 : vector<8x32xf32>
    %c1 = arith.constant 1 : index
    %c0_63 = arith.constant 0 : index
    %c0_64 = arith.constant 0 : index
    %171 = vector.load %arg6[%c1, %c0_63, %c0_64] : memref<2x1x32xf32, #tpu.memory_space<vmem>>, vector<1x1x32xf32>
    %172 = vector.shape_cast %171 : vector<1x1x32xf32> to vector<1x32xf32>
    %173 = arith.mulf %170, %170 : vector<8x32xf32>
    %cst_65 = arith.constant dense<0.000000e+00> : vector<8xf32>
    %174 = vector.multi_reduction <add>, %173, %cst_65 [1] : vector<8x32xf32> to vector<8xf32>
    %175 = vector.shape_cast %174 : vector<8xf32> to vector<8x1xf32>
    %cst_66 = arith.constant 3.200000e+01 : f32
    %176 = vector.broadcast %cst_66 : f32 to vector<8x1xf32>
    %177 = arith.divf %175, %176 : vector<8x1xf32>
    %cst_67 = arith.constant 9.99999997E-7 : f32
    %178 = vector.broadcast %cst_67 : f32 to vector<8x1xf32>
    %179 = arith.addf %177, %178 : vector<8x1xf32>
    %180 = math.rsqrt %179 : vector<8x1xf32>
    %181 = vector.broadcast %180 : vector<8x1xf32> to vector<8x32xf32>
    %182 = arith.mulf %170, %181 : vector<8x32xf32>
    %cst_68 = arith.constant 1.000000e+00 : f32
    %183 = vector.broadcast %cst_68 : f32 to vector<1x32xf32>
    %184 = arith.addf %183, %172 : vector<1x32xf32>
    %185 = vector.broadcast %184 : vector<1x32xf32> to vector<8x32xf32>
    %186 = arith.mulf %182, %185 : vector<8x32xf32>
    %187 = arith.truncf %186 : vector<8x32xf32> to vector<8x32xbf16>
    %c1_69 = arith.constant 1 : index
    %c0_70 = arith.constant 0 : index
    %c0_71 = arith.constant 0 : index
    %188 = vector.load %arg7[%c1_69, %c0_70, %c0_71] : memref<2x32x160xbf16, #tpu.memory_space<vmem>>, vector<1x32x160xbf16>
    %189 = vector.shape_cast %188 : vector<1x32x160xbf16> to vector<32x160xbf16>
    %cst_72 = arith.constant dense<0.000000e+00> : vector<8x160xf32>
    %190 = tpu.matmul %187, %189, %cst_72 {dimension_numbers = #tpu.dot_dimension_numbers<[1], [0], [0], [1], [0, 0, 1, 1], [], []>} : vector<8x32xbf16>, vector<32x160xbf16>, vector<8x160xf32> -> vector<8x160xf32>
    %191 = vector.extract_strided_slice %190 {offsets = [0, 0], sizes = [8, 32], strides = [1, 1]} : vector<8x160xf32> to vector<8x32xf32>
    %192 = arith.mulf %191, %4 : vector<8x32xf32>
    %193 = vector.extract_strided_slice %190 {offsets = [0, 96], sizes = [8, 32], strides = [1, 1]} : vector<8x160xf32> to vector<8x32xf32>
    %194 = arith.mulf %193, %7 : vector<8x32xf32>
    %195 = arith.addf %192, %194 : vector<8x32xf32>
    %196 = vector.extract_strided_slice %190 {offsets = [0, 32], sizes = [8, 32], strides = [1, 1]} : vector<8x160xf32> to vector<8x32xf32>
    %197 = arith.mulf %196, %4 : vector<8x32xf32>
    %198 = vector.extract_strided_slice %190 {offsets = [0, 128], sizes = [8, 32], strides = [1, 1]} : vector<8x160xf32> to vector<8x32xf32>
    %199 = arith.mulf %198, %7 : vector<8x32xf32>
    %200 = arith.addf %197, %199 : vector<8x32xf32>
    %201 = vector.extract_strided_slice %190 {offsets = [0, 64], sizes = [8, 32], strides = [1, 1]} : vector<8x160xf32> to vector<8x32xf32>
    %cst_73 = arith.constant 0.353553385 : f32
    %202 = vector.broadcast %cst_73 : f32 to vector<8x32xf32>
    %203 = arith.mulf %195, %202 : vector<8x32xf32>
    %204 = arith.truncf %203 : vector<8x32xf32> to vector<8x32xbf16>
    %205 = arith.truncf %200 : vector<8x32xf32> to vector<8x32xbf16>
    %206 = arith.truncf %201 : vector<8x32xf32> to vector<8x32xbf16>
    %207 = vector.extract_strided_slice %204 {offsets = [0, 0], sizes = [8, 8], strides = [1, 1]} : vector<8x32xbf16> to vector<8x8xbf16>
    %208 = vector.extract_strided_slice %205 {offsets = [0, 0], sizes = [8, 8], strides = [1, 1]} : vector<8x32xbf16> to vector<8x8xbf16>
    %cst_74 = arith.constant dense<0.000000e+00> : vector<8x8xf32>
    %209 = tpu.matmul %207, %208, %cst_74 {dimension_numbers = #tpu.dot_dimension_numbers<[1], [1], [0], [0], [0, 0, 1, 0], [], []>} : vector<8x8xbf16>, vector<8x8xbf16>, vector<8x8xf32> -> vector<8x8xf32>
    %210 = arith.addf %209, %19 : vector<8x8xf32>
    %cst_75 = arith.constant dense<0xFF800000> : vector<8xf32>
    %211 = vector.multi_reduction <maximumf>, %210, %cst_75 [1] : vector<8x8xf32> to vector<8xf32>
    %212 = vector.shape_cast %211 : vector<8xf32> to vector<8x1xf32>
    %213 = vector.broadcast %212 : vector<8x1xf32> to vector<8x8xf32>
    %214 = arith.subf %210, %213 : vector<8x8xf32>
    %215 = math.exp %214 : vector<8x8xf32>
    %cst_76 = arith.constant dense<0.000000e+00> : vector<8xf32>
    %216 = vector.multi_reduction <add>, %215, %cst_76 [1] : vector<8x8xf32> to vector<8xf32>
    %217 = vector.shape_cast %216 : vector<8xf32> to vector<8x1xf32>
    %218 = tpu.reciprocal %217 {approx = true} : vector<8x1xf32> -> vector<8x1xf32>
    %219 = vector.broadcast %218 : vector<8x1xf32> to vector<8x8xf32>
    %220 = arith.mulf %215, %219 : vector<8x8xf32>
    %221 = arith.truncf %220 : vector<8x8xf32> to vector<8x8xbf16>
    %222 = vector.extract_strided_slice %206 {offsets = [0, 0], sizes = [8, 8], strides = [1, 1]} : vector<8x32xbf16> to vector<8x8xbf16>
    %cst_77 = arith.constant dense<0.000000e+00> : vector<8x8xf32>
    %223 = tpu.matmul %221, %222, %cst_77 {dimension_numbers = #tpu.dot_dimension_numbers<[1], [0], [0], [1], [0, 0, 1, 1], [], []>} : vector<8x8xbf16>, vector<8x8xbf16>, vector<8x8xf32> -> vector<8x8xf32>
    %224 = vector.extract_strided_slice %204 {offsets = [0, 8], sizes = [8, 8], strides = [1, 1]} : vector<8x32xbf16> to vector<8x8xbf16>
    %225 = vector.extract_strided_slice %205 {offsets = [0, 8], sizes = [8, 8], strides = [1, 1]} : vector<8x32xbf16> to vector<8x8xbf16>
    %cst_78 = arith.constant dense<0.000000e+00> : vector<8x8xf32>
    %226 = tpu.matmul %224, %225, %cst_78 {dimension_numbers = #tpu.dot_dimension_numbers<[1], [1], [0], [0], [0, 0, 1, 0], [], []>} : vector<8x8xbf16>, vector<8x8xbf16>, vector<8x8xf32> -> vector<8x8xf32>
    %227 = arith.addf %226, %19 : vector<8x8xf32>
    %cst_79 = arith.constant dense<0xFF800000> : vector<8xf32>
    %228 = vector.multi_reduction <maximumf>, %227, %cst_79 [1] : vector<8x8xf32> to vector<8xf32>
    %229 = vector.shape_cast %228 : vector<8xf32> to vector<8x1xf32>
    %230 = vector.broadcast %229 : vector<8x1xf32> to vector<8x8xf32>
    %231 = arith.subf %227, %230 : vector<8x8xf32>
    %232 = math.exp %231 : vector<8x8xf32>
    %cst_80 = arith.constant dense<0.000000e+00> : vector<8xf32>
    %233 = vector.multi_reduction <add>, %232, %cst_80 [1] : vector<8x8xf32> to vector<8xf32>
    %234 = vector.shape_cast %233 : vector<8xf32> to vector<8x1xf32>
    %235 = tpu.reciprocal %234 {approx = true} : vector<8x1xf32> -> vector<8x1xf32>
    %236 = vector.broadcast %235 : vector<8x1xf32> to vector<8x8xf32>
    %237 = arith.mulf %232, %236 : vector<8x8xf32>
    %238 = arith.truncf %237 : vector<8x8xf32> to vector<8x8xbf16>
    %239 = vector.extract_strided_slice %206 {offsets = [0, 8], sizes = [8, 8], strides = [1, 1]} : vector<8x32xbf16> to vector<8x8xbf16>
    %cst_81 = arith.constant dense<0.000000e+00> : vector<8x8xf32>
    %240 = tpu.matmul %238, %239, %cst_81 {dimension_numbers = #tpu.dot_dimension_numbers<[1], [0], [0], [1], [0, 0, 1, 1], [], []>} : vector<8x8xbf16>, vector<8x8xbf16>, vector<8x8xf32> -> vector<8x8xf32>
    %241 = vector.extract_strided_slice %204 {offsets = [0, 16], sizes = [8, 8], strides = [1, 1]} : vector<8x32xbf16> to vector<8x8xbf16>
    %242 = vector.extract_strided_slice %205 {offsets = [0, 16], sizes = [8, 8], strides = [1, 1]} : vector<8x32xbf16> to vector<8x8xbf16>
    %cst_82 = arith.constant dense<0.000000e+00> : vector<8x8xf32>
    %243 = tpu.matmul %241, %242, %cst_82 {dimension_numbers = #tpu.dot_dimension_numbers<[1], [1], [0], [0], [0, 0, 1, 0], [], []>} : vector<8x8xbf16>, vector<8x8xbf16>, vector<8x8xf32> -> vector<8x8xf32>
    %244 = arith.addf %243, %19 : vector<8x8xf32>
    %cst_83 = arith.constant dense<0xFF800000> : vector<8xf32>
    %245 = vector.multi_reduction <maximumf>, %244, %cst_83 [1] : vector<8x8xf32> to vector<8xf32>
    %246 = vector.shape_cast %245 : vector<8xf32> to vector<8x1xf32>
    %247 = vector.broadcast %246 : vector<8x1xf32> to vector<8x8xf32>
    %248 = arith.subf %244, %247 : vector<8x8xf32>
    %249 = math.exp %248 : vector<8x8xf32>
    %cst_84 = arith.constant dense<0.000000e+00> : vector<8xf32>
    %250 = vector.multi_reduction <add>, %249, %cst_84 [1] : vector<8x8xf32> to vector<8xf32>
    %251 = vector.shape_cast %250 : vector<8xf32> to vector<8x1xf32>
    %252 = tpu.reciprocal %251 {approx = true} : vector<8x1xf32> -> vector<8x1xf32>
    %253 = vector.broadcast %252 : vector<8x1xf32> to vector<8x8xf32>
    %254 = arith.mulf %249, %253 : vector<8x8xf32>
    %255 = arith.truncf %254 : vector<8x8xf32> to vector<8x8xbf16>
    %256 = vector.extract_strided_slice %206 {offsets = [0, 16], sizes = [8, 8], strides = [1, 1]} : vector<8x32xbf16> to vector<8x8xbf16>
    %cst_85 = arith.constant dense<0.000000e+00> : vector<8x8xf32>
    %257 = tpu.matmul %255, %256, %cst_85 {dimension_numbers = #tpu.dot_dimension_numbers<[1], [0], [0], [1], [0, 0, 1, 1], [], []>} : vector<8x8xbf16>, vector<8x8xbf16>, vector<8x8xf32> -> vector<8x8xf32>
    %258 = vector.extract_strided_slice %204 {offsets = [0, 24], sizes = [8, 8], strides = [1, 1]} : vector<8x32xbf16> to vector<8x8xbf16>
    %259 = vector.extract_strided_slice %205 {offsets = [0, 24], sizes = [8, 8], strides = [1, 1]} : vector<8x32xbf16> to vector<8x8xbf16>
    %cst_86 = arith.constant dense<0.000000e+00> : vector<8x8xf32>
    %260 = tpu.matmul %258, %259, %cst_86 {dimension_numbers = #tpu.dot_dimension_numbers<[1], [1], [0], [0], [0, 0, 1, 0], [], []>} : vector<8x8xbf16>, vector<8x8xbf16>, vector<8x8xf32> -> vector<8x8xf32>
    %261 = arith.addf %260, %19 : vector<8x8xf32>
    %cst_87 = arith.constant dense<0xFF800000> : vector<8xf32>
    %262 = vector.multi_reduction <maximumf>, %261, %cst_87 [1] : vector<8x8xf32> to vector<8xf32>
    %263 = vector.shape_cast %262 : vector<8xf32> to vector<8x1xf32>
    %264 = vector.broadcast %263 : vector<8x1xf32> to vector<8x8xf32>
    %265 = arith.subf %261, %264 : vector<8x8xf32>
    %266 = math.exp %265 : vector<8x8xf32>
    %cst_88 = arith.constant dense<0.000000e+00> : vector<8xf32>
    %267 = vector.multi_reduction <add>, %266, %cst_88 [1] : vector<8x8xf32> to vector<8xf32>
    %268 = vector.shape_cast %267 : vector<8xf32> to vector<8x1xf32>
    %269 = tpu.reciprocal %268 {approx = true} : vector<8x1xf32> -> vector<8x1xf32>
    %270 = vector.broadcast %269 : vector<8x1xf32> to vector<8x8xf32>
    %271 = arith.mulf %266, %270 : vector<8x8xf32>
    %272 = arith.truncf %271 : vector<8x8xf32> to vector<8x8xbf16>
    %273 = vector.extract_strided_slice %206 {offsets = [0, 24], sizes = [8, 8], strides = [1, 1]} : vector<8x32xbf16> to vector<8x8xbf16>
    %cst_89 = arith.constant dense<0.000000e+00> : vector<8x8xf32>
    %274 = tpu.matmul %272, %273, %cst_89 {dimension_numbers = #tpu.dot_dimension_numbers<[1], [0], [0], [1], [0, 0, 1, 1], [], []>} : vector<8x8xbf16>, vector<8x8xbf16>, vector<8x8xf32> -> vector<8x8xf32>
    %275 = tpu.concatenate %223, %240, %257, %274 in 1 : vector<8x8xf32>, vector<8x8xf32>, vector<8x8xf32>, vector<8x8xf32> -> vector<8x32xf32>
    %276 = arith.truncf %275 : vector<8x32xf32> to vector<8x32xbf16>
    %c1_90 = arith.constant 1 : index
    %c0_91 = arith.constant 0 : index
    %c0_92 = arith.constant 0 : index
    %277 = vector.load %arg8[%c1_90, %c0_91, %c0_92] : memref<2x32x32xbf16, #tpu.memory_space<vmem>>, vector<1x32x32xbf16>
    %278 = vector.shape_cast %277 : vector<1x32x32xbf16> to vector<32x32xbf16>
    %cst_93 = arith.constant dense<0.000000e+00> : vector<8x32xf32>
    %279 = tpu.matmul %276, %278, %cst_93 {dimension_numbers = #tpu.dot_dimension_numbers<[1], [0], [0], [1], [0, 0, 1, 1], [], []>} : vector<8x32xbf16>, vector<32x32xbf16>, vector<8x32xf32> -> vector<8x32xf32>
    %280 = arith.addf %170, %279 : vector<8x32xf32>
    %c1_94 = arith.constant 1 : index
    %c0_95 = arith.constant 0 : index
    %c0_96 = arith.constant 0 : index
    %281 = vector.load %arg9[%c1_94, %c0_95, %c0_96] : memref<2x1x32xf32, #tpu.memory_space<vmem>>, vector<1x1x32xf32>
    %282 = vector.shape_cast %281 : vector<1x1x32xf32> to vector<1x32xf32>
    %283 = arith.mulf %280, %280 : vector<8x32xf32>
    %cst_97 = arith.constant dense<0.000000e+00> : vector<8xf32>
    %284 = vector.multi_reduction <add>, %283, %cst_97 [1] : vector<8x32xf32> to vector<8xf32>
    %285 = vector.shape_cast %284 : vector<8xf32> to vector<8x1xf32>
    %cst_98 = arith.constant 3.200000e+01 : f32
    %286 = vector.broadcast %cst_98 : f32 to vector<8x1xf32>
    %287 = arith.divf %285, %286 : vector<8x1xf32>
    %cst_99 = arith.constant 9.99999997E-7 : f32
    %288 = vector.broadcast %cst_99 : f32 to vector<8x1xf32>
    %289 = arith.addf %287, %288 : vector<8x1xf32>
    %290 = math.rsqrt %289 : vector<8x1xf32>
    %291 = vector.broadcast %290 : vector<8x1xf32> to vector<8x32xf32>
    %292 = arith.mulf %280, %291 : vector<8x32xf32>
    %cst_100 = arith.constant 1.000000e+00 : f32
    %293 = vector.broadcast %cst_100 : f32 to vector<1x32xf32>
    %294 = arith.addf %293, %282 : vector<1x32xf32>
    %295 = vector.broadcast %294 : vector<1x32xf32> to vector<8x32xf32>
    %296 = arith.mulf %292, %295 : vector<8x32xf32>
    %297 = arith.truncf %296 : vector<8x32xf32> to vector<8x32xbf16>
    %c1_101 = arith.constant 1 : index
    %c0_102 = arith.constant 0 : index
    %c0_103 = arith.constant 0 : index
    %298 = vector.load %arg10[%c1_101, %c0_102, %c0_103] : memref<2x32x128xbf16, #tpu.memory_space<vmem>>, vector<1x32x128xbf16>
    %299 = vector.shape_cast %298 : vector<1x32x128xbf16> to vector<32x128xbf16>
    %cst_104 = arith.constant dense<0.000000e+00> : vector<8x128xf32>
    %300 = tpu.matmul %297, %299, %cst_104 {dimension_numbers = #tpu.dot_dimension_numbers<[1], [0], [0], [1], [0, 0, 1, 1], [], []>} : vector<8x32xbf16>, vector<32x128xbf16>, vector<8x128xf32> -> vector<8x128xf32>
    %301 = vector.extract_strided_slice %300 {offsets = [0, 0], sizes = [8, 64], strides = [1, 1]} : vector<8x128xf32> to vector<8x64xf32>
    %302 = vector.extract_strided_slice %300 {offsets = [0, 64], sizes = [8, 64], strides = [1, 1]} : vector<8x128xf32> to vector<8x64xf32>
    %cst_105 = arith.constant 5.000000e-01 : f32
    %303 = vector.broadcast %cst_105 : f32 to vector<8x64xf32>
    %304 = arith.mulf %303, %301 : vector<8x64xf32>
    %cst_106 = arith.constant 4.471500e-02 : f32
    %305 = vector.broadcast %cst_106 : f32 to vector<8x64xf32>
    %306 = arith.mulf %305, %301 : vector<8x64xf32>
    %307 = arith.mulf %306, %301 : vector<8x64xf32>
    %308 = arith.mulf %307, %301 : vector<8x64xf32>
    %309 = arith.addf %301, %308 : vector<8x64xf32>
    %cst_107 = arith.constant 0.797884583 : f32
    %310 = vector.broadcast %cst_107 : f32 to vector<8x64xf32>
    %311 = arith.mulf %310, %309 : vector<8x64xf32>
    %312 = math.tanh %311 : vector<8x64xf32>
    %cst_108 = arith.constant 1.000000e+00 : f32
    %313 = vector.broadcast %cst_108 : f32 to vector<8x64xf32>
    %314 = arith.addf %313, %312 : vector<8x64xf32>
    %315 = arith.mulf %304, %314 : vector<8x64xf32>
    %316 = arith.mulf %315, %302 : vector<8x64xf32>
    %317 = arith.truncf %316 : vector<8x64xf32> to vector<8x64xbf16>
    %c1_109 = arith.constant 1 : index
    %c0_110 = arith.constant 0 : index
    %c0_111 = arith.constant 0 : index
    %318 = vector.load %arg11[%c1_109, %c0_110, %c0_111] : memref<2x64x32xbf16, #tpu.memory_space<vmem>>, vector<1x64x32xbf16>
    %319 = vector.shape_cast %318 : vector<1x64x32xbf16> to vector<64x32xbf16>
    %cst_112 = arith.constant dense<0.000000e+00> : vector<8x32xf32>
    %320 = tpu.matmul %317, %319, %cst_112 {dimension_numbers = #tpu.dot_dimension_numbers<[1], [0], [0], [1], [0, 0, 1, 1], [], []>} : vector<8x64xbf16>, vector<64x32xbf16>, vector<8x32xf32> -> vector<8x32xf32>
    %321 = arith.addf %280, %320 : vector<8x32xf32>
    %c0_113 = arith.constant 0 : index
    %c0_114 = arith.constant 0 : index
    %322 = vector.load %arg12[%c0_113, %c0_114] : memref<1x32xf32, #tpu.memory_space<vmem>>, vector<1x32xf32>
    %323 = arith.mulf %321, %321 : vector<8x32xf32>
    %cst_115 = arith.constant dense<0.000000e+00> : vector<8xf32>
    %324 = vector.multi_reduction <add>, %323, %cst_115 [1] : vector<8x32xf32> to vector<8xf32>
    %325 = vector.shape_cast %324 : vector<8xf32> to vector<8x1xf32>
    %cst_116 = arith.constant 3.200000e+01 : f32
    %326 = vector.broadcast %cst_116 : f32 to vector<8x1xf32>
    %327 = arith.divf %325, %326 : vector<8x1xf32>
    %cst_117 = arith.constant 9.99999997E-7 : f32
    %328 = vector.broadcast %cst_117 : f32 to vector<8x1xf32>
    %329 = arith.addf %327, %328 : vector<8x1xf32>
    %330 = math.rsqrt %329 : vector<8x1xf32>
    %331 = vector.broadcast %330 : vector<8x1xf32> to vector<8x32xf32>
    %332 = arith.mulf %321, %331 : vector<8x32xf32>
    %cst_118 = arith.constant 1.000000e+00 : f32
    %333 = vector.broadcast %cst_118 : f32 to vector<1x32xf32>
    %334 = arith.addf %333, %322 : vector<1x32xf32>
    %335 = vector.broadcast %334 : vector<1x32xf32> to vector<8x32xf32>
    %336 = arith.mulf %332, %335 : vector<8x32xf32>
    %337 = arith.truncf %336 : vector<8x32xf32> to vector<8x32xbf16>
    %c0_119 = arith.constant 0 : index
    %c0_120 = arith.constant 0 : index
    %338 = vector.load %arg13[%c0_119, %c0_120] : memref<32x128xbf16, #tpu.memory_space<vmem>>, vector<32x128xbf16>
    %cst_121 = arith.constant dense<0.000000e+00> : vector<8x128xf32>
    %339 = tpu.matmul %337, %338, %cst_121 {dimension_numbers = #tpu.dot_dimension_numbers<[1], [0], [0], [1], [0, 0, 1, 1], [], []>} : vector<8x32xbf16>, vector<32x128xbf16>, vector<8x128xf32> -> vector<8x128xf32>
    %c0_122 = arith.constant 0 : index
    %c0_123 = arith.constant 0 : index
    %c0_124 = arith.constant 0 : index
    %340 = vector.load %arg14[%c0_122, %c0_123, %c0_124] : memref<1x8x128xf32, #tpu.memory_space<vmem>>, vector<1x8x128xf32>
    %341 = vector.shape_cast %340 : vector<1x8x128xf32> to vector<8x128xf32>
    %342 = vector.shape_cast %339 : vector<8x128xf32> to vector<1x8x128xf32>
    tpu.vector_store %arg14[%c0_122, %c0_123, %c0_124], %342 {strides = array<i32>} : memref<1x8x128xf32, #tpu.memory_space<vmem>>, vector<1x8x128xf32>,
    %343 = tpu.iota {dimensions = array<i32: 1>} : vector<8x128xi32>
    %c64_i32 = arith.constant 64 : i32
    %344 = vector.broadcast %c64_i32 : i32 to vector<8x128xi32>
    %345 = arith.cmpi slt, %343, %344 : vector<8x128xi32>
    %cst_125 = arith.constant -1.000000e+09 : f32
    %346 = vector.broadcast %cst_125 : f32 to vector<8x128xf32>
    %347 = arith.select %345, %339, %346 : vector<8x128xi1>, vector<8x128xf32>
    %cst_126 = arith.constant dense<0xFF800000> : vector<8xf32>
    %348 = vector.multi_reduction <maximumf>, %347, %cst_126 [1] : vector<8x128xf32> to vector<8xf32>
    %349 = vector.shape_cast %348 : vector<8xf32> to vector<8x1xf32>
    %350 = vector.broadcast %349 : vector<8x1xf32> to vector<8x128xf32>
    %351 = arith.subf %347, %350 : vector<8x128xf32>
    %352 = math.exp %351 : vector<8x128xf32>
    %cst_127 = arith.constant dense<0.000000e+00> : vector<8xf32>
    %353 = vector.multi_reduction <add>, %352, %cst_127 [1] : vector<8x128xf32> to vector<8xf32>
    %354 = vector.shape_cast %353 : vector<8xf32> to vector<8x1xf32>
    %355 = math.log %354 : vector<8x1xf32>
    %356 = arith.addf %355, %349 : vector<8x1xf32>
    %c0_128 = arith.constant 0 : index
    %c0_129 = arith.constant 0 : index
    %c0_130 = arith.constant 0 : index
    %357 = vector.load %arg5[%c0_128, %c0_129, %c0_130] : memref<1x8x1xi32, #tpu.memory_space<vmem>>, vector<1x8x1xi32>
    %358 = vector.shape_cast %357 : vector<1x8x1xi32> to vector<8x1xi32>
    %359 = vector.broadcast %358 : vector<8x1xi32> to vector<8x128xi32>
    %360 = arith.cmpi eq, %343, %359 : vector<8x128xi32>
    %cst_131 = arith.constant 0.000000e+00 : f32
    %361 = vector.broadcast %cst_131 : f32 to vector<8x128xf32>
    %362 = arith.select %360, %339, %361 : vector<8x128xi1>, vector<8x128xf32>
    %cst_132 = arith.constant dense<0.000000e+00> : vector<8xf32>
    %363 = vector.multi_reduction <add>, %362, %cst_132 [1] : vector<8x128xf32> to vector<8xf32>
    %364 = vector.shape_cast %363 : vector<8xf32> to vector<8x1xf32>
    %c0_i32_133 = arith.constant 0 : i32
    %365 = vector.broadcast %c0_i32_133 : i32 to vector<8x1xi32>
    %366 = arith.cmpi sge, %358, %365 : vector<8x1xi32>
    %367 = arith.extui %366 : vector<8x1xi1> to vector<8x1xi32>
    %368 = arith.sitofp %367 : vector<8x1xi32> to vector<8x1xf32>
    %369 = arith.subf %356, %364 : vector<8x1xf32>
    %370 = arith.mulf %369, %368 : vector<8x1xf32>
    %371 = vector.shape_cast %370 : vector<8x1xf32> to vector<1x8x1xf32>
    %cst_134 = arith.constant dense<0.000000e+00> : vector<1xf32>
    %372 = vector.multi_reduction <add>, %371, %cst_134 [1, 2] : vector<1x8x1xf32> to vector<1xf32>
    %373 = vector.shape_cast %372 : vector<1xf32> to vector<1x1x1xf32>
    %374 = vector.extract %373[0, 0, 0] : f32 from vector<1x1x1xf32>
    %375 = vector.broadcast %374 : f32 to vector<1x1xf32>
    %376 = vector.shape_cast %368 : vector<8x1xf32> to vector<1x8x1xf32>
    %cst_135 = arith.constant dense<0.000000e+00> : vector<1xf32>
    %377 = vector.multi_reduction <add>, %376, %cst_135 [1, 2] : vector<1x8x1xf32> to vector<1xf32>
    %378 = vector.shape_cast %377 : vector<1xf32> to vector<1x1x1xf32>
    %379 = vector.extract %378[0, 0, 0] : f32 from vector<1x1x1xf32>
    %380 = vector.broadcast %379 : f32 to vector<1x1xf32>
    %381 = tpu.concatenate %375, %380 in 1 : vector<1x1xf32>, vector<1x1xf32> -> vector<1x2xf32>
    %c0_136 = arith.constant 0 : index
    %c0_137 = arith.constant 0 : index
    %c0_138 = arith.constant 0 : index
    %382 = vector.load %arg15[%c0_136, %c0_137, %c0_138] : memref<1x1x2xf32, #tpu.memory_space<vmem>>, vector<1x1x2xf32>
    %383 = vector.shape_cast %382 : vector<1x1x2xf32> to vector<1x2xf32>
    %384 = vector.shape_cast %381 : vector<1x2xf32> to vector<1x1x2xf32>
    tpu.vector_store %arg15[%c0_136, %c0_137, %c0_138], %384 {strides = array<i32>} : memref<1x1x2xf32, #tpu.memory_space<vmem>>, vector<1x1x2xf32>,
    return
  }
  func.func @transform_0(%arg0: i32) -> (i32, i32, i32) {
    %c0_i32 = arith.constant 0 : i32
    %c0_i32_0 = arith.constant 0 : i32
    %c0_i32_1 = arith.constant 0 : i32
    return %arg0, %c0_i32, %c0_i32_0 : i32, i32, i32
  }
  func.func @transform_1(%arg0: i32) -> (i32, i32, i32) {
    %c0_i32 = arith.constant 0 : i32
    %c0_i32_0 = arith.constant 0 : i32
    %c0_i32_1 = arith.constant 0 : i32
    return %arg0, %c0_i32, %c0_i32_0 : i32, i32, i32
  }
  func.func @transform_2(%arg0: i32) -> (i32, i32, i32) {
    %c0_i32 = arith.constant 0 : i32
    %c0_i32_0 = arith.constant 0 : i32
    %c0_i32_1 = arith.constant 0 : i32
    return %arg0, %c0_i32, %c0_i32_0 : i32, i32, i32
  }
  func.func @transform_3(%arg0: i32) -> (i32, i32, i32) {
    %c0_i32 = arith.constant 0 : i32
    %c0_i32_0 = arith.constant 0 : i32
    %c0_i32_1 = arith.constant 0 : i32
    return %arg0, %c0_i32, %c0_i32_0 : i32, i32, i32
  }
  func.func @transform_4(%arg0: i32) -> (i32, i32, i32) {
    %c0_i32 = arith.constant 0 : i32
    %c0_i32_0 = arith.constant 0 : i32
    %c0_i32_1 = arith.constant 0 : i32
    return %arg0, %c0_i32, %c0_i32_0 : i32, i32, i32
  }
  func.func @transform_5(%arg0: i32) -> (i32, i32, i32) {
    %c0_i32 = arith.constant 0 : i32
    %c0_i32_0 = arith.constant 0 : i32
    %c0_i32_1 = arith.constant 0 : i32
    %c0_i32_2 = arith.constant 0 : i32
    return %c0_i32, %c0_i32_0, %c0_i32_1 : i32, i32, i32
  }
  func.func @transform_6(%arg0: i32) -> (i32, i32, i32) {
    %c0_i32 = arith.constant 0 : i32
    %c0_i32_0 = arith.constant 0 : i32
    %c0_i32_1 = arith.constant 0 : i32
    %c0_i32_2 = arith.constant 0 : i32
    return %c0_i32, %c0_i32_0, %c0_i32_1 : i32, i32, i32
  }
  func.func @transform_7(%arg0: i32) -> (i32, i32, i32) {
    %c0_i32 = arith.constant 0 : i32
    %c0_i32_0 = arith.constant 0 : i32
    %c0_i32_1 = arith.constant 0 : i32
    %c0_i32_2 = arith.constant 0 : i32
    return %c0_i32, %c0_i32_0, %c0_i32_1 : i32, i32, i32
  }
  func.func @transform_8(%arg0: i32) -> (i32, i32, i32) {
    %c0_i32 = arith.constant 0 : i32
    %c0_i32_0 = arith.constant 0 : i32
    %c0_i32_1 = arith.constant 0 : i32
    %c0_i32_2 = arith.constant 0 : i32
    return %c0_i32, %c0_i32_0, %c0_i32_1 : i32, i32, i32
  }
  func.func @transform_9(%arg0: i32) -> (i32, i32, i32) {
    %c0_i32 = arith.constant 0 : i32
    %c0_i32_0 = arith.constant 0 : i32
    %c0_i32_1 = arith.constant 0 : i32
    %c0_i32_2 = arith.constant 0 : i32
    return %c0_i32, %c0_i32_0, %c0_i32_1 : i32, i32, i32
  }
  func.func @transform_10(%arg0: i32) -> (i32, i32, i32) {
    %c0_i32 = arith.constant 0 : i32
    %c0_i32_0 = arith.constant 0 : i32
    %c0_i32_1 = arith.constant 0 : i32
    %c0_i32_2 = arith.constant 0 : i32
    return %c0_i32, %c0_i32_0, %c0_i32_1 : i32, i32, i32
  }
  func.func @transform_11(%arg0: i32) -> (i32, i32) {
    %c0_i32 = arith.constant 0 : i32
    %c0_i32_0 = arith.constant 0 : i32
    %c0_i32_1 = arith.constant 0 : i32
    return %c0_i32, %c0_i32_0 : i32, i32
  }
  func.func @transform_12(%arg0: i32) -> (i32, i32) {
    %c0_i32 = arith.constant 0 : i32
    %c0_i32_0 = arith.constant 0 : i32
    %c0_i32_1 = arith.constant 0 : i32
    return %c0_i32, %c0_i32_0 : i32, i32
  }
  func.func @transform_13(%arg0: i32) -> (i32, i32, i32) {
    %c0_i32 = arith.constant 0 : i32
    %c0_i32_0 = arith.constant 0 : i32
    %c0_i32_1 = arith.constant 0 : i32
    return %arg0, %c0_i32, %c0_i32_0 : i32, i32, i32
  }
  func.func @transform_14(%arg0: i32) -> (i32, i32, i32) {
    %c0_i32 = arith.constant 0 : i32
    %c0_i32_0 = arith.constant 0 : i32
    %c0_i32_1 = arith.constant 0 : i32
    return %arg0, %c0_i32, %c0_i32_0 : i32, i32, i32
  }
}

</mosaic_0001>

<llo_original>
// kernel: gemma_forward.1
$region0: #{gemma_forward.1}
  #allocation0 [shape = 'u32[]', space=smem, size = 0x4, offset = 0x4, fixed_abs, tag = 'smem constant byte address 0x4 - core index']
  #allocation1 [shape = 'u32[144,128]{1,0:T(1,128)}', space=vmem, size = 0x12000, scoped, tag = 'internal scratch']
  %s0 = inlined_call_operand.vmem [shape: f32[2,8,32], index: 0, kind: input, shape index: {}]
  %s1 = inlined_call_operand.vmem [shape: s32[2,1,8], index: 1, kind: input, shape index: {}]
  %s2 = inlined_call_operand.vmem [shape: f32[2,8,8], index: 2, kind: input, shape index: {}]
  %s3 = inlined_call_operand.vmem [shape: f32[2,8,8], index: 3, kind: input, shape index: {}]
  %s4 = inlined_call_operand.vmem [shape: s32[2,8,1], index: 4, kind: input, shape index: {}]
  %s5 = inlined_call_operand.vmem [shape: f32[2,1,32], index: 5, kind: input, shape index: {}]
  %s6 = inlined_call_operand.vmem [shape: bf16[2,32,160], index: 6, kind: input, shape index: {}]
  %s7 = inlined_call_operand.vmem [shape: bf16[2,32,32], index: 7, kind: input, shape index: {}]
  %s8 = inlined_call_operand.vmem [shape: f32[2,1,32], index: 8, kind: input, shape index: {}]
  %s9 = inlined_call_operand.vmem [shape: bf16[2,32,128], index: 9, kind: input, shape index: {}]
  %s10 = inlined_call_operand.vmem [shape: bf16[2,64,32], index: 10, kind: input, shape index: {}]
  %s11 = inlined_call_operand.vmem [shape: f32[1,32], index: 11, kind: input, shape index: {}]
  %s12 = inlined_call_operand.vmem [shape: bf16[32,128], index: 12, kind: input, shape index: {}]
  %s13 = inlined_call_operand.hbm [shape: f32[2,8,128], index: 13, kind: output, shape index: {0}]
  %s14 = inlined_call_operand.vmem [shape: f32[2,1,2], index: 14, kind: output, shape index: {1}]
  %15 = xla_tuple %s13, %s14
  %s16 = sld [smem:[#allocation0]]
  $region93: #{gemma_forward.1} parent=0
    _
  %s18 = ssub.s32 1, %s16
  %s19 = scalar_select 0, %s18, %s16
  $region1: #{gemma_forward.1} parent=0
    #allocation2 [shape = 'u8[8192]{0}', space=vmem, size = 0x2000, scoped, tag = 'output window, operand 0']
    #allocation3 [shape = 's32[2]{0}', space=sflag, size = 0x8, scoped, tag = 'scoped memory for gemma_forward.1']
    %20 = vsyncpa [#allocation3], 0
    %s21 = scalar_lea.sflag [#allocation3], 1
    %22 = vsyncpa %s21, 0
    loop: start=0, step=1, limit=4
    $region2: #{gemma_forward.1} parent=1 // loop_pre_header
      _
    $region3: #{gemma_forward.1} parent=1 // loop_header
      %s24 = sphi 0, %s28
      %p25 = scmp.ge.s32.totalorder %s24, 4
      %s34 = sphi 0, %s36
      %s37 = sphi 0, %s34
      %s38 = sphi 0, %s37
      %s54 = sphi 0, %s38
      %s60 = sphi 0, %s62
      %s63 = sphi 0, %s60
      %s64 = sphi 0, %s63
      %s80 = sphi 0, %s64
      %s86 = sphi 0, %s88
      %s89 = sphi 0, %s86
      %s90 = sphi 0, %s89
      %s106 = sphi 0, %s90
      %s112 = sphi 0, %s114
      %s115 = sphi 0, %s112
      %s116 = sphi 0, %s115
      %s132 = sphi 0, %s116
      %s138 = sphi 0, %s140
      %s141 = sphi 0, %s138
      %s142 = sphi 0, %s141
      %s158 = sphi 0, %s142
      %s162 = sphi 0, %s162
      %s164 = sphi 0, %s162
      %s165 = sphi 0, %s164
      %s179 = sphi 0, %s165
      %s183 = sphi 0, %s183
      %s185 = sphi 0, %s183
      %s186 = sphi 0, %s185
      %s200 = sphi 0, %s186
      %s204 = sphi 0, %s204
      %s206 = sphi 0, %s204
      %s207 = sphi 0, %s206
      %s221 = sphi 0, %s207
      %s225 = sphi 0, %s225
      %s227 = sphi 0, %s225
      %s228 = sphi 0, %s227
      %s242 = sphi 0, %s228
      %s246 = sphi 0, %s246
      %s248 = sphi 0, %s246
      %s249 = sphi 0, %s248
      %s263 = sphi 0, %s249
      %s267 = sphi 0, %s267
      %s269 = sphi 0, %s267
      %s270 = sphi 0, %s269
      %s284 = sphi 0, %s270
      %s288 = sphi 0, %s288
      %s290 = sphi 0, %s288
      %s291 = sphi 0, %s290
      %s305 = sphi 0, %s291
      %s309 = sphi 0, %s309
      %s311 = sphi 0, %s309
      %s312 = sphi 0, %s311
      %s326 = sphi 0, %s312
      %s332 = sphi 0, %s334
      %s335 = sphi 0, %s332
      %s336 = sphi 0, %s335
      %s352 = sphi 0, %s336
      %s358 = sphi 0, %s360
      %s361 = sphi 0, %s358
      %s362 = sphi 0, %s361
      %s378 = sphi 0, %s362
    $region4: #{gemma_forward.1} parent=1 // loop_header_branch
      %27 = sbr.rel (%p25) target = $region8
    $region5: #{gemma_forward.1} parent=1 // loop_body
      %s29 = ssub.s32 %s24, 1
      %s30 = ssub.s32 %s24, 2
      %s31 = sadd.s32 %s24, 1
      %s32 = ssub.s32 %s24, %s31
      %p33 = scmp.eq.s32.totalorder %s32, 0
      %s35 = sadd.s32 %s34, 1
      %s36 = scalar_select %p33, %s34, %s35
      %p39 = pneg %p33
      %p40 = scmp.eq.s32.totalorder %s24, 1
      %p41 = por %p39, %p40
      %p42 = scmp.ne.s32.totalorder %s34, %s37
      %p43 = scmp.eq.s32.totalorder %s24, 0
      %p44 = por %p42, %p43
      %p45 = scmp.ne.s32.totalorder %s34, %s37
      %p46 = scmp.eq.s32.totalorder %s29, 1
      %p47 = por %p45, %p46
      %p48 = scmp.ne.s32.totalorder %s37, %s38
      %p49 = scmp.eq.s32.totalorder %s29, 0
      %p50 = por %p48, %p49
      %p51 = scmp.ne.s32.totalorder %s37, %s38
      %p52 = scmp.eq.s32.totalorder %s30, 1
      %p53 = por %p51, %p52
      %p55 = scmp.ne.s32.totalorder %s38, %s54
      %p56 = scmp.eq.s32.totalorder %s30, 0
      %p57 = por %p55, %p56
      %s58 = ssub.s32 %s24, %s31
      %p59 = scmp.eq.s32.totalorder %s58, 0
      %s61 = sadd.s32 %s60, 1
      %s62 = scalar_select %p59, %s60, %s61
      %p65 = pneg %p59
      %p66 = scmp.eq.s32.totalorder %s24, 1
      %p67 = por %p65, %p66
      %p68 = scmp.ne.s32.totalorder %s60, %s63
      %p69 = scmp.eq.s32.totalorder %s24, 0
      %p70 = por %p68, %p69
      %p71 = scmp.ne.s32.totalorder %s60, %s63
      %p72 = scmp.eq.s32.totalorder %s29, 1
      %p73 = por %p71, %p72
      %p74 = scmp.ne.s32.totalorder %s63, %s64
      %p75 = scmp.eq.s32.totalorder %s29, 0
      %p76 = por %p74, %p75
      %p77 = scmp.ne.s32.totalorder %s63, %s64
      %p78 = scmp.eq.s32.totalorder %s30, 1
      %p79 = por %p77, %p78
      %p81 = scmp.ne.s32.totalorder %s64, %s80
      %p82 = scmp.eq.s32.totalorder %s30, 0
      %p83 = por %p81, %p82
      %s84 = ssub.s32 %s24, %s31
      %p85 = scmp.eq.s32.totalorder %s84, 0
      %s87 = sadd.s32 %s86, 1
      %s88 = scalar_select %p85, %s86, %s87
      %p91 = pneg %p85
      %p92 = scmp.eq.s32.totalorder %s24, 1
      %p93 = por %p91, %p92
      %p94 = scmp.ne.s32.totalorder %s86, %s89
      %p95 = scmp.eq.s32.totalorder %s24, 0
      %p96 = por %p94, %p95
      %p97 = scmp.ne.s32.totalorder %s86, %s89
      %p98 = scmp.eq.s32.totalorder %s29, 1
      %p99 = por %p97, %p98
      %p100 = scmp.ne.s32.totalorder %s89, %s90
      %p101 = scmp.eq.s32.totalorder %s29, 0
      %p102 = por %p100, %p101
      %p103 = scmp.ne.s32.totalorder %s89, %s90
      %p104 = scmp.eq.s32.totalorder %s30, 1
      %p105 = por %p103, %p104
      %p107 = scmp.ne.s32.totalorder %s90, %s106
      %p108 = scmp.eq.s32.totalorder %s30, 0
      %p109 = por %p107, %p108
      %s110 = ssub.s32 %s24, %s31
      %p111 = scmp.eq.s32.totalorder %s110, 0
      %s113 = sadd.s32 %s112, 1
      %s114 = scalar_select %p111, %s112, %s113
      %p117 = pneg %p111
      %p118 = scmp.eq.s32.totalorder %s24, 1
      %p119 = por %p117, %p118
      %p120 = scmp.ne.s32.totalorder %s112, %s115
      %p121 = scmp.eq.s32.totalorder %s24, 0
      %p122 = por %p120, %p121
      %p123 = scmp.ne.s32.totalorder %s112, %s115
      %p124 = scmp.eq.s32.totalorder %s29, 1
      %p125 = por %p123, %p124
      %p126 = scmp.ne.s32.totalorder %s115, %s116
      %p127 = scmp.eq.s32.totalorder %s29, 0
      %p128 = por %p126, %p127
      %p129 = scmp.ne.s32.totalorder %s115, %s116
      %p130 = scmp.eq.s32.totalorder %s30, 1
      %p131 = por %p129, %p130
      %p133 = scmp.ne.s32.totalorder %s116, %s132
      %p134 = scmp.eq.s32.totalorder %s30, 0
      %p135 = por %p133, %p134
      %s136 = ssub.s32 %s24, %s31
      %p137 = scmp.eq.s32.totalorder %s136, 0
      %s139 = sadd.s32 %s138, 1
      %s140 = scalar_select %p137, %s138, %s139
      %p143 = pneg %p137
      %p144 = scmp.eq.s32.totalorder %s24, 1
      %p145 = por %p143, %p144
      %p146 = scmp.ne.s32.totalorder %s138, %s141
      %p147 = scmp.eq.s32.totalorder %s24, 0
      %p148 = por %p146, %p147
      %p149 = scmp.ne.s32.totalorder %s138, %s141
      %p150 = scmp.eq.s32.totalorder %s29, 1
      %p151 = por %p149, %p150
      %p152 = scmp.ne.s32.totalorder %s141, %s142
      %p153 = scmp.eq.s32.totalorder %s29, 0
      %p154 = por %p152, %p153
      %p155 = scmp.ne.s32.totalorder %s141, %s142
      %p156 = scmp.eq.s32.totalorder %s30, 1
      %p157 = por %p155, %p156
      %p159 = scmp.ne.s32.totalorder %s142, %s158
      %p160 = scmp.eq.s32.totalorder %s30, 0
      %p161 = por %p159, %p160
      %s163 = sadd.s32 %s162, 1
      %p166 = scmp.eq.s32.totalorder %s24, 1
      %p167 = scmp.ne.s32.totalorder %s162, %s164
      %p168 = scmp.eq.s32.totalorder %s24, 0
      %p169 = por %p167, %p168
      %p170 = scmp.ne.s32.totalorder %s162, %s164
      %p171 = scmp.eq.s32.totalorder %s29, 1
      %p172 = por %p170, %p171
      %p173 = scmp.ne.s32.totalorder %s164, %s165
      %p174 = scmp.eq.s32.totalorder %s29, 0
      %p175 = por %p173, %p174
      %p176 = scmp.ne.s32.totalorder %s164, %s165
      %p177 = scmp.eq.s32.totalorder %s30, 1
      %p178 = por %p176, %p177
      %p180 = scmp.ne.s32.totalorder %s165, %s179
      %p181 = scmp.eq.s32.totalorder %s30, 0
      %p182 = por %p180, %p181
      %s184 = sadd.s32 %s183, 1
      %p187 = scmp.eq.s32.totalorder %s24, 1
      %p188 = scmp.ne.s32.totalorder %s183, %s185
      %p189 = scmp.eq.s32.totalorder %s24, 0
      %p190 = por %p188, %p189
      %p191 = scmp.ne.s32.totalorder %s183, %s185
      %p192 = scmp.eq.s32.totalorder %s29, 1
      %p193 = por %p191, %p192
      %p194 = scmp.ne.s32.totalorder %s185, %s186
      %p195 = scmp.eq.s32.totalorder %s29, 0
      %p196 = por %p194, %p195
      %p197 = scmp.ne.s32.totalorder %s185, %s186
      %p198 = scmp.eq.s32.totalorder %s30, 1
      %p199 = por %p197, %p198
      %p201 = scmp.ne.s32.totalorder %s186, %s200
      %p202 = scmp.eq.s32.totalorder %s30, 0
      %p203 = por %p201, %p202
      %s205 = sadd.s32 %s204, 1
      %p208 = scmp.eq.s32.totalorder %s24, 1
      %p209 = scmp.ne.s32.totalorder %s204, %s206
      %p210 = scmp.eq.s32.totalorder %s24, 0
      %p211 = por %p209, %p210
      %p212 = scmp.ne.s32.totalorder %s204, %s206
      %p213 = scmp.eq.s32.totalorder %s29, 1
      %p214 = por %p212, %p213
      %p215 = scmp.ne.s32.totalorder %s206, %s207
      %p216 = scmp.eq.s32.totalorder %s29, 0
      %p217 = por %p215, %p216
      %p218 = scmp.ne.s32.totalorder %s206, %s207
      %p219 = scmp.eq.s32.totalorder %s30, 1
      %p220 = por %p218, %p219
      %p222 = scmp.ne.s32.totalorder %s207, %s221
      %p223 = scmp.eq.s32.totalorder %s30, 0
      %p224 = por %p222, %p223
      %s226 = sadd.s32 %s225, 1
      %p229 = scmp.eq.s32.totalorder %s24, 1
      %p230 = scmp.ne.s32.totalorder %s225, %s227
      %p231 = scmp.eq.s32.totalorder %s24, 0
      %p232 = por %p230, %p231
      %p233 = scmp.ne.s32.totalorder %s225, %s227
      %p234 = scmp.eq.s32.totalorder %s29, 1
      %p235 = por %p233, %p234
      %p236 = scmp.ne.s32.totalorder %s227, %s228
      %p237 = scmp.eq.s32.totalorder %s29, 0
      %p238 = por %p236, %p237
      %p239 = scmp.ne.s32.totalorder %s227, %s228
      %p240 = scmp.eq.s32.totalorder %s30, 1
      %p241 = por %p239, %p240
      %p243 = scmp.ne.s32.totalorder %s228, %s242
      %p244 = scmp.eq.s32.totalorder %s30, 0
      %p245 = por %p243, %p244
      %s247 = sadd.s32 %s246, 1
      %p250 = scmp.eq.s32.totalorder %s24, 1
      %p251 = scmp.ne.s32.totalorder %s246, %s248
      %p252 = scmp.eq.s32.totalorder %s24, 0
      %p253 = por %p251, %p252
      %p254 = scmp.ne.s32.totalorder %s246, %s248
      %p255 = scmp.eq.s32.totalorder %s29, 1
      %p256 = por %p254, %p255
      %p257 = scmp.ne.s32.totalorder %s248, %s249
      %p258 = scmp.eq.s32.totalorder %s29, 0
      %p259 = por %p257, %p258
      %p260 = scmp.ne.s32.totalorder %s248, %s249
      %p261 = scmp.eq.s32.totalorder %s30, 1
      %p262 = por %p260, %p261
      %p264 = scmp.ne.s32.totalorder %s249, %s263
      %p265 = scmp.eq.s32.totalorder %s30, 0
      %p266 = por %p264, %p265
      %s268 = sadd.s32 %s267, 1
      %p271 = scmp.eq.s32.totalorder %s24, 1
      %p272 = scmp.ne.s32.totalorder %s267, %s269
      %p273 = scmp.eq.s32.totalorder %s24, 0
      %p274 = por %p272, %p273
      %p275 = scmp.ne.s32.totalorder %s267, %s269
      %p276 = scmp.eq.s32.totalorder %s29, 1
      %p277 = por %p275, %p276
      %p278 = scmp.ne.s32.totalorder %s269, %s270
      %p279 = scmp.eq.s32.totalorder %s29, 0
      %p280 = por %p278, %p279
      %p281 = scmp.ne.s32.totalorder %s269, %s270
      %p282 = scmp.eq.s32.totalorder %s30, 1
      %p283 = por %p281, %p282
      %p285 = scmp.ne.s32.totalorder %s270, %s284
      %p286 = scmp.eq.s32.totalorder %s30, 0
      %p287 = por %p285, %p286
      %s289 = sadd.s32 %s288, 1
      %p292 = scmp.eq.s32.totalorder %s24, 1
      %p293 = scmp.ne.s32.totalorder %s288, %s290
      %p294 = scmp.eq.s32.totalorder %s24, 0
      %p295 = por %p293, %p294
      %p296 = scmp.ne.s32.totalorder %s288, %s290
      %p297 = scmp.eq.s32.totalorder %s29, 1
      %p298 = por %p296, %p297
      %p299 = scmp.ne.s32.totalorder %s290, %s291
      %p300 = scmp.eq.s32.totalorder %s29, 0
      %p301 = por %p299, %p300
      %p302 = scmp.ne.s32.totalorder %s290, %s291
      %p303 = scmp.eq.s32.totalorder %s30, 1
      %p304 = por %p302, %p303
      %p306 = scmp.ne.s32.totalorder %s291, %s305
      %p307 = scmp.eq.s32.totalorder %s30, 0
      %p308 = por %p306, %p307
      %s310 = sadd.s32 %s309, 1
      %p313 = scmp.eq.s32.totalorder %s24, 1
      %p314 = scmp.ne.s32.totalorder %s309, %s311
      %p315 = scmp.eq.s32.totalorder %s24, 0
      %p316 = por %p314, %p315
      %p317 = scmp.ne.s32.totalorder %s309, %s311
      %p318 = scmp.eq.s32.totalorder %s29, 1
      %p319 = por %p317, %p318
      %p320 = scmp.ne.s32.totalorder %s311, %s312
      %p321 = scmp.eq.s32.totalorder %s29, 0
      %p322 = por %p320, %p321
      %p323 = scmp.ne.s32.totalorder %s311, %s312
      %p324 = scmp.eq.s32.totalorder %s30, 1
      %p325 = por %p323, %p324
      %p327 = scmp.ne.s32.totalorder %s312, %s326
      %p328 = scmp.eq.s32.totalorder %s30, 0
      %p329 = por %p327, %p328
      %s330 = ssub.s32 %s24, %s31
      %p331 = scmp.eq.s32.totalorder %s330, 0
      %s333 = sadd.s32 %s332, 1
      %s334 = scalar_select %p331, %s332, %s333
      %p337 = pneg %p331
      %p338 = scmp.eq.s32.totalorder %s24, 1
      %p339 = por %p337, %p338
      %p340 = scmp.ne.s32.totalorder %s332, %s335
      %p341 = scmp.eq.s32.totalorder %s24, 0
      %p342 = por %p340, %p341
      %p343 = scmp.ne.s32.totalorder %s332, %s335
      %p344 = scmp.eq.s32.totalorder %s29, 1
      %p345 = por %p343, %p344
      %p346 = scmp.ne.s32.totalorder %s335, %s336
      %p347 = scmp.eq.s32.totalorder %s29, 0
      %p348 = por %p346, %p347
      %p349 = scmp.ne.s32.totalorder %s335, %s336
      %p350 = scmp.eq.s32.totalorder %s30, 1
      %p351 = por %p349, %p350
      %p353 = scmp.ne.s32.totalorder %s336, %s352
      %p354 = scmp.eq.s32.totalorder %s30, 0
      %p355 = por %p353, %p354
      %s356 = ssub.s32 %s24, %s31
      %p357 = scmp.eq.s32.totalorder %s356, 0
      %s359 = sadd.s32 %s358, 1
      %s360 = scalar_select %p357, %s358, %s359
      %p363 = pneg %p357
      %p364 = scmp.eq.s32.totalorder %s24, 1
      %p365 = por %p363, %p364
      %p366 = scmp.ne.s32.totalorder %s358, %s361
      %p367 = scmp.eq.s32.totalorder %s24, 0
      %p368 = por %p366, %p367
      %p369 = scmp.ne.s32.totalorder %s358, %s361
      %p370 = scmp.eq.s32.totalorder %s29, 1
      %p371 = por %p369, %p370
      %p372 = scmp.ne.s32.totalorder %s361, %s362
      %p373 = scmp.eq.s32.totalorder %s29, 0
      %p374 = por %p372, %p373
      %p375 = scmp.ne.s32.totalorder %s361, %s362
      %p376 = scmp.eq.s32.totalorder %s30, 1
      %p377 = por %p375, %p376
      %p379 = scmp.ne.s32.totalorder %s362, %s378
      %p380 = scmp.eq.s32.totalorder %s30, 0
      %p381 = por %p379, %p380
      %p382 = scmp.le.s32.totalorder 1, %s24
      %p383 = scmp.lt.s32.totalorder %s24, 3
      %p384 = pnand %p382, %p383
      %p385 = pneg %p384
      // Predicated region
      $region9: #{gemma_forward.1} parent=5 // pred_check
        _
      $region10: #{gemma_forward.1} parent=5 // pred_check_branch
        %387 = sbr.rel (%p384) target = $region12
      $region11: #{gemma_forward.1} parent=5 // pred_region
        %s388 = ssub.s32 %s24, 1
        // Predicated region
        $region13: #{gemma_forward.1} parent=11 // pred_check
          %p389 = pneg %p175
        $region14: #{gemma_forward.1} parent=11 // pred_check_branch
          %391 = sbr.rel (%p389) target = $region16
        $region15: #{gemma_forward.1} parent=11 // pred_region
          _
        $region16: #{gemma_forward.1} parent=11 // pred_fallthru
          _
        // Predicated region
        $region17: #{gemma_forward.1} parent=11 // pred_check
          %p392 = pneg %p196
        $region18: #{gemma_forward.1} parent=11 // pred_check_branch
          %394 = sbr.rel (%p392) target = $region20
        $region19: #{gemma_forward.1} parent=11 // pred_region
          _
        $region20: #{gemma_forward.1} parent=11 // pred_fallthru
          _
        // Predicated region
        $region21: #{gemma_forward.1} parent=11 // pred_check
          %p395 = pneg %p217
        $region22: #{gemma_forward.1} parent=11 // pred_check_branch
          %397 = sbr.rel (%p395) target = $region24
        $region23: #{gemma_forward.1} parent=11 // pred_region
          _
        $region24: #{gemma_forward.1} parent=11 // pred_fallthru
          _
        // Predicated region
        $region25: #{gemma_forward.1} parent=11 // pred_check
          %p398 = pneg %p238
        $region26: #{gemma_forward.1} parent=11 // pred_check_branch
          %400 = sbr.rel (%p398) target = $region28
        $region27: #{gemma_forward.1} parent=11 // pred_region
          _
        $region28: #{gemma_forward.1} parent=11 // pred_fallthru
          _
        // Predicated region
        $region29: #{gemma_forward.1} parent=11 // pred_check
          %p401 = pneg %p259
        $region30: #{gemma_forward.1} parent=11 // pred_check_branch
          %403 = sbr.rel (%p401) target = $region32
        $region31: #{gemma_forward.1} parent=11 // pred_region
          _
        $region32: #{gemma_forward.1} parent=11 // pred_fallthru
          _
        // Predicated region
        $region33: #{gemma_forward.1} parent=11 // pred_check
          %p404 = pneg %p280
        $region34: #{gemma_forward.1} parent=11 // pred_check_branch
          %406 = sbr.rel (%p404) target = $region36
        $region35: #{gemma_forward.1} parent=11 // pred_region
          _
        $region36: #{gemma_forward.1} parent=11 // pred_fallthru
          _
        // Predicated region
        $region37: #{gemma_forward.1} parent=11 // pred_check
          %p407 = pneg %p301
        $region38: #{gemma_forward.1} parent=11 // pred_check_branch
          %409 = sbr.rel (%p407) target = $region40
        $region39: #{gemma_forward.1} parent=11 // pred_region
          _
        $region40: #{gemma_forward.1} parent=11 // pred_fallthru
          _
        // Predicated region
        $region41: #{gemma_forward.1} parent=11 // pred_check
          %p410 = pneg %p322
        $region42: #{gemma_forward.1} parent=11 // pred_check_branch
          %412 = sbr.rel (%p410) target = $region44
        $region43: #{gemma_forward.1} parent=11 // pred_region
          _
        $region44: #{gemma_forward.1} parent=11 // pred_fallthru
          _
      $region12: #{gemma_forward.1} parent=5 // pred_fallthru
        _
      %p413 = scmp.lt.s32.totalorder %s24, 2
      // Predicated region
      $region45: #{gemma_forward.1} parent=5 // pred_check
        %p414 = pneg %p413
      $region46: #{gemma_forward.1} parent=5 // pred_check_branch
        %416 = sbr.rel (%p414) target = $region48
      $region47: #{gemma_forward.1} parent=5 // pred_region
        // Predicated region
        $region49: #{gemma_forward.1} parent=47 // pred_check
          %p417 = pneg %p44
        $region50: #{gemma_forward.1} parent=47 // pred_check_branch
          %419 = sbr.rel (%p417) target = $region52
        $region51: #{gemma_forward.1} parent=47 // pred_region
          %p420 = scmp.lt.s32.totalorder %s24, 1
          %s421 = scalar_select %p420, %s24, 1
          %s422 = smul.addr %s421, 8
          %s423 = scalar_lea.vmem %s0, %s422
        $region52: #{gemma_forward.1} parent=47 // pred_fallthru
          _
        // Predicated region
        $region53: #{gemma_forward.1} parent=47 // pred_check
          %p424 = pneg %p70
        $region54: #{gemma_forward.1} parent=47 // pred_check_branch
          %426 = sbr.rel (%p424) target = $region56
        $region55: #{gemma_forward.1} parent=47 // pred_region
          %p427 = scmp.lt.s32.totalorder %s24, 1
          %s428 = scalar_select %p427, %s24, 1
          %s429 = scalar_lea.vmem %s1, %s428
        $region56: #{gemma_forward.1} parent=47 // pred_fallthru
          _
        // Predicated region
        $region57: #{gemma_forward.1} parent=47 // pred_check
          %p430 = pneg %p96
        $region58: #{gemma_forward.1} parent=47 // pred_check_branch
          %432 = sbr.rel (%p430) target = $region60
        $region59: #{gemma_forward.1} parent=47 // pred_region
          %p433 = scmp.lt.s32.totalorder %s24, 1
          %s434 = scalar_select %p433, %s24, 1
          %s435 = smul.addr %s434, 8
          %s436 = scalar_lea.vmem %s2, %s435
        $region60: #{gemma_forward.1} parent=47 // pred_fallthru
          _
        // Predicated region
        $region61: #{gemma_forward.1} parent=47 // pred_check
          %p437 = pneg %p122
        $region62: #{gemma_forward.1} parent=47 // pred_check_branch
          %439 = sbr.rel (%p437) target = $region64
        $region63: #{gemma_forward.1} parent=47 // pred_region
          %p440 = scmp.lt.s32.totalorder %s24, 1
          %s441 = scalar_select %p440, %s24, 1
          %s442 = smul.addr %s441, 8
          %s443 = scalar_lea.vmem %s3, %s442
        $region64: #{gemma_forward.1} parent=47 // pred_fallthru
          _
        // Predicated region
        $region65: #{gemma_forward.1} parent=47 // pred_check
          %p444 = pneg %p148
        $region66: #{gemma_forward.1} parent=47 // pred_check_branch
          %446 = sbr.rel (%p444) target = $region68
        $region67: #{gemma_forward.1} parent=47 // pred_region
          %p447 = scmp.lt.s32.totalorder %s24, 1
          %s448 = scalar_select %p447, %s24, 1
          %s449 = smul.addr %s448, 8
          %s450 = scalar_lea.vmem %s4, %s449
        $region68: #{gemma_forward.1} parent=47 // pred_fallthru
          _
      $region48: #{gemma_forward.1} parent=5 // pred_fallthru
        _
      %p451 = scmp.le.s32.totalorder 1, %s24
      %p452 = scmp.lt.s32.totalorder %s24, 3
      %p453 = pnand %p451, %p452
      %p454 = pneg %p453
      // Predicated region
      $region69: #{gemma_forward.1} parent=5 // pred_check
        _
      $region70: #{gemma_forward.1} parent=5 // pred_check_branch
        %456 = sbr.rel (%p453) target = $region72
      $region71: #{gemma_forward.1} parent=5 // pred_region
        %s457 = ssub.s32 %s24, 1
        %p458 = scmp.lt.s32.totalorder %s29, 1
        %s459 = scalar_select %p458, %s29, 1
        %s460 = smul.addr %s459, 8
        %s461 = scalar_lea.vmem %s0, %s460
        %p462 = pneg %p50
        %p463 = pneg %p47
        %p464 = scmp.lt.s32.totalorder %s29, 1
        %s465 = scalar_select %p464, %s29, 1
        %s466 = scalar_lea.vmem %s1, %s465
        %p467 = pneg %p76
        %p468 = pneg %p73
        %p469 = scmp.lt.s32.totalorder %s29, 1
        %s470 = scalar_select %p469, %s29, 1
        %s471 = smul.addr %s470, 8
        %s472 = scalar_lea.vmem %s2, %s471
        %p473 = pneg %p102
        %p474 = pneg %p99
        %p475 = scmp.lt.s32.totalorder %s29, 1
        %s476 = scalar_select %p475, %s29, 1
        %s477 = smul.addr %s476, 8
        %s478 = scalar_lea.vmem %s3, %s477
        %p479 = pneg %p128
        %p480 = pneg %p125
        %p481 = scmp.lt.s32.totalorder %s29, 1
        %s482 = scalar_select %p481, %s29, 1
        %s483 = smul.addr %s482, 8
        %s484 = scalar_lea.vmem %s4, %s483
        %p485 = pneg %p154
        %p486 = pneg %p151
        %p487 = pneg %p175
        %p488 = pneg %p172
        %p489 = pneg %p196
        %p490 = pneg %p193
        %p491 = pneg %p217
        %p492 = pneg %p214
        %p493 = pneg %p238
        %p494 = pneg %p235
        %p495 = pneg %p259
        %p496 = pneg %p256
        %p497 = pneg %p280
        %p498 = pneg %p277
        %p499 = pneg %p301
        %p500 = pneg %p298
        %p501 = pneg %p322
        %p502 = pneg %p319
        %p503 = pneg %p348
        %p504 = pneg %p345
        %s505 = sand.u32 %s335, 1
        %s506 = scalar_lea.sflag [#allocation3], %s505
        %s507 = sand.u32 %s335, 1
        %s508 = smul.addr %s507, 8
        %s509 = scalar_lea.vmem [#allocation2], %s508
        %p510 = pneg %p374
        %p511 = pneg %p371
        %p512 = scmp.lt.s32.totalorder %s29, 1
        %s513 = scalar_select %p512, %s29, 1
        %s514 = scalar_lea.vmem %s14, %s513
        %p515 = scmp.lt.s32.totalorder %s29, 1
        %s516 = scalar_select %p515, %s29, 1
        %s517 = smul.addr %s516, 8
        %s518 = scalar_lea.vmem %s0, %s517
        %p519 = scmp.lt.s32.totalorder %s29, 1
        %s520 = scalar_select %p519, %s29, 1
        %s521 = scalar_lea.vmem %s1, %s520
        %p522 = scmp.lt.s32.totalorder %s29, 1
        %s523 = scalar_select %p522, %s29, 1
        %s524 = smul.addr %s523, 8
        %s525 = scalar_lea.vmem %s2, %s524
        %p526 = scmp.lt.s32.totalorder %s29, 1
        %s527 = scalar_select %p526, %s29, 1
        %s528 = smul.addr %s527, 8
        %s529 = scalar_lea.vmem %s3, %s528
        %p530 = scmp.lt.s32.totalorder %s29, 1
        %s531 = scalar_select %p530, %s29, 1
        %s532 = smul.addr %s531, 8
        %s533 = scalar_lea.vmem %s4, %s532
        %p534 = scmp.lt.s32.totalorder %s29, 1
        %s535 = scalar_select %p534, %s29, 1
        %s536 = scalar_lea.vmem %s14, %s535
        %v538 = vld [vmem:[%s518] sm:$0xff]
        %v539 = vld [vmem:[%s525] sm:$0xff]
        %541 = vrot.lane.b32.xlu0 %v539, 8
        %v542 = vpop.permute.xlu0 %541
        %544 = vrot.lane.b32.xlu0 %v539, 16
        %v545 = vpop.permute.xlu0 %544
        %547 = vrot.lane.b32.xlu0 %v539, 24
        %v548 = vpop.permute.xlu0 %547
        %vm550 = vcmask 64512
        %v551 = vsel %vm550, %v539, %v542
        %vm552 = vcmask 130048
        %v553 = vsel %vm552, %v551, %v545
        %vm554 = vcmask 195584
        %v555 = vsel %vm554, %v553, %v548
        %v556 = vld [vmem:[%s529] sm:$0xff]
        %558 = vrot.lane.b32.xlu0 %v556, 8
        %v559 = vpop.permute.xlu0 %558
        %561 = vrot.lane.b32.xlu0 %v556, 16
        %v562 = vpop.permute.xlu0 %561
        %564 = vrot.lane.b32.xlu0 %v556, 24
        %v565 = vpop.permute.xlu0 %564
        %v567 = vsel %vm550, %v556, %v559
        %v568 = vsel %vm552, %v567, %v562
        %v569 = vsel %vm554, %v568, %v565
        %v570 = vld [vmem:[%s521] sm:$0x1]
        %v571 = vlaneseq
        %v572 = vshrl.u32 %v571, 7
        %v573 = vlaneseq
        %v574 = vand.u32 %v573, 127
        %vm575 = vcmp.ge.s32.totalorder %v572, %v574
        %vm576 = vcmp.gt.s32.totalorder %v570, 0
        %v577 = vsel %vm576, 1, 0
        %v578 = vlaneseq
        %v579 = vshrl.u32 %v578, 7
        %v580 = vsub.s32 0, %v579
        %v581 = vrot.slane %v577, %v580
        %vm582 = vcmp.eq.s32.totalorder %v581, 1
        %vm583 = vmand %vm575, %vm582
        %v584 = vsel %vm583, 0.0, -1e+09
        %v585 = vld [vmem:[%s5] sm:$0x1]
        %v586 = vmul.f32 %v538, %v538
        %vm587 = vcmask 261120
        %v588 = vsel %vm587, %v586, 0.0
        %589 = vadd.xlane.f32.xlu0 %v588
        %v590 = vpop.xlane.xlu0 %589
        %v591 = vrcp.pop 32.0
        %v592 = vmul.f32 %v590, %v591
        %v593 = vadd.f32 %v592, 1e-06
        %v594 = vrsqrt.pop %v593
        %v595 = vmul.f32 %v538, %v594
        %v596 = vadd.f32 %v585, 1.0
        %v598 = vlaneseq
        %v599 = vshrl.u32 %v598, 7
        %v600 = vsub.s32 0, %v599
        %v601 = vrot.slane %v596, %v600
        %v603 = vmul.f32 %v595, %v601
        %v604 = vpack.c.bf16 %v603, %v603
        %v605 = vld [vmem:[%s6] sm:$0xff]
        %v606 = vld [vmem:[%s6 + $0x8] sm:$0xff]
        %v607 = vld [vmem:[%s6 + $0x10] sm:$0xff]
        %v608 = vld [vmem:[%s6 + $0x18] sm:$0xff]
        %v613 = vunpack.c.l.b16 %v605
        %v614 = vunpack.c.h.b16 %v605
        %v615 = vunpack.c.l.b16 %v606
        %v616 = vunpack.c.h.b16 %v606
        %v617 = vunpack.c.l.b16 %v607
        %v618 = vunpack.c.h.b16 %v607
        %v619 = vunpack.c.l.b16 %v608
        %v620 = vunpack.c.h.b16 %v608
        %v621 = vpack.c.b16 %v615, %v613
        %v622 = vpack.c.b16 %v616, %v614
        %v623 = vpack.c.b16 %v619, %v617
        %v624 = vpack.c.b16 %v620, %v618
        %v630 = vsel %vm587, %v604, 0
        %632 = vmatprep.subr.bf16.mxu0 %v622
        %633 = vmatpush1.bf16.msra.mxu0 %v621
        %634 = vmatprep.subr.bf16.mxu0 %v624
        %635 = vmatpush1.bf16.msra.mxu0 %v623
        %636 = vmatprep.subr.bf16.mxu0 0
        %637 = vmatpush1.bf16.msra.mxu0 0
        %638 = vmatprep.subr.bf16.mxu0 0
        %639 = vmatpush1.bf16.msra.mxu0 0
        %640 = vmatprep.subr.bf16.mxu0 0
        %641 = vmatpush1.bf16.msra.mxu0 0
        %642 = vmatprep.subr.bf16.mxu0 0
        %643 = vmatpush1.bf16.msra.mxu0 0
        %644 = vmatprep.subr.bf16.mxu0 0
        %645 = vmatpush1.bf16.msra.mxu0 0
        %646 = vmatprep.subr.bf16.mxu0 0
        %647 = vmatpush1.bf16.msra.mxu0 0
        %648 = vmatprep.subr.bf16.mxu0 0
        %649 = vmatpush1.bf16.msra.mxu0 0
        %650 = vmatprep.subr.bf16.mxu0 0
        %651 = vmatpush1.bf16.msra.mxu0 0
        %652 = vmatprep.subr.bf16.mxu0 0
        %653 = vmatpush1.bf16.msra.mxu0 0
        %654 = vmatprep.subr.bf16.mxu0 0
        %655 = vmatpush1.bf16.msra.mxu0 0
        %656 = vmatprep.subr.bf16.mxu0 0
        %657 = vmatpush1.bf16.msra.mxu0 0
        %658 = vmatprep.subr.bf16.mxu0 0
        %659 = vmatpush1.bf16.msra.mxu0 0
        %660 = vmatprep.subr.bf16.mxu0 0
        %661 = vmatpush1.bf16.msra.mxu0 0
        %662 = vmatprep.subr.bf16.mxu0 0
        %663 = vmatpush1.bf16.msra.mxu0 0
        %664 = vmatprep.mubr.bf16.mxu0 0
        %665 = vmatmul.mubr.bf16.gmra.mrb[0].mxu0 %v630
        %v666 = vpop.f32.mrb[0].mxu0
        %v667 = vadd.f32 0.0, %v666
        %v668 = vpop.f32.mrb[0].mxu0
        %v669 = vadd.f32 0.0, %v668
        %v670 = vpop.f32.mrb[0].mxu0
        %v671 = vpop.f32.mrb[0].mxu0
        %672 = vdwg.mxu0
        %v673 = vmul.f32 %v667, %v555
        %675 = vrot.lane.b32.xlu0 %v569, 96
        %v676 = vpop.permute.xlu0 %675
        %v678 = vmul.f32 %v667, %v676
        %680 = vrot.lane.b32.xlu0 %v678, 32
        %v681 = vpop.permute.xlu0 %680
        %v683 = vadd.f32 %v673, %v681
        %685 = vrot.lane.b32.xlu0 %v555, 32
        %v686 = vpop.permute.xlu0 %685
        %v688 = vmul.f32 %v667, %v686
        %v689 = vmul.f32 %v669, %v569
        %691 = vrot.lane.b32.xlu0 %v689, 32
        %v692 = vpop.permute.xlu0 %691
        %v694 = vadd.f32 %v688, %v692
        %v695 = vmul.f32 %v683, 0.35355338
        %v696 = vpack.c.bf16 %v695, %v695
        %v697 = vpack.c.bf16 %v694, %v694
        %v698 = vpack.c.bf16 %v667, %v667
        %700 = vrot.lane.b32.xlu0 %v697, 96
        %v701 = vpop.permute.xlu0 %700
        %v703 = vsel %vm550, %v696, 0
        %v706 = vsel %vm550, %v701, 0
        %708 = vmatprep.subr.bf16.mxu0 0
        %709 = vmatpush1.bf16.xpose.msra.mxu0 %v706
        %710 = vmatprep.subr.bf16.mxu0 0
        %711 = vmatpush1.bf16.xpose.msra.mxu0 0
        %712 = vmatprep.subr.bf16.mxu0 0
        %713 = vmatpush1.bf16.xpose.msra.mxu0 0
        %714 = vmatprep.subr.bf16.mxu0 0
        %715 = vmatpush1.bf16.xpose.msra.mxu0 0
        %716 = vmatprep.subr.bf16.mxu0 0
        %717 = vmatpush1.bf16.xpose.msra.mxu0 0
        %718 = vmatprep.subr.bf16.mxu0 0
        %719 = vmatpush1.bf16.xpose.msra.mxu0 0
        %720 = vmatprep.subr.bf16.mxu0 0
        %721 = vmatpush1.bf16.xpose.msra.mxu0 0
        %722 = vmatprep.subr.bf16.mxu0 0
        %723 = vmatpush1.bf16.xpose.msra.mxu0 0
        %724 = vmatprep.subr.bf16.mxu0 0
        %725 = vmatpush1.bf16.xpose.msra.mxu0 0
        %726 = vmatprep.subr.bf16.mxu0 0
        %727 = vmatpush1.bf16.xpose.msra.mxu0 0
        %728 = vmatprep.subr.bf16.mxu0 0
        %729 = vmatpush1.bf16.xpose.msra.mxu0 0
        %730 = vmatprep.subr.bf16.mxu0 0
        %731 = vmatpush1.bf16.xpose.msra.mxu0 0
        %732 = vmatprep.subr.bf16.mxu0 0
        %733 = vmatpush1.bf16.xpose.msra.mxu0 0
        %734 = vmatprep.subr.bf16.mxu0 0
        %735 = vmatpush1.bf16.xpose.msra.mxu0 0
        %736 = vmatprep.subr.bf16.mxu0 0
        %737 = vmatpush1.bf16.xpose.msra.mxu0 0
        %738 = vmatprep.subr.bf16.mxu0 0
        %739 = vmatpush1.bf16.xpose.msra.mxu0 0
        %740 = vmatprep.mubr.bf16.mxu0 0
        %741 = vmatmul.mubr.bf16.gmra.mrb[0].mxu0 %v703
        %v742 = vpop.f32.mrb[0].mxu0
        %v743 = vadd.f32 %v584, %v742
        %v744 = vpop.f32.mrb[0].mxu0
        %v745 = vpop.f32.mrb[0].mxu0
        %v746 = vpop.f32.mrb[0].mxu0
        %747 = vdwg.mxu0
        %v748 = vsel %vm550, %v743, -inf
        %749 = vmax.xlane.f32.xlu0 %v748
        %v750 = vpop.xlane.xlu0 %749
        %v751 = vsub.f32 %v743, %v750
        %v752 = vmul.f32 %v751, 1.442695
        %v753 = vpow.pop %v752
        %v754 = vsel %vm550, %v753, 0.0
        %755 = vadd.xlane.f32.xlu0 %v754
        %v756 = vpop.xlane.xlu0 %755
        %v757 = vrcp.pop %v756
        %v758 = vmul.f32 %v753, %v757
        %v759 = vpack.c.bf16 %v758, %v758
        %761 = vrot.lane.b32.xlu0 %v698, 64
        %v762 = vpop.permute.xlu0 %761
        %v764 = vsel %vm550, %v759, 0
        %vm766 = vcmask 1043456
        %v768 = vsel %vm766, %v762, 0
        %770 = vmatprep.subr.bf16.mxu0 0
        %771 = vmatpush1.bf16.msra.mxu0 %v768
        %772 = vmatprep.subr.bf16.mxu0 0
        %773 = vmatpush1.bf16.msra.mxu0 0
        %774 = vmatprep.subr.bf16.mxu0 0
        %775 = vmatpush1.bf16.msra.mxu0 0
        %776 = vmatprep.subr.bf16.mxu0 0
        %777 = vmatpush1.bf16.msra.mxu0 0
        %778 = vmatprep.subr.bf16.mxu0 0
        %779 = vmatpush1.bf16.msra.mxu0 0
        %780 = vmatprep.subr.bf16.mxu0 0
        %781 = vmatpush1.bf16.msra.mxu0 0
        %782 = vmatprep.subr.bf16.mxu0 0
        %783 = vmatpush1.bf16.msra.mxu0 0
        %784 = vmatprep.subr.bf16.mxu0 0
        %785 = vmatpush1.bf16.msra.mxu0 0
        %786 = vmatprep.subr.bf16.mxu0 0
        %787 = vmatpush1.bf16.msra.mxu0 0
        %788 = vmatprep.subr.bf16.mxu0 0
        %789 = vmatpush1.bf16.msra.mxu0 0
        %790 = vmatprep.subr.bf16.mxu0 0
        %791 = vmatpush1.bf16.msra.mxu0 0
        %792 = vmatprep.subr.bf16.mxu0 0
        %793 = vmatpush1.bf16.msra.mxu0 0
        %794 = vmatprep.subr.bf16.mxu0 0
        %795 = vmatpush1.bf16.msra.mxu0 0
        %796 = vmatprep.subr.bf16.mxu0 0
        %797 = vmatpush1.bf16.msra.mxu0 0
        %798 = vmatprep.subr.bf16.mxu0 0
        %799 = vmatpush1.bf16.msra.mxu0 0
        %800 = vmatprep.subr.bf16.mxu0 0
        %801 = vmatpush1.bf16.msra.mxu0 0
        %802 = vmatprep.mubr.bf16.mxu0 0
        %803 = vmatmul.mubr.bf16.gmra.mrb[0].mxu0 %v764
        %v804 = vpop.f32.mrb[0].mxu0
        %v805 = vadd.f32 0.0, %v804
        %v806 = vpop.f32.mrb[0].mxu0
        %v807 = vpop.f32.mrb[0].mxu0
        %v808 = vpop.f32.mrb[0].mxu0
        %809 = vdwg.mxu0
        %811 = vrot.lane.b32.xlu0 %v696, 120
        %v812 = vpop.permute.xlu0 %811
        %813 = vrot.lane.b32.xlu0 %v697, 88
        %v814 = vpop.permute.xlu0 %813
        %v816 = vsel %vm550, %v812, 0
        %v819 = vsel %vm550, %v814, 0
        %821 = vmatprep.subr.bf16.mxu0 0
        %822 = vmatpush1.bf16.xpose.msra.mxu0 %v819
        %823 = vmatprep.subr.bf16.mxu0 0
        %824 = vmatpush1.bf16.xpose.msra.mxu0 0
        %825 = vmatprep.subr.bf16.mxu0 0
        %826 = vmatpush1.bf16.xpose.msra.mxu0 0
        %827 = vmatprep.subr.bf16.mxu0 0
        %828 = vmatpush1.bf16.xpose.msra.mxu0 0
        %829 = vmatprep.subr.bf16.mxu0 0
        %830 = vmatpush1.bf16.xpose.msra.mxu0 0
        %831 = vmatprep.subr.bf16.mxu0 0
        %832 = vmatpush1.bf16.xpose.msra.mxu0 0
        %833 = vmatprep.subr.bf16.mxu0 0
        %834 = vmatpush1.bf16.xpose.msra.mxu0 0
        %835 = vmatprep.subr.bf16.mxu0 0
        %836 = vmatpush1.bf16.xpose.msra.mxu0 0
        %837 = vmatprep.subr.bf16.mxu0 0
        %838 = vmatpush1.bf16.xpose.msra.mxu0 0
        %839 = vmatprep.subr.bf16.mxu0 0
        %840 = vmatpush1.bf16.xpose.msra.mxu0 0
        %841 = vmatprep.subr.bf16.mxu0 0
        %842 = vmatpush1.bf16.xpose.msra.mxu0 0
        %843 = vmatprep.subr.bf16.mxu0 0
        %844 = vmatpush1.bf16.xpose.msra.mxu0 0
        %845 = vmatprep.subr.bf16.mxu0 0
        %846 = vmatpush1.bf16.xpose.msra.mxu0 0
        %847 = vmatprep.subr.bf16.mxu0 0
        %848 = vmatpush1.bf16.xpose.msra.mxu0 0
        %849 = vmatprep.subr.bf16.mxu0 0
        %850 = vmatpush1.bf16.xpose.msra.mxu0 0
        %851 = vmatprep.subr.bf16.mxu0 0
        %852 = vmatpush1.bf16.xpose.msra.mxu0 0
        %853 = vmatprep.mubr.bf16.mxu0 0
        %854 = vmatmul.mubr.bf16.gmra.mrb[0].mxu0 %v816
        %v855 = vpop.f32.mrb[0].mxu0
        %v856 = vadd.f32 %v584, %v855
        %v857 = vpop.f32.mrb[0].mxu0
        %v858 = vpop.f32.mrb[0].mxu0
        %v859 = vpop.f32.mrb[0].mxu0
        %860 = vdwg.mxu0
        %v861 = vsel %vm550, %v856, -inf
        %862 = vmax.xlane.f32.xlu0 %v861
        %v863 = vpop.xlane.xlu0 %862
        %v864 = vsub.f32 %v856, %v863
        %v865 = vmul.f32 %v864, 1.442695
        %v866 = vpow.pop %v865
        %v867 = vsel %vm550, %v866, 0.0
        %868 = vadd.xlane.f32.xlu0 %v867
        %v869 = vpop.xlane.xlu0 %868
        %v870 = vrcp.pop %v869
        %v871 = vmul.f32 %v866, %v870
        %v872 = vpack.c.bf16 %v871, %v871
        %873 = vrot.lane.b32.xlu0 %v698, 56
        %v874 = vpop.permute.xlu0 %873
        %v876 = vsel %vm550, %v872, 0
        %v879 = vsel %vm766, %v874, 0
        %881 = vmatprep.subr.bf16.mxu0 0
        %882 = vmatpush1.bf16.msra.mxu0 %v879
        %883 = vmatprep.subr.bf16.mxu0 0
        %884 = vmatpush1.bf16.msra.mxu0 0
        %885 = vmatprep.subr.bf16.mxu0 0
        %886 = vmatpush1.bf16.msra.mxu0 0
        %887 = vmatprep.subr.bf16.mxu0 0
        %888 = vmatpush1.bf16.msra.mxu0 0
        %889 = vmatprep.subr.bf16.mxu0 0
        %890 = vmatpush1.bf16.msra.mxu0 0
        %891 = vmatprep.subr.bf16.mxu0 0
        %892 = vmatpush1.bf16.msra.mxu0 0
        %893 = vmatprep.subr.bf16.mxu0 0
        %894 = vmatpush1.bf16.msra.mxu0 0
        %895 = vmatprep.subr.bf16.mxu0 0
        %896 = vmatpush1.bf16.msra.mxu0 0
        %897 = vmatprep.subr.bf16.mxu0 0
        %898 = vmatpush1.bf16.msra.mxu0 0
        %899 = vmatprep.subr.bf16.mxu0 0
        %900 = vmatpush1.bf16.msra.mxu0 0
        %901 = vmatprep.subr.bf16.mxu0 0
        %902 = vmatpush1.bf16.msra.mxu0 0
        %903 = vmatprep.subr.bf16.mxu0 0
        %904 = vmatpush1.bf16.msra.mxu0 0
        %905 = vmatprep.subr.bf16.mxu0 0
        %906 = vmatpush1.bf16.msra.mxu0 0
        %907 = vmatprep.subr.bf16.mxu0 0
        %908 = vmatpush1.bf16.msra.mxu0 0
        %909 = vmatprep.subr.bf16.mxu0 0
        %910 = vmatpush1.bf16.msra.mxu0 0
        %911 = vmatprep.subr.bf16.mxu0 0
        %912 = vmatpush1.bf16.msra.mxu0 0
        %913 = vmatprep.mubr.bf16.mxu0 0
        %914 = vmatmul.mubr.bf16.gmra.mrb[0].mxu0 %v876
        %v915 = vpop.f32.mrb[0].mxu0
        %v916 = vadd.f32 0.0, %v915
        %v917 = vpop.f32.mrb[0].mxu0
        %v918 = vpop.f32.mrb[0].mxu0
        %v919 = vpop.f32.mrb[0].mxu0
        %920 = vdwg.mxu0
        %921 = vrot.lane.b32.xlu0 %v696, 112
        %v922 = vpop.permute.xlu0 %921
        %923 = vrot.lane.b32.xlu0 %v697, 80
        %v924 = vpop.permute.xlu0 %923
        %v926 = vsel %vm550, %v922, 0
        %v929 = vsel %vm550, %v924, 0
        %931 = vmatprep.subr.bf16.mxu0 0
        %932 = vmatpush1.bf16.xpose.msra.mxu0 %v929
        %933 = vmatprep.subr.bf16.mxu0 0
        %934 = vmatpush1.bf16.xpose.msra.mxu0 0
        %935 = vmatprep.subr.bf16.mxu0 0
        %936 = vmatpush1.bf16.xpose.msra.mxu0 0
        %937 = vmatprep.subr.bf16.mxu0 0
        %938 = vmatpush1.bf16.xpose.msra.mxu0 0
        %939 = vmatprep.subr.bf16.mxu0 0
        %940 = vmatpush1.bf16.xpose.msra.mxu0 0
        %941 = vmatprep.subr.bf16.mxu0 0
        %942 = vmatpush1.bf16.xpose.msra.mxu0 0
        %943 = vmatprep.subr.bf16.mxu0 0
        %944 = vmatpush1.bf16.xpose.msra.mxu0 0
        %945 = vmatprep.subr.bf16.mxu0 0
        %946 = vmatpush1.bf16.xpose.msra.mxu0 0
        %947 = vmatprep.subr.bf16.mxu0 0
        %948 = vmatpush1.bf16.xpose.msra.mxu0 0
        %949 = vmatprep.subr.bf16.mxu0 0
        %950 = vmatpush1.bf16.xpose.msra.mxu0 0
        %951 = vmatprep.subr.bf16.mxu0 0
        %952 = vmatpush1.bf16.xpose.msra.mxu0 0
        %953 = vmatprep.subr.bf16.mxu0 0
        %954 = vmatpush1.bf16.xpose.msra.mxu0 0
        %955 = vmatprep.subr.bf16.mxu0 0
        %956 = vmatpush1.bf16.xpose.msra.mxu0 0
        %957 = vmatprep.subr.bf16.mxu0 0
        %958 = vmatpush1.bf16.xpose.msra.mxu0 0
        %959 = vmatprep.subr.bf16.mxu0 0
        %960 = vmatpush1.bf16.xpose.msra.mxu0 0
        %961 = vmatprep.subr.bf16.mxu0 0
        %962 = vmatpush1.bf16.xpose.msra.mxu0 0
        %963 = vmatprep.mubr.bf16.mxu0 0
        %964 = vmatmul.mubr.bf16.gmra.mrb[0].mxu0 %v926
        %v965 = vpop.f32.mrb[0].mxu0
        %v966 = vadd.f32 %v584, %v965
        %v967 = vpop.f32.mrb[0].mxu0
        %v968 = vpop.f32.mrb[0].mxu0
        %v969 = vpop.f32.mrb[0].mxu0
        %970 = vdwg.mxu0
        %v971 = vsel %vm550, %v966, -inf
        %972 = vmax.xlane.f32.xlu0 %v971
        %v973 = vpop.xlane.xlu0 %972
        %v974 = vsub.f32 %v966, %v973
        %v975 = vmul.f32 %v974, 1.442695
        %v976 = vpow.pop %v975
        %v977 = vsel %vm550, %v976, 0.0
        %978 = vadd.xlane.f32.xlu0 %v977
        %v979 = vpop.xlane.xlu0 %978
        %v980 = vrcp.pop %v979
        %v981 = vmul.f32 %v976, %v980
        %v982 = vpack.c.bf16 %v981, %v981
        %983 = vrot.lane.b32.xlu0 %v698, 48
        %v984 = vpop.permute.xlu0 %983
        %v986 = vsel %vm550, %v982, 0
        %v989 = vsel %vm766, %v984, 0
        %991 = vmatprep.subr.bf16.mxu0 0
        %992 = vmatpush1.bf16.msra.mxu0 %v989
        %993 = vmatprep.subr.bf16.mxu0 0
        %994 = vmatpush1.bf16.msra.mxu0 0
        %995 = vmatprep.subr.bf16.mxu0 0
        %996 = vmatpush1.bf16.msra.mxu0 0
        %997 = vmatprep.subr.bf16.mxu0 0
        %998 = vmatpush1.bf16.msra.mxu0 0
        %999 = vmatprep.subr.bf16.mxu0 0
        %1000 = vmatpush1.bf16.msra.mxu0 0
        %1001 = vmatprep.subr.bf16.mxu0 0
        %1002 = vmatpush1.bf16.msra.mxu0 0
        %1003 = vmatprep.subr.bf16.mxu0 0
        %1004 = vmatpush1.bf16.msra.mxu0 0
        %1005 = vmatprep.subr.bf16.mxu0 0
        %1006 = vmatpush1.bf16.msra.mxu0 0
        %1007 = vmatprep.subr.bf16.mxu0 0
        %1008 = vmatpush1.bf16.msra.mxu0 0
        %1009 = vmatprep.subr.bf16.mxu0 0
        %1010 = vmatpush1.bf16.msra.mxu0 0
        %1011 = vmatprep.subr.bf16.mxu0 0
        %1012 = vmatpush1.bf16.msra.mxu0 0
        %1013 = vmatprep.subr.bf16.mxu0 0
        %1014 = vmatpush1.bf16.msra.mxu0 0
        %1015 = vmatprep.subr.bf16.mxu0 0
        %1016 = vmatpush1.bf16.msra.mxu0 0
        %1017 = vmatprep.subr.bf16.mxu0 0
        %1018 = vmatpush1.bf16.msra.mxu0 0
        %1019 = vmatprep.subr.bf16.mxu0 0
        %1020 = vmatpush1.bf16.msra.mxu0 0
        %1021 = vmatprep.subr.bf16.mxu0 0
        %1022 = vmatpush1.bf16.msra.mxu0 0
        %1023 = vmatprep.mubr.bf16.mxu0 0
        %1024 = vmatmul.mubr.bf16.gmra.mrb[0].mxu0 %v986
        %v1025 = vpop.f32.mrb[0].mxu0
        %v1026 = vadd.f32 0.0, %v1025
        %v1027 = vpop.f32.mrb[0].mxu0
        %v1028 = vpop.f32.mrb[0].mxu0
        %v1029 = vpop.f32.mrb[0].mxu0
        %1030 = vdwg.mxu0
        %1031 = vrot.lane.b32.xlu0 %v696, 104
        %v1032 = vpop.permute.xlu0 %1031
        %1033 = vrot.lane.b32.xlu0 %v697, 72
        %v1034 = vpop.permute.xlu0 %1033
        %v1036 = vsel %vm550, %v1032, 0
        %v1039 = vsel %vm550, %v1034, 0
        %1041 = vmatprep.subr.bf16.mxu0 0
        %1042 = vmatpush1.bf16.xpose.msra.mxu0 %v1039
        %1043 = vmatprep.subr.bf16.mxu0 0
        %1044 = vmatpush1.bf16.xpose.msra.mxu0 0
        %1045 = vmatprep.subr.bf16.mxu0 0
        %1046 = vmatpush1.bf16.xpose.msra.mxu0 0
        %1047 = vmatprep.subr.bf16.mxu0 0
        %1048 = vmatpush1.bf16.xpose.msra.mxu0 0
        %1049 = vmatprep.subr.bf16.mxu0 0
        %1050 = vmatpush1.bf16.xpose.msra.mxu0 0
        %1051 = vmatprep.subr.bf16.mxu0 0
        %1052 = vmatpush1.bf16.xpose.msra.mxu0 0
        %1053 = vmatprep.subr.bf16.mxu0 0
        %1054 = vmatpush1.bf16.xpose.msra.mxu0 0
        %1055 = vmatprep.subr.bf16.mxu0 0
        %1056 = vmatpush1.bf16.xpose.msra.mxu0 0
        %1057 = vmatprep.subr.bf16.mxu0 0
        %1058 = vmatpush1.bf16.xpose.msra.mxu0 0
        %1059 = vmatprep.subr.bf16.mxu0 0
        %1060 = vmatpush1.bf16.xpose.msra.mxu0 0
        %1061 = vmatprep.subr.bf16.mxu0 0
        %1062 = vmatpush1.bf16.xpose.msra.mxu0 0
        %1063 = vmatprep.subr.bf16.mxu0 0
        %1064 = vmatpush1.bf16.xpose.msra.mxu0 0
        %1065 = vmatprep.subr.bf16.mxu0 0
        %1066 = vmatpush1.bf16.xpose.msra.mxu0 0
        %1067 = vmatprep.subr.bf16.mxu0 0
        %1068 = vmatpush1.bf16.xpose.msra.mxu0 0
        %1069 = vmatprep.subr.bf16.mxu0 0
        %1070 = vmatpush1.bf16.xpose.msra.mxu0 0
        %1071 = vmatprep.subr.bf16.mxu0 0
        %1072 = vmatpush1.bf16.xpose.msra.mxu0 0
        %1073 = vmatprep.mubr.bf16.mxu0 0
        %1074 = vmatmul.mubr.bf16.gmra.mrb[0].mxu0 %v1036
        %v1075 = vpop.f32.mrb[0].mxu0
        %v1076 = vadd.f32 %v584, %v1075
        %v1077 = vpop.f32.mrb[0].mxu0
        %v1078 = vpop.f32.mrb[0].mxu0
        %v1079 = vpop.f32.mrb[0].mxu0
        %1080 = vdwg.mxu0
        %v1081 = vsel %vm550, %v1076, -inf
        %1082 = vmax.xlane.f32.xlu0 %v1081
        %v1083 = vpop.xlane.xlu0 %1082
        %v1084 = vsub.f32 %v1076, %v1083
        %v1085 = vmul.f32 %v1084, 1.442695
        %v1086 = vpow.pop %v1085
        %v1087 = vsel %vm550, %v1086, 0.0
        %1088 = vadd.xlane.f32.xlu0 %v1087
        %v1089 = vpop.xlane.xlu0 %1088
        %v1090 = vrcp.pop %v1089
        %v1091 = vmul.f32 %v1086, %v1090
        %v1092 = vpack.c.bf16 %v1091, %v1091
        %1093 = vrot.lane.b32.xlu0 %v698, 40
        %v1094 = vpop.permute.xlu0 %1093
        %v1096 = vsel %vm550, %v1092, 0
        %v1099 = vsel %vm766, %v1094, 0
        %1101 = vmatprep.subr.bf16.mxu0 0
        %1102 = vmatpush1.bf16.msra.mxu0 %v1099
        %1103 = vmatprep.subr.bf16.mxu0 0
        %1104 = vmatpush1.bf16.msra.mxu0 0
        %1105 = vmatprep.subr.bf16.mxu0 0
        %1106 = vmatpush1.bf16.msra.mxu0 0
        %1107 = vmatprep.subr.bf16.mxu0 0
        %1108 = vmatpush1.bf16.msra.mxu0 0
        %1109 = vmatprep.subr.bf16.mxu0 0
        %1110 = vmatpush1.bf16.msra.mxu0 0
        %1111 = vmatprep.subr.bf16.mxu0 0
        %1112 = vmatpush1.bf16.msra.mxu0 0
        %1113 = vmatprep.subr.bf16.mxu0 0
        %1114 = vmatpush1.bf16.msra.mxu0 0
        %1115 = vmatprep.subr.bf16.mxu0 0
        %1116 = vmatpush1.bf16.msra.mxu0 0
        %1117 = vmatprep.subr.bf16.mxu0 0
        %1118 = vmatpush1.bf16.msra.mxu0 0
        %1119 = vmatprep.subr.bf16.mxu0 0
        %1120 = vmatpush1.bf16.msra.mxu0 0
        %1121 = vmatprep.subr.bf16.mxu0 0
        %1122 = vmatpush1.bf16.msra.mxu0 0
        %1123 = vmatprep.subr.bf16.mxu0 0
        %1124 = vmatpush1.bf16.msra.mxu0 0
        %1125 = vmatprep.subr.bf16.mxu0 0
        %1126 = vmatpush1.bf16.msra.mxu0 0
        %1127 = vmatprep.subr.bf16.mxu0 0
        %1128 = vmatpush1.bf16.msra.mxu0 0
        %1129 = vmatprep.subr.bf16.mxu0 0
        %1130 = vmatpush1.bf16.msra.mxu0 0
        %1131 = vmatprep.subr.bf16.mxu0 0
        %1132 = vmatpush1.bf16.msra.mxu0 0
        %1133 = vmatprep.mubr.bf16.mxu0 0
        %1134 = vmatmul.mubr.bf16.gmra.mrb[0].mxu0 %v1096
        %v1135 = vpop.f32.mrb[0].mxu0
        %v1136 = vadd.f32 0.0, %v1135
        %v1137 = vpop.f32.mrb[0].mxu0
        %v1138 = vpop.f32.mrb[0].mxu0
        %v1139 = vpop.f32.mrb[0].mxu0
        %1140 = vdwg.mxu0
        %1142 = vrot.lane.b32.xlu0 %v916, 8
        %v1143 = vpop.permute.xlu0 %1142
        %1146 = vrot.lane.b32.xlu0 %v1026, 16
        %v1147 = vpop.permute.xlu0 %1146
        %1150 = vrot.lane.b32.xlu0 %v1136, 24
        %v1151 = vpop.permute.xlu0 %1150
        %v1153 = vsel %vm550, %v805, %v1143
        %v1154 = vsel %vm552, %v1153, %v1147
        %v1155 = vsel %vm554, %v1154, %v1151
        %v1156 = vpack.c.bf16 %v1155, %v1155
        %v1157 = vld [vmem:[%s7] sm:$0xf]
        %v1158 = vld [vmem:[%s7 + $0x4] sm:$0xf]
        %v1159 = vld [vmem:[%s7 + $0x8] sm:$0xf]
        %v1160 = vld [vmem:[%s7 + $0xc] sm:$0xf]
        %v1165 = vunpack.c.l.b16 %v1157
        %v1166 = vunpack.c.l.b16 %v1158
        %v1167 = vunpack.c.l.b16 %v1159
        %v1168 = vunpack.c.l.b16 %v1160
        %v1169 = vpack.c.b16 %v1166, %v1165
        %v1170 = vpack.c.b16 %v1168, %v1167
        %v1174 = vsel %vm587, %v1156, 0
        %1176 = vmatprep.subr.bf16.mxu0 0
        %1177 = vmatpush1.bf16.msra.mxu0 %v1169
        %1178 = vmatprep.subr.bf16.mxu0 0
        %1179 = vmatpush1.bf16.msra.mxu0 %v1170
        %1180 = vmatprep.subr.bf16.mxu0 0
        %1181 = vmatpush1.bf16.msra.mxu0 0
        %1182 = vmatprep.subr.bf16.mxu0 0
        %1183 = vmatpush1.bf16.msra.mxu0 0
        %1184 = vmatprep.subr.bf16.mxu0 0
        %1185 = vmatpush1.bf16.msra.mxu0 0
        %1186 = vmatprep.subr.bf16.mxu0 0
        %1187 = vmatpush1.bf16.msra.mxu0 0
        %1188 = vmatprep.subr.bf16.mxu0 0
        %1189 = vmatpush1.bf16.msra.mxu0 0
        %1190 = vmatprep.subr.bf16.mxu0 0
        %1191 = vmatpush1.bf16.msra.mxu0 0
        %1192 = vmatprep.subr.bf16.mxu0 0
        %1193 = vmatpush1.bf16.msra.mxu0 0
        %1194 = vmatprep.subr.bf16.mxu0 0
        %1195 = vmatpush1.bf16.msra.mxu0 0
        %1196 = vmatprep.subr.bf16.mxu0 0
        %1197 = vmatpush1.bf16.msra.mxu0 0
        %1198 = vmatprep.subr.bf16.mxu0 0
        %1199 = vmatpush1.bf16.msra.mxu0 0
        %1200 = vmatprep.subr.bf16.mxu0 0
        %1201 = vmatpush1.bf16.msra.mxu0 0
        %1202 = vmatprep.subr.bf16.mxu0 0
        %1203 = vmatpush1.bf16.msra.mxu0 0
        %1204 = vmatprep.subr.bf16.mxu0 0
        %1205 = vmatpush1.bf16.msra.mxu0 0
        %1206 = vmatprep.subr.bf16.mxu0 0
        %1207 = vmatpush1.bf16.msra.mxu0 0
        %1208 = vmatprep.mubr.bf16.mxu0 0
        %1209 = vmatmul.mubr.bf16.gmra.mrb[0].mxu0 %v1174
        %v1210 = vpop.f32.mrb[0].mxu0
        %v1211 = vadd.f32 0.0, %v1210
        %v1212 = vpop.f32.mrb[0].mxu0
        %v1213 = vpop.f32.mrb[0].mxu0
        %v1214 = vpop.f32.mrb[0].mxu0
        %1215 = vdwg.mxu0
        %v1216 = vadd.f32 %v538, %v1211
        %v1217 = vld [vmem:[%s8] sm:$0x1]
        %v1218 = vmul.f32 %v1216, %v1216
        %v1219 = vsel %vm587, %v1218, 0.0
        %1220 = vadd.xlane.f32.xlu0 %v1219
        %v1221 = vpop.xlane.xlu0 %1220
        %v1222 = vmul.f32 %v1221, %v591
        %v1223 = vadd.f32 %v1222, 1e-06
        %v1224 = vrsqrt.pop %v1223
        %v1225 = vmul.f32 %v1216, %v1224
        %v1226 = vadd.f32 %v1217, 1.0
        %v1228 = vlaneseq
        %v1229 = vshrl.u32 %v1228, 7
        %v1230 = vsub.s32 0, %v1229
        %v1231 = vrot.slane %v1226, %v1230
        %v1233 = vmul.f32 %v1225, %v1231
        %v1234 = vpack.c.bf16 %v1233, %v1233
        %v1235 = vld [vmem:[%s9] sm:$0xf]
        %v1236 = vld [vmem:[%s9 + $0x4] sm:$0xf]
        %v1237 = vld [vmem:[%s9 + $0x8] sm:$0xf]
        %v1238 = vld [vmem:[%s9 + $0xc] sm:$0xf]
        %v1243 = vunpack.c.l.b16 %v1235
        %v1244 = vunpack.c.l.b16 %v1236
        %v1245 = vunpack.c.l.b16 %v1237
        %v1246 = vunpack.c.l.b16 %v1238
        %v1247 = vpack.c.b16 %v1244, %v1243
        %v1248 = vpack.c.b16 %v1246, %v1245
        %v1252 = vsel %vm587, %v1234, 0
        %1254 = vmatprep.subr.bf16.mxu0 0
        %1255 = vmatpush1.bf16.msra.mxu0 %v1247
        %1256 = vmatprep.subr.bf16.mxu0 0
        %1257 = vmatpush1.bf16.msra.mxu0 %v1248
        %1258 = vmatprep.subr.bf16.mxu0 0
        %1259 = vmatpush1.bf16.msra.mxu0 0
        %1260 = vmatprep.subr.bf16.mxu0 0
        %1261 = vmatpush1.bf16.msra.mxu0 0
        %1262 = vmatprep.subr.bf16.mxu0 0
        %1263 = vmatpush1.bf16.msra.mxu0 0
        %1264 = vmatprep.subr.bf16.mxu0 0
        %1265 = vmatpush1.bf16.msra.mxu0 0
        %1266 = vmatprep.subr.bf16.mxu0 0
        %1267 = vmatpush1.bf16.msra.mxu0 0
        %1268 = vmatprep.subr.bf16.mxu0 0
        %1269 = vmatpush1.bf16.msra.mxu0 0
        %1270 = vmatprep.subr.bf16.mxu0 0
        %1271 = vmatpush1.bf16.msra.mxu0 0
        %1272 = vmatprep.subr.bf16.mxu0 0
        %1273 = vmatpush1.bf16.msra.mxu0 0
        %1274 = vmatprep.subr.bf16.mxu0 0
        %1275 = vmatpush1.bf16.msra.mxu0 0
        %1276 = vmatprep.subr.bf16.mxu0 0
        %1277 = vmatpush1.bf16.msra.mxu0 0
        %1278 = vmatprep.subr.bf16.mxu0 0
        %1279 = vmatpush1.bf16.msra.mxu0 0
        %1280 = vmatprep.subr.bf16.mxu0 0
        %1281 = vmatpush1.bf16.msra.mxu0 0
        %1282 = vmatprep.subr.bf16.mxu0 0
        %1283 = vmatpush1.bf16.msra.mxu0 0
        %1284 = vmatprep.subr.bf16.mxu0 0
        %1285 = vmatpush1.bf16.msra.mxu0 0
        %1286 = vmatprep.mubr.bf16.mxu0 0
        %1287 = vmatmul.mubr.bf16.gmra.mrb[0].mxu0 %v1252
        %v1288 = vpop.f32.mrb[0].mxu0
        %v1289 = vadd.f32 0.0, %v1288
        %v1290 = vpop.f32.mrb[0].mxu0
        %v1291 = vpop.f32.mrb[0].mxu0
        %v1292 = vpop.f32.mrb[0].mxu0
        %1293 = vdwg.mxu0
        %v1294 = vmul.f32 %v1289, 0.5
        %v1295 = vmul.f32 %v1289, 0.044715
        %v1296 = vmul.f32 %v1295, %v1289
        %v1297 = vmul.f32 %v1296, %v1289
        %v1298 = vadd.f32 %v1289, %v1297
        %v1299 = vmul.f32 %v1298, 0.7978846
        %v1300 = vtanh.pop %v1299
        %v1301 = vadd.f32 %v1300, 1.0
        %v1302 = vmul.f32 %v1294, %v1301
        %1304 = vrot.lane.b32.xlu0 %v1289, 64
        %v1305 = vpop.permute.xlu0 %1304
        %v1307 = vmul.f32 %v1302, %v1305
        %v1308 = vpack.c.bf16 %v1307, %v1307
        %v1309 = vld [vmem:[%s10] sm:$0xf]
        %v1310 = vld [vmem:[%s10 + $0x4] sm:$0xf]
        %v1311 = vld [vmem:[%s10 + $0x8] sm:$0xf]
        %v1312 = vld [vmem:[%s10 + $0xc] sm:$0xf]
        %v1313 = vld [vmem:[%s10 + $0x10] sm:$0xf]
        %v1314 = vld [vmem:[%s10 + $0x14] sm:$0xf]
        %v1315 = vld [vmem:[%s10 + $0x18] sm:$0xf]
        %v1316 = vld [vmem:[%s10 + $0x1c] sm:$0xf]
        %v1325 = vunpack.c.l.b16 %v1309
        %v1326 = vunpack.c.l.b16 %v1310
        %v1327 = vunpack.c.l.b16 %v1311
        %v1328 = vunpack.c.l.b16 %v1312
        %v1329 = vunpack.c.l.b16 %v1313
        %v1330 = vunpack.c.l.b16 %v1314
        %v1331 = vunpack.c.l.b16 %v1315
        %v1332 = vunpack.c.l.b16 %v1316
        %v1333 = vpack.c.b16 %v1326, %v1325
        %v1334 = vpack.c.b16 %v1328, %v1327
        %v1335 = vpack.c.b16 %v1330, %v1329
        %v1336 = vpack.c.b16 %v1332, %v1331
        %vm1341 = vcmask 523264
        %v1343 = vsel %vm1341, %v1308, 0
        %1345 = vmatprep.subr.bf16.mxu0 0
        %1346 = vmatpush1.bf16.msra.mxu0 %v1333
        %1347 = vmatprep.subr.bf16.mxu0 0
        %1348 = vmatpush1.bf16.msra.mxu0 %v1334
        %1349 = vmatprep.subr.bf16.mxu0 0
        %1350 = vmatpush1.bf16.msra.mxu0 %v1335
        %1351 = vmatprep.subr.bf16.mxu0 0
        %1352 = vmatpush1.bf16.msra.mxu0 %v1336
        %1353 = vmatprep.subr.bf16.mxu0 0
        %1354 = vmatpush1.bf16.msra.mxu0 0
        %1355 = vmatprep.subr.bf16.mxu0 0
        %1356 = vmatpush1.bf16.msra.mxu0 0
        %1357 = vmatprep.subr.bf16.mxu0 0
        %1358 = vmatpush1.bf16.msra.mxu0 0
        %1359 = vmatprep.subr.bf16.mxu0 0
        %1360 = vmatpush1.bf16.msra.mxu0 0
        %1361 = vmatprep.subr.bf16.mxu0 0
        %1362 = vmatpush1.bf16.msra.mxu0 0
        %1363 = vmatprep.subr.bf16.mxu0 0
        %1364 = vmatpush1.bf16.msra.mxu0 0
        %1365 = vmatprep.subr.bf16.mxu0 0
        %1366 = vmatpush1.bf16.msra.mxu0 0
        %1367 = vmatprep.subr.bf16.mxu0 0
        %1368 = vmatpush1.bf16.msra.mxu0 0
        %1369 = vmatprep.subr.bf16.mxu0 0
        %1370 = vmatpush1.bf16.msra.mxu0 0
        %1371 = vmatprep.subr.bf16.mxu0 0
        %1372 = vmatpush1.bf16.msra.mxu0 0
        %1373 = vmatprep.subr.bf16.mxu0 0
        %1374 = vmatpush1.bf16.msra.mxu0 0
        %1375 = vmatprep.subr.bf16.mxu0 0
        %1376 = vmatpush1.bf16.msra.mxu0 0
        %1377 = vmatprep.mubr.bf16.mxu0 0
        %1378 = vmatmul.mubr.bf16.gmra.mrb[0].mxu0 %v1343
        %v1379 = vpop.f32.mrb[0].mxu0
        %v1380 = vadd.f32 0.0, %v1379
        %v1381 = vpop.f32.mrb[0].mxu0
        %v1382 = vpop.f32.mrb[0].mxu0
        %v1383 = vpop.f32.mrb[0].mxu0
        %1384 = vdwg.mxu0
        %v1385 = vadd.f32 %v1216, %v1380
        %s1386 = scalar_lea.vmem %s5, 1
        %v1387 = vld [vmem:[%s1386] sm:$0x1]
        %v1388 = vmul.f32 %v1385, %v1385
        %v1389 = vsel %vm587, %v1388, 0.0
        %1390 = vadd.xlane.f32.xlu0 %v1389
        %v1391 = vpop.xlane.xlu0 %1390
        %v1392 = vmul.f32 %v1391, %v591
        %v1393 = vadd.f32 %v1392, 1e-06
        %v1394 = vrsqrt.pop %v1393
        %v1395 = vmul.f32 %v1385, %v1394
        %v1396 = vadd.f32 %v1387, 1.0
        %v1398 = vlaneseq
        %v1399 = vshrl.u32 %v1398, 7
        %v1400 = vsub.s32 0, %v1399
        %v1401 = vrot.slane %v1396, %v1400
        %v1403 = vmul.f32 %v1395, %v1401
        %v1404 = vpack.c.bf16 %v1403, %v1403
        %s1405 = scalar_lea.vmem %s6, 32
        %v1406 = vld [vmem:[%s1405] sm:$0xff]
        %v1407 = vld [vmem:[%s1405 + $0x8] sm:$0xff]
        %v1408 = vld [vmem:[%s1405 + $0x10] sm:$0xff]
        %v1409 = vld [vmem:[%s1405 + $0x18] sm:$0xff]
        %v1414 = vunpack.c.l.b16 %v1406
        %v1415 = vunpack.c.h.b16 %v1406
        %v1416 = vunpack.c.l.b16 %v1407
        %v1417 = vunpack.c.h.b16 %v1407
        %v1418 = vunpack.c.l.b16 %v1408
        %v1419 = vunpack.c.h.b16 %v1408
        %v1420 = vunpack.c.l.b16 %v1409
        %v1421 = vunpack.c.h.b16 %v1409
        %v1422 = vpack.c.b16 %v1416, %v1414
        %v1423 = vpack.c.b16 %v1417, %v1415
        %v1424 = vpack.c.b16 %v1420, %v1418
        %v1425 = vpack.c.b16 %v1421, %v1419
        %v1431 = vsel %vm587, %v1404, 0
        %1433 = vmatprep.subr.bf16.mxu0 %v1423
        %1434 = vmatpush1.bf16.msra.mxu0 %v1422
        %1435 = vmatprep.subr.bf16.mxu0 %v1425
        %1436 = vmatpush1.bf16.msra.mxu0 %v1424
        %1437 = vmatprep.subr.bf16.mxu0 0
        %1438 = vmatpush1.bf16.msra.mxu0 0
        %1439 = vmatprep.subr.bf16.mxu0 0
        %1440 = vmatpush1.bf16.msra.mxu0 0
        %1441 = vmatprep.subr.bf16.mxu0 0
        %1442 = vmatpush1.bf16.msra.mxu0 0
        %1443 = vmatprep.subr.bf16.mxu0 0
        %1444 = vmatpush1.bf16.msra.mxu0 0
        %1445 = vmatprep.subr.bf16.mxu0 0
        %1446 = vmatpush1.bf16.msra.mxu0 0
        %1447 = vmatprep.subr.bf16.mxu0 0
        %1448 = vmatpush1.bf16.msra.mxu0 0
        %1449 = vmatprep.subr.bf16.mxu0 0
        %1450 = vmatpush1.bf16.msra.mxu0 0
        %1451 = vmatprep.subr.bf16.mxu0 0
        %1452 = vmatpush1.bf16.msra.mxu0 0
        %1453 = vmatprep.subr.bf16.mxu0 0
        %1454 = vmatpush1.bf16.msra.mxu0 0
        %1455 = vmatprep.subr.bf16.mxu0 0
        %1456 = vmatpush1.bf16.msra.mxu0 0
        %1457 = vmatprep.subr.bf16.mxu0 0
        %1458 = vmatpush1.bf16.msra.mxu0 0
        %1459 = vmatprep.subr.bf16.mxu0 0
        %1460 = vmatpush1.bf16.msra.mxu0 0
        %1461 = vmatprep.subr.bf16.mxu0 0
        %1462 = vmatpush1.bf16.msra.mxu0 0
        %1463 = vmatprep.subr.bf16.mxu0 0
        %1464 = vmatpush1.bf16.msra.mxu0 0
        %1465 = vmatprep.mubr.bf16.mxu0 0
        %1466 = vmatmul.mubr.bf16.gmra.mrb[0].mxu0 %v1431
        %v1467 = vpop.f32.mrb[0].mxu0
        %v1468 = vadd.f32 0.0, %v1467
        %v1469 = vpop.f32.mrb[0].mxu0
        %v1470 = vadd.f32 0.0, %v1469
        %v1471 = vpop.f32.mrb[0].mxu0
        %v1472 = vpop.f32.mrb[0].mxu0
        %1473 = vdwg.mxu0
        %v1474 = vmul.f32 %v1468, %v555
        %v1475 = vmul.f32 %v1468, %v676
        %1477 = vrot.lane.b32.xlu0 %v1475, 32
        %v1478 = vpop.permute.xlu0 %1477
        %v1480 = vadd.f32 %v1474, %v1478
        %v1481 = vmul.f32 %v1468, %v686
        %v1482 = vmul.f32 %v1470, %v569
        %1484 = vrot.lane.b32.xlu0 %v1482, 32
        %v1485 = vpop.permute.xlu0 %1484
        %v1487 = vadd.f32 %v1481, %v1485
        %v1488 = vmul.f32 %v1480, 0.35355338
        %v1489 = vpack.c.bf16 %v1488, %v1488
        %v1490 = vpack.c.bf16 %v1487, %v1487
        %v1491 = vpack.c.bf16 %v1468, %v1468
        %1493 = vrot.lane.b32.xlu0 %v1490, 96
        %v1494 = vpop.permute.xlu0 %1493
        %v1496 = vsel %vm550, %v1489, 0
        %v1499 = vsel %vm550, %v1494, 0
        %1501 = vmatprep.subr.bf16.mxu0 0
        %1502 = vmatpush1.bf16.xpose.msra.mxu0 %v1499
        %1503 = vmatprep.subr.bf16.mxu0 0
        %1504 = vmatpush1.bf16.xpose.msra.mxu0 0
        %1505 = vmatprep.subr.bf16.mxu0 0
        %1506 = vmatpush1.bf16.xpose.msra.mxu0 0
        %1507 = vmatprep.subr.bf16.mxu0 0
        %1508 = vmatpush1.bf16.xpose.msra.mxu0 0
        %1509 = vmatprep.subr.bf16.mxu0 0
        %1510 = vmatpush1.bf16.xpose.msra.mxu0 0
        %1511 = vmatprep.subr.bf16.mxu0 0
        %1512 = vmatpush1.bf16.xpose.msra.mxu0 0
        %1513 = vmatprep.subr.bf16.mxu0 0
        %1514 = vmatpush1.bf16.xpose.msra.mxu0 0
        %1515 = vmatprep.subr.bf16.mxu0 0
        %1516 = vmatpush1.bf16.xpose.msra.mxu0 0
        %1517 = vmatprep.subr.bf16.mxu0 0
        %1518 = vmatpush1.bf16.xpose.msra.mxu0 0
        %1519 = vmatprep.subr.bf16.mxu0 0
        %1520 = vmatpush1.bf16.xpose.msra.mxu0 0
        %1521 = vmatprep.subr.bf16.mxu0 0
        %1522 = vmatpush1.bf16.xpose.msra.mxu0 0
        %1523 = vmatprep.subr.bf16.mxu0 0
        %1524 = vmatpush1.bf16.xpose.msra.mxu0 0
        %1525 = vmatprep.subr.bf16.mxu0 0
        %1526 = vmatpush1.bf16.xpose.msra.mxu0 0
        %1527 = vmatprep.subr.bf16.mxu0 0
        %1528 = vmatpush1.bf16.xpose.msra.mxu0 0
        %1529 = vmatprep.subr.bf16.mxu0 0
        %1530 = vmatpush1.bf16.xpose.msra.mxu0 0
        %1531 = vmatprep.subr.bf16.mxu0 0
        %1532 = vmatpush1.bf16.xpose.msra.mxu0 0
        %1533 = vmatprep.mubr.bf16.mxu0 0
        %1534 = vmatmul.mubr.bf16.gmra.mrb[0].mxu0 %v1496
        %v1535 = vpop.f32.mrb[0].mxu0
        %v1536 = vadd.f32 %v584, %v1535
        %v1537 = vpop.f32.mrb[0].mxu0
        %v1538 = vpop.f32.mrb[0].mxu0
        %v1539 = vpop.f32.mrb[0].mxu0
        %1540 = vdwg.mxu0
        %v1541 = vsel %vm550, %v1536, -inf
        %1542 = vmax.xlane.f32.xlu0 %v1541
        %v1543 = vpop.xlane.xlu0 %1542
        %v1544 = vsub.f32 %v1536, %v1543
        %v1545 = vmul.f32 %v1544, 1.442695
        %v1546 = vpow.pop %v1545
        %v1547 = vsel %vm550, %v1546, 0.0
        %1548 = vadd.xlane.f32.xlu0 %v1547
        %v1549 = vpop.xlane.xlu0 %1548
        %v1550 = vrcp.pop %v1549
        %v1551 = vmul.f32 %v1546, %v1550
        %v1552 = vpack.c.bf16 %v1551, %v1551
        %1554 = vrot.lane.b32.xlu0 %v1491, 64
        %v1555 = vpop.permute.xlu0 %1554
        %v1557 = vsel %vm550, %v1552, 0
        %v1560 = vsel %vm766, %v1555, 0
        %1562 = vmatprep.subr.bf16.mxu0 0
        %1563 = vmatpush1.bf16.msra.mxu0 %v1560
        %1564 = vmatprep.subr.bf16.mxu0 0
        %1565 = vmatpush1.bf16.msra.mxu0 0
        %1566 = vmatprep.subr.bf16.mxu0 0
        %1567 = vmatpush1.bf16.msra.mxu0 0
        %1568 = vmatprep.subr.bf16.mxu0 0
        %1569 = vmatpush1.bf16.msra.mxu0 0
        %1570 = vmatprep.subr.bf16.mxu0 0
        %1571 = vmatpush1.bf16.msra.mxu0 0
        %1572 = vmatprep.subr.bf16.mxu0 0
        %1573 = vmatpush1.bf16.msra.mxu0 0
        %1574 = vmatprep.subr.bf16.mxu0 0
        %1575 = vmatpush1.bf16.msra.mxu0 0
        %1576 = vmatprep.subr.bf16.mxu0 0
        %1577 = vmatpush1.bf16.msra.mxu0 0
        %1578 = vmatprep.subr.bf16.mxu0 0
        %1579 = vmatpush1.bf16.msra.mxu0 0
        %1580 = vmatprep.subr.bf16.mxu0 0
        %1581 = vmatpush1.bf16.msra.mxu0 0
        %1582 = vmatprep.subr.bf16.mxu0 0
        %1583 = vmatpush1.bf16.msra.mxu0 0
        %1584 = vmatprep.subr.bf16.mxu0 0
        %1585 = vmatpush1.bf16.msra.mxu0 0
        %1586 = vmatprep.subr.bf16.mxu0 0
        %1587 = vmatpush1.bf16.msra.mxu0 0
        %1588 = vmatprep.subr.bf16.mxu0 0
        %1589 = vmatpush1.bf16.msra.mxu0 0
        %1590 = vmatprep.subr.bf16.mxu0 0
        %1591 = vmatpush1.bf16.msra.mxu0 0
        %1592 = vmatprep.subr.bf16.mxu0 0
        %1593 = vmatpush1.bf16.msra.mxu0 0
        %1594 = vmatprep.mubr.bf16.mxu0 0
        %1595 = vmatmul.mubr.bf16.gmra.mrb[0].mxu0 %v1557
        %v1596 = vpop.f32.mrb[0].mxu0
        %v1597 = vadd.f32 0.0, %v1596
        %v1598 = vpop.f32.mrb[0].mxu0
        %v1599 = vpop.f32.mrb[0].mxu0
        %v1600 = vpop.f32.mrb[0].mxu0
        %1601 = vdwg.mxu0
        %1603 = vrot.lane.b32.xlu0 %v1489, 120
        %v1604 = vpop.permute.xlu0 %1603
        %1605 = vrot.lane.b32.xlu0 %v1490, 88
        %v1606 = vpop.permute.xlu0 %1605
        %v1608 = vsel %vm550, %v1604, 0
        %v1611 = vsel %vm550, %v1606, 0
        %1613 = vmatprep.subr.bf16.mxu0 0
        %1614 = vmatpush1.bf16.xpose.msra.mxu0 %v1611
        %1615 = vmatprep.subr.bf16.mxu0 0
        %1616 = vmatpush1.bf16.xpose.msra.mxu0 0
        %1617 = vmatprep.subr.bf16.mxu0 0
        %1618 = vmatpush1.bf16.xpose.msra.mxu0 0
        %1619 = vmatprep.subr.bf16.mxu0 0
        %1620 = vmatpush1.bf16.xpose.msra.mxu0 0
        %1621 = vmatprep.subr.bf16.mxu0 0
        %1622 = vmatpush1.bf16.xpose.msra.mxu0 0
        %1623 = vmatprep.subr.bf16.mxu0 0
        %1624 = vmatpush1.bf16.xpose.msra.mxu0 0
        %1625 = vmatprep.subr.bf16.mxu0 0
        %1626 = vmatpush1.bf16.xpose.msra.mxu0 0
        %1627 = vmatprep.subr.bf16.mxu0 0
        %1628 = vmatpush1.bf16.xpose.msra.mxu0 0
        %1629 = vmatprep.subr.bf16.mxu0 0
        %1630 = vmatpush1.bf16.xpose.msra.mxu0 0
        %1631 = vmatprep.subr.bf16.mxu0 0
        %1632 = vmatpush1.bf16.xpose.msra.mxu0 0
        %1633 = vmatprep.subr.bf16.mxu0 0
        %1634 = vmatpush1.bf16.xpose.msra.mxu0 0
        %1635 = vmatprep.subr.bf16.mxu0 0
        %1636 = vmatpush1.bf16.xpose.msra.mxu0 0
        %1637 = vmatprep.subr.bf16.mxu0 0
        %1638 = vmatpush1.bf16.xpose.msra.mxu0 0
        %1639 = vmatprep.subr.bf16.mxu0 0
        %1640 = vmatpush1.bf16.xpose.msra.mxu0 0
        %1641 = vmatprep.subr.bf16.mxu0 0
        %1642 = vmatpush1.bf16.xpose.msra.mxu0 0
        %1643 = vmatprep.subr.bf16.mxu0 0
        %1644 = vmatpush1.bf16.xpose.msra.mxu0 0
        %1645 = vmatprep.mubr.bf16.mxu0 0
        %1646 = vmatmul.mubr.bf16.gmra.mrb[0].mxu0 %v1608
        %v1647 = vpop.f32.mrb[0].mxu0
        %v1648 = vadd.f32 %v584, %v1647
        %v1649 = vpop.f32.mrb[0].mxu0
        %v1650 = vpop.f32.mrb[0].mxu0
        %v1651 = vpop.f32.mrb[0].mxu0
        %1652 = vdwg.mxu0
        %v1653 = vsel %vm550, %v1648, -inf
        %1654 = vmax.xlane.f32.xlu0 %v1653
        %v1655 = vpop.xlane.xlu0 %1654
        %v1656 = vsub.f32 %v1648, %v1655
        %v1657 = vmul.f32 %v1656, 1.442695
        %v1658 = vpow.pop %v1657
        %v1659 = vsel %vm550, %v1658, 0.0
        %1660 = vadd.xlane.f32.xlu0 %v1659
        %v1661 = vpop.xlane.xlu0 %1660
        %v1662 = vrcp.pop %v1661
        %v1663 = vmul.f32 %v1658, %v1662
        %v1664 = vpack.c.bf16 %v1663, %v1663
        %1665 = vrot.lane.b32.xlu0 %v1491, 56
        %v1666 = vpop.permute.xlu0 %1665
        %v1668 = vsel %vm550, %v1664, 0
        %v1671 = vsel %vm766, %v1666, 0
        %1673 = vmatprep.subr.bf16.mxu0 0
        %1674 = vmatpush1.bf16.msra.mxu0 %v1671
        %1675 = vmatprep.subr.bf16.mxu0 0
        %1676 = vmatpush1.bf16.msra.mxu0 0
        %1677 = vmatprep.subr.bf16.mxu0 0
        %1678 = vmatpush1.bf16.msra.mxu0 0
        %1679 = vmatprep.subr.bf16.mxu0 0
        %1680 = vmatpush1.bf16.msra.mxu0 0
        %1681 = vmatprep.subr.bf16.mxu0 0
        %1682 = vmatpush1.bf16.msra.mxu0 0
        %1683 = vmatprep.subr.bf16.mxu0 0
        %1684 = vmatpush1.bf16.msra.mxu0 0
        %1685 = vmatprep.subr.bf16.mxu0 0
        %1686 = vmatpush1.bf16.msra.mxu0 0
        %1687 = vmatprep.subr.bf16.mxu0 0
        %1688 = vmatpush1.bf16.msra.mxu0 0
        %1689 = vmatprep.subr.bf16.mxu0 0
        %1690 = vmatpush1.bf16.msra.mxu0 0
        %1691 = vmatprep.subr.bf16.mxu0 0
        %1692 = vmatpush1.bf16.msra.mxu0 0
        %1693 = vmatprep.subr.bf16.mxu0 0
        %1694 = vmatpush1.bf16.msra.mxu0 0
        %1695 = vmatprep.subr.bf16.mxu0 0
        %1696 = vmatpush1.bf16.msra.mxu0 0
        %1697 = vmatprep.subr.bf16.mxu0 0
        %1698 = vmatpush1.bf16.msra.mxu0 0
        %1699 = vmatprep.subr.bf16.mxu0 0
        %1700 = vmatpush1.bf16.msra.mxu0 0
        %1701 = vmatprep.subr.bf16.mxu0 0
        %1702 = vmatpush1.bf16.msra.mxu0 0
        %1703 = vmatprep.subr.bf16.mxu0 0
        %1704 = vmatpush1.bf16.msra.mxu0 0
        %1705 = vmatprep.mubr.bf16.mxu0 0
        %1706 = vmatmul.mubr.bf16.gmra.mrb[0].mxu0 %v1668
        %v1707 = vpop.f32.mrb[0].mxu0
        %v1708 = vadd.f32 0.0, %v1707
        %v1709 = vpop.f32.mrb[0].mxu0
        %v1710 = vpop.f32.mrb[0].mxu0
        %v1711 = vpop.f32.mrb[0].mxu0
        %1712 = vdwg.mxu0
        %1713 = vrot.lane.b32.xlu0 %v1489, 112
        %v1714 = vpop.permute.xlu0 %1713
        %1715 = vrot.lane.b32.xlu0 %v1490, 80
        %v1716 = vpop.permute.xlu0 %1715
        %v1718 = vsel %vm550, %v1714, 0
        %v1721 = vsel %vm550, %v1716, 0
        %1723 = vmatprep.subr.bf16.mxu0 0
        %1724 = vmatpush1.bf16.xpose.msra.mxu0 %v1721
        %1725 = vmatprep.subr.bf16.mxu0 0
        %1726 = vmatpush1.bf16.xpose.msra.mxu0 0
        %1727 = vmatprep.subr.bf16.mxu0 0
        %1728 = vmatpush1.bf16.xpose.msra.mxu0 0
        %1729 = vmatprep.subr.bf16.mxu0 0
        %1730 = vmatpush1.bf16.xpose.msra.mxu0 0
        %1731 = vmatprep.subr.bf16.mxu0 0
        %1732 = vmatpush1.bf16.xpose.msra.mxu0 0
        %1733 = vmatprep.subr.bf16.mxu0 0
        %1734 = vmatpush1.bf16.xpose.msra.mxu0 0
        %1735 = vmatprep.subr.bf16.mxu0 0
        %1736 = vmatpush1.bf16.xpose.msra.mxu0 0
        %1737 = vmatprep.subr.bf16.mxu0 0
        %1738 = vmatpush1.bf16.xpose.msra.mxu0 0
        %1739 = vmatprep.subr.bf16.mxu0 0
        %1740 = vmatpush1.bf16.xpose.msra.mxu0 0
        %1741 = vmatprep.subr.bf16.mxu0 0
        %1742 = vmatpush1.bf16.xpose.msra.mxu0 0
        %1743 = vmatprep.subr.bf16.mxu0 0
        %1744 = vmatpush1.bf16.xpose.msra.mxu0 0
        %1745 = vmatprep.subr.bf16.mxu0 0
        %1746 = vmatpush1.bf16.xpose.msra.mxu0 0
        %1747 = vmatprep.subr.bf16.mxu0 0
        %1748 = vmatpush1.bf16.xpose.msra.mxu0 0
        %1749 = vmatprep.subr.bf16.mxu0 0
        %1750 = vmatpush1.bf16.xpose.msra.mxu0 0
        %1751 = vmatprep.subr.bf16.mxu0 0
        %1752 = vmatpush1.bf16.xpose.msra.mxu0 0
        %1753 = vmatprep.subr.bf16.mxu0 0
        %1754 = vmatpush1.bf16.xpose.msra.mxu0 0
        %1755 = vmatprep.mubr.bf16.mxu0 0
        %1756 = vmatmul.mubr.bf16.gmra.mrb[0].mxu0 %v1718
        %v1757 = vpop.f32.mrb[0].mxu0
        %v1758 = vadd.f32 %v584, %v1757
        %v1759 = vpop.f32.mrb[0].mxu0
        %v1760 = vpop.f32.mrb[0].mxu0
        %v1761 = vpop.f32.mrb[0].mxu0
        %1762 = vdwg.mxu0
        %v1763 = vsel %vm550, %v1758, -inf
        %1764 = vmax.xlane.f32.xlu0 %v1763
        %v1765 = vpop.xlane.xlu0 %1764
        %v1766 = vsub.f32 %v1758, %v1765
        %v1767 = vmul.f32 %v1766, 1.442695
        %v1768 = vpow.pop %v1767
        %v1769 = vsel %vm550, %v1768, 0.0
        %1770 = vadd.xlane.f32.xlu0 %v1769
        %v1771 = vpop.xlane.xlu0 %1770
        %v1772 = vrcp.pop %v1771
        %v1773 = vmul.f32 %v1768, %v1772
        %v1774 = vpack.c.bf16 %v1773, %v1773
        %1775 = vrot.lane.b32.xlu0 %v1491, 48
        %v1776 = vpop.permute.xlu0 %1775
        %v1778 = vsel %vm550, %v1774, 0
        %v1781 = vsel %vm766, %v1776, 0
        %1783 = vmatprep.subr.bf16.mxu0 0
        %1784 = vmatpush1.bf16.msra.mxu0 %v1781
        %1785 = vmatprep.subr.bf16.mxu0 0
        %1786 = vmatpush1.bf16.msra.mxu0 0
        %1787 = vmatprep.subr.bf16.mxu0 0
        %1788 = vmatpush1.bf16.msra.mxu0 0
        %1789 = vmatprep.subr.bf16.mxu0 0
        %1790 = vmatpush1.bf16.msra.mxu0 0
        %1791 = vmatprep.subr.bf16.mxu0 0
        %1792 = vmatpush1.bf16.msra.mxu0 0
        %1793 = vmatprep.subr.bf16.mxu0 0
        %1794 = vmatpush1.bf16.msra.mxu0 0
        %1795 = vmatprep.subr.bf16.mxu0 0
        %1796 = vmatpush1.bf16.msra.mxu0 0
        %1797 = vmatprep.subr.bf16.mxu0 0
        %1798 = vmatpush1.bf16.msra.mxu0 0
        %1799 = vmatprep.subr.bf16.mxu0 0
        %1800 = vmatpush1.bf16.msra.mxu0 0
        %1801 = vmatprep.subr.bf16.mxu0 0
        %1802 = vmatpush1.bf16.msra.mxu0 0
        %1803 = vmatprep.subr.bf16.mxu0 0
        %1804 = vmatpush1.bf16.msra.mxu0 0
        %1805 = vmatprep.subr.bf16.mxu0 0
        %1806 = vmatpush1.bf16.msra.mxu0 0
        %1807 = vmatprep.subr.bf16.mxu0 0
        %1808 = vmatpush1.bf16.msra.mxu0 0
        %1809 = vmatprep.subr.bf16.mxu0 0
        %1810 = vmatpush1.bf16.msra.mxu0 0
        %1811 = vmatprep.subr.bf16.mxu0 0
        %1812 = vmatpush1.bf16.msra.mxu0 0
        %1813 = vmatprep.subr.bf16.mxu0 0
        %1814 = vmatpush1.bf16.msra.mxu0 0
        %1815 = vmatprep.mubr.bf16.mxu0 0
        %1816 = vmatmul.mubr.bf16.gmra.mrb[0].mxu0 %v1778
        %v1817 = vpop.f32.mrb[0].mxu0
        %v1818 = vadd.f32 0.0, %v1817
        %v1819 = vpop.f32.mrb[0].mxu0
        %v1820 = vpop.f32.mrb[0].mxu0
        %v1821 = vpop.f32.mrb[0].mxu0
        %1822 = vdwg.mxu0
        %1823 = vrot.lane.b32.xlu0 %v1489, 104
        %v1824 = vpop.permute.xlu0 %1823
        %1825 = vrot.lane.b32.xlu0 %v1490, 72
        %v1826 = vpop.permute.xlu0 %1825
        %v1828 = vsel %vm550, %v1824, 0
        %v1831 = vsel %vm550, %v1826, 0
        %1833 = vmatprep.subr.bf16.mxu0 0
        %1834 = vmatpush1.bf16.xpose.msra.mxu0 %v1831
        %1835 = vmatprep.subr.bf16.mxu0 0
        %1836 = vmatpush1.bf16.xpose.msra.mxu0 0
        %1837 = vmatprep.subr.bf16.mxu0 0
        %1838 = vmatpush1.bf16.xpose.msra.mxu0 0
        %1839 = vmatprep.subr.bf16.mxu0 0
        %1840 = vmatpush1.bf16.xpose.msra.mxu0 0
        %1841 = vmatprep.subr.bf16.mxu0 0
        %1842 = vmatpush1.bf16.xpose.msra.mxu0 0
        %1843 = vmatprep.subr.bf16.mxu0 0
        %1844 = vmatpush1.bf16.xpose.msra.mxu0 0
        %1845 = vmatprep.subr.bf16.mxu0 0
        %1846 = vmatpush1.bf16.xpose.msra.mxu0 0
        %1847 = vmatprep.subr.bf16.mxu0 0
        %1848 = vmatpush1.bf16.xpose.msra.mxu0 0
        %1849 = vmatprep.subr.bf16.mxu0 0
        %1850 = vmatpush1.bf16.xpose.msra.mxu0 0
        %1851 = vmatprep.subr.bf16.mxu0 0
        %1852 = vmatpush1.bf16.xpose.msra.mxu0 0
        %1853 = vmatprep.subr.bf16.mxu0 0
        %1854 = vmatpush1.bf16.xpose.msra.mxu0 0
        %1855 = vmatprep.subr.bf16.mxu0 0
        %1856 = vmatpush1.bf16.xpose.msra.mxu0 0
        %1857 = vmatprep.subr.bf16.mxu0 0
        %1858 = vmatpush1.bf16.xpose.msra.mxu0 0
        %1859 = vmatprep.subr.bf16.mxu0 0
        %1860 = vmatpush1.bf16.xpose.msra.mxu0 0
        %1861 = vmatprep.subr.bf16.mxu0 0
        %1862 = vmatpush1.bf16.xpose.msra.mxu0 0
        %1863 = vmatprep.subr.bf16.mxu0 0
        %1864 = vmatpush1.bf16.xpose.msra.mxu0 0
        %1865 = vmatprep.mubr.bf16.mxu0 0
        %1866 = vmatmul.mubr.bf16.gmra.mrb[0].mxu0 %v1828
        %v1867 = vpop.f32.mrb[0].mxu0
        %v1868 = vadd.f32 %v584, %v1867
        %v1869 = vpop.f32.mrb[0].mxu0
        %v1870 = vpop.f32.mrb[0].mxu0
        %v1871 = vpop.f32.mrb[0].mxu0
        %1872 = vdwg.mxu0
        %v1873 = vsel %vm550, %v1868, -inf
        %1874 = vmax.xlane.f32.xlu0 %v1873
        %v1875 = vpop.xlane.xlu0 %1874
        %v1876 = vsub.f32 %v1868, %v1875
        %v1877 = vmul.f32 %v1876, 1.442695
        %v1878 = vpow.pop %v1877
        %v1879 = vsel %vm550, %v1878, 0.0
        %1880 = vadd.xlane.f32.xlu0 %v1879
        %v1881 = vpop.xlane.xlu0 %1880
        %v1882 = vrcp.pop %v1881
        %v1883 = vmul.f32 %v1878, %v1882
        %v1884 = vpack.c.bf16 %v1883, %v1883
        %1885 = vrot.lane.b32.xlu0 %v1491, 40
        %v1886 = vpop.permute.xlu0 %1885
        %v1888 = vsel %vm550, %v1884, 0
        %v1891 = vsel %vm766, %v1886, 0
        %1893 = vmatprep.subr.bf16.mxu0 0
        %1894 = vmatpush1.bf16.msra.mxu0 %v1891
        %1895 = vmatprep.subr.bf16.mxu0 0
        %1896 = vmatpush1.bf16.msra.mxu0 0
        %1897 = vmatprep.subr.bf16.mxu0 0
        %1898 = vmatpush1.bf16.msra.mxu0 0
        %1899 = vmatprep.subr.bf16.mxu0 0
        %1900 = vmatpush1.bf16.msra.mxu0 0
        %1901 = vmatprep.subr.bf16.mxu0 0
        %1902 = vmatpush1.bf16.msra.mxu0 0
        %1903 = vmatprep.subr.bf16.mxu0 0
        %1904 = vmatpush1.bf16.msra.mxu0 0
        %1905 = vmatprep.subr.bf16.mxu0 0
        %1906 = vmatpush1.bf16.msra.mxu0 0
        %1907 = vmatprep.subr.bf16.mxu0 0
        %1908 = vmatpush1.bf16.msra.mxu0 0
        %1909 = vmatprep.subr.bf16.mxu0 0
        %1910 = vmatpush1.bf16.msra.mxu0 0
        %1911 = vmatprep.subr.bf16.mxu0 0
        %1912 = vmatpush1.bf16.msra.mxu0 0
        %1913 = vmatprep.subr.bf16.mxu0 0
        %1914 = vmatpush1.bf16.msra.mxu0 0
        %1915 = vmatprep.subr.bf16.mxu0 0
        %1916 = vmatpush1.bf16.msra.mxu0 0
        %1917 = vmatprep.subr.bf16.mxu0 0
        %1918 = vmatpush1.bf16.msra.mxu0 0
        %1919 = vmatprep.subr.bf16.mxu0 0
        %1920 = vmatpush1.bf16.msra.mxu0 0
        %1921 = vmatprep.subr.bf16.mxu0 0
        %1922 = vmatpush1.bf16.msra.mxu0 0
        %1923 = vmatprep.subr.bf16.mxu0 0
        %1924 = vmatpush1.bf16.msra.mxu0 0
        %1925 = vmatprep.mubr.bf16.mxu0 0
        %1926 = vmatmul.mubr.bf16.gmra.mrb[0].mxu0 %v1888
        %v1927 = vpop.f32.mrb[0].mxu0
        %v1928 = vadd.f32 0.0, %v1927
        %v1929 = vpop.f32.mrb[0].mxu0
        %v1930 = vpop.f32.mrb[0].mxu0
        %v1931 = vpop.f32.mrb[0].mxu0
        %1932 = vdwg.mxu0
        %1934 = vrot.lane.b32.xlu0 %v1708, 8
        %v1935 = vpop.permute.xlu0 %1934
        %1938 = vrot.lane.b32.xlu0 %v1818, 16
        %v1939 = vpop.permute.xlu0 %1938
        %1942 = vrot.lane.b32.xlu0 %v1928, 24
        %v1943 = vpop.permute.xlu0 %1942
        %v1945 = vsel %vm550, %v1597, %v1935
        %v1946 = vsel %vm552, %v1945, %v1939
        %v1947 = vsel %vm554, %v1946, %v1943
        %v1948 = vpack.c.bf16 %v1947, %v1947
        %s1949 = scalar_lea.vmem %s7, 16
        %v1950 = vld [vmem:[%s1949] sm:$0xf]
        %v1951 = vld [vmem:[%s1949 + $0x4] sm:$0xf]
        %v1952 = vld [vmem:[%s1949 + $0x8] sm:$0xf]
        %v1953 = vld [vmem:[%s1949 + $0xc] sm:$0xf]
        %v1958 = vunpack.c.l.b16 %v1950
        %v1959 = vunpack.c.l.b16 %v1951
        %v1960 = vunpack.c.l.b16 %v1952
        %v1961 = vunpack.c.l.b16 %v1953
        %v1962 = vpack.c.b16 %v1959, %v1958
        %v1963 = vpack.c.b16 %v1961, %v1960
        %v1967 = vsel %vm587, %v1948, 0
        %1969 = vmatprep.subr.bf16.mxu0 0
        %1970 = vmatpush1.bf16.msra.mxu0 %v1962
        %1971 = vmatprep.subr.bf16.mxu0 0
        %1972 = vmatpush1.bf16.msra.mxu0 %v1963
        %1973 = vmatprep.subr.bf16.mxu0 0
        %1974 = vmatpush1.bf16.msra.mxu0 0
        %1975 = vmatprep.subr.bf16.mxu0 0
        %1976 = vmatpush1.bf16.msra.mxu0 0
        %1977 = vmatprep.subr.bf16.mxu0 0
        %1978 = vmatpush1.bf16.msra.mxu0 0
        %1979 = vmatprep.subr.bf16.mxu0 0
        %1980 = vmatpush1.bf16.msra.mxu0 0
        %1981 = vmatprep.subr.bf16.mxu0 0
        %1982 = vmatpush1.bf16.msra.mxu0 0
        %1983 = vmatprep.subr.bf16.mxu0 0
        %1984 = vmatpush1.bf16.msra.mxu0 0
        %1985 = vmatprep.subr.bf16.mxu0 0
        %1986 = vmatpush1.bf16.msra.mxu0 0
        %1987 = vmatprep.subr.bf16.mxu0 0
        %1988 = vmatpush1.bf16.msra.mxu0 0
        %1989 = vmatprep.subr.bf16.mxu0 0
        %1990 = vmatpush1.bf16.msra.mxu0 0
        %1991 = vmatprep.subr.bf16.mxu0 0
        %1992 = vmatpush1.bf16.msra.mxu0 0
        %1993 = vmatprep.subr.bf16.mxu0 0
        %1994 = vmatpush1.bf16.msra.mxu0 0
        %1995 = vmatprep.subr.bf16.mxu0 0
        %1996 = vmatpush1.bf16.msra.mxu0 0
        %1997 = vmatprep.subr.bf16.mxu0 0
        %1998 = vmatpush1.bf16.msra.mxu0 0
        %1999 = vmatprep.subr.bf16.mxu0 0
        %2000 = vmatpush1.bf16.msra.mxu0 0
        %2001 = vmatprep.mubr.bf16.mxu0 0
        %2002 = vmatmul.mubr.bf16.gmra.mrb[0].mxu0 %v1967
        %v2003 = vpop.f32.mrb[0].mxu0
        %v2004 = vadd.f32 0.0, %v2003
        %v2005 = vpop.f32.mrb[0].mxu0
        %v2006 = vpop.f32.mrb[0].mxu0
        %v2007 = vpop.f32.mrb[0].mxu0
        %2008 = vdwg.mxu0
        %v2009 = vadd.f32 %v1385, %v2004
        %s2010 = scalar_lea.vmem %s8, 1
        %v2011 = vld [vmem:[%s2010] sm:$0x1]
        %v2012 = vmul.f32 %v2009, %v2009
        %v2013 = vsel %vm587, %v2012, 0.0
        %2014 = vadd.xlane.f32.xlu0 %v2013
        %v2015 = vpop.xlane.xlu0 %2014
        %v2016 = vmul.f32 %v2015, %v591
        %v2017 = vadd.f32 %v2016, 1e-06
        %v2018 = vrsqrt.pop %v2017
        %v2019 = vmul.f32 %v2009, %v2018
        %v2020 = vadd.f32 %v2011, 1.0
        %v2022 = vlaneseq
        %v2023 = vshrl.u32 %v2022, 7
        %v2024 = vsub.s32 0, %v2023
        %v2025 = vrot.slane %v2020, %v2024
        %v2027 = vmul.f32 %v2019, %v2025
        %v2028 = vpack.c.bf16 %v2027, %v2027
        %s2029 = scalar_lea.vmem %s9, 16
        %v2030 = vld [vmem:[%s2029] sm:$0xf]
        %v2031 = vld [vmem:[%s2029 + $0x4] sm:$0xf]
        %v2032 = vld [vmem:[%s2029 + $0x8] sm:$0xf]
        %v2033 = vld [vmem:[%s2029 + $0xc] sm:$0xf]
        %v2038 = vunpack.c.l.b16 %v2030
        %v2039 = vunpack.c.l.b16 %v2031
        %v2040 = vunpack.c.l.b16 %v2032
        %v2041 = vunpack.c.l.b16 %v2033
        %v2042 = vpack.c.b16 %v2039, %v2038
        %v2043 = vpack.c.b16 %v2041, %v2040
        %v2047 = vsel %vm587, %v2028, 0
        %2049 = vmatprep.subr.bf16.mxu0 0
        %2050 = vmatpush1.bf16.msra.mxu0 %v2042
        %2051 = vmatprep.subr.bf16.mxu0 0
        %2052 = vmatpush1.bf16.msra.mxu0 %v2043
        %2053 = vmatprep.subr.bf16.mxu0 0
        %2054 = vmatpush1.bf16.msra.mxu0 0
        %2055 = vmatprep.subr.bf16.mxu0 0
        %2056 = vmatpush1.bf16.msra.mxu0 0
        %2057 = vmatprep.subr.bf16.mxu0 0
        %2058 = vmatpush1.bf16.msra.mxu0 0
        %2059 = vmatprep.subr.bf16.mxu0 0
        %2060 = vmatpush1.bf16.msra.mxu0 0
        %2061 = vmatprep.subr.bf16.mxu0 0
        %2062 = vmatpush1.bf16.msra.mxu0 0
        %2063 = vmatprep.subr.bf16.mxu0 0
        %2064 = vmatpush1.bf16.msra.mxu0 0
        %2065 = vmatprep.subr.bf16.mxu0 0
        %2066 = vmatpush1.bf16.msra.mxu0 0
        %2067 = vmatprep.subr.bf16.mxu0 0
        %2068 = vmatpush1.bf16.msra.mxu0 0
        %2069 = vmatprep.subr.bf16.mxu0 0
        %2070 = vmatpush1.bf16.msra.mxu0 0
        %2071 = vmatprep.subr.bf16.mxu0 0
        %2072 = vmatpush1.bf16.msra.mxu0 0
        %2073 = vmatprep.subr.bf16.mxu0 0
        %2074 = vmatpush1.bf16.msra.mxu0 0
        %2075 = vmatprep.subr.bf16.mxu0 0
        %2076 = vmatpush1.bf16.msra.mxu0 0
        %2077 = vmatprep.subr.bf16.mxu0 0
        %2078 = vmatpush1.bf16.msra.mxu0 0
        %2079 = vmatprep.subr.bf16.mxu0 0
        %2080 = vmatpush1.bf16.msra.mxu0 0
        %2081 = vmatprep.mubr.bf16.mxu0 0
        %2082 = vmatmul.mubr.bf16.gmra.mrb[0].mxu0 %v2047
        %v2083 = vpop.f32.mrb[0].mxu0
        %v2084 = vadd.f32 0.0, %v2083
        %v2085 = vpop.f32.mrb[0].mxu0
        %v2086 = vpop.f32.mrb[0].mxu0
        %v2087 = vpop.f32.mrb[0].mxu0
        %2088 = vdwg.mxu0
        %v2089 = vmul.f32 %v2084, 0.5
        %v2090 = vmul.f32 %v2084, 0.044715
        %v2091 = vmul.f32 %v2090, %v2084
        %v2092 = vmul.f32 %v2091, %v2084
        %v2093 = vadd.f32 %v2084, %v2092
        %v2094 = vmul.f32 %v2093, 0.7978846
        %v2095 = vtanh.pop %v2094
        %v2096 = vadd.f32 %v2095, 1.0
        %v2097 = vmul.f32 %v2089, %v2096
        %2099 = vrot.lane.b32.xlu0 %v2084, 64
        %v2100 = vpop.permute.xlu0 %2099
        %v2102 = vmul.f32 %v2097, %v2100
        %v2103 = vpack.c.bf16 %v2102, %v2102
        %s2104 = scalar_lea.vmem %s10, 32
        %v2105 = vld [vmem:[%s2104] sm:$0xf]
        %v2106 = vld [vmem:[%s2104 + $0x4] sm:$0xf]
        %v2107 = vld [vmem:[%s2104 + $0x8] sm:$0xf]
        %v2108 = vld [vmem:[%s2104 + $0xc] sm:$0xf]
        %v2109 = vld [vmem:[%s2104 + $0x10] sm:$0xf]
        %v2110 = vld [vmem:[%s2104 + $0x14] sm:$0xf]
        %v2111 = vld [vmem:[%s2104 + $0x18] sm:$0xf]
        %v2112 = vld [vmem:[%s2104 + $0x1c] sm:$0xf]
        %v2121 = vunpack.c.l.b16 %v2105
        %v2122 = vunpack.c.l.b16 %v2106
        %v2123 = vunpack.c.l.b16 %v2107
        %v2124 = vunpack.c.l.b16 %v2108
        %v2125 = vunpack.c.l.b16 %v2109
        %v2126 = vunpack.c.l.b16 %v2110
        %v2127 = vunpack.c.l.b16 %v2111
        %v2128 = vunpack.c.l.b16 %v2112
        %v2129 = vpack.c.b16 %v2122, %v2121
        %v2130 = vpack.c.b16 %v2124, %v2123
        %v2131 = vpack.c.b16 %v2126, %v2125
        %v2132 = vpack.c.b16 %v2128, %v2127
        %v2138 = vsel %vm1341, %v2103, 0
        %2140 = vmatprep.subr.bf16.mxu0 0
        %2141 = vmatpush1.bf16.msra.mxu0 %v2129
        %2142 = vmatprep.subr.bf16.mxu0 0
        %2143 = vmatpush1.bf16.msra.mxu0 %v2130
        %2144 = vmatprep.subr.bf16.mxu0 0
        %2145 = vmatpush1.bf16.msra.mxu0 %v2131
        %2146 = vmatprep.subr.bf16.mxu0 0
        %2147 = vmatpush1.bf16.msra.mxu0 %v2132
        %2148 = vmatprep.subr.bf16.mxu0 0
        %2149 = vmatpush1.bf16.msra.mxu0 0
        %2150 = vmatprep.subr.bf16.mxu0 0
        %2151 = vmatpush1.bf16.msra.mxu0 0
        %2152 = vmatprep.subr.bf16.mxu0 0
        %2153 = vmatpush1.bf16.msra.mxu0 0
        %2154 = vmatprep.subr.bf16.mxu0 0
        %2155 = vmatpush1.bf16.msra.mxu0 0
        %2156 = vmatprep.subr.bf16.mxu0 0
        %2157 = vmatpush1.bf16.msra.mxu0 0
        %2158 = vmatprep.subr.bf16.mxu0 0
        %2159 = vmatpush1.bf16.msra.mxu0 0
        %2160 = vmatprep.subr.bf16.mxu0 0
        %2161 = vmatpush1.bf16.msra.mxu0 0
        %2162 = vmatprep.subr.bf16.mxu0 0
        %2163 = vmatpush1.bf16.msra.mxu0 0
        %2164 = vmatprep.subr.bf16.mxu0 0
        %2165 = vmatpush1.bf16.msra.mxu0 0
        %2166 = vmatprep.subr.bf16.mxu0 0
        %2167 = vmatpush1.bf16.msra.mxu0 0
        %2168 = vmatprep.subr.bf16.mxu0 0
        %2169 = vmatpush1.bf16.msra.mxu0 0
        %2170 = vmatprep.subr.bf16.mxu0 0
        %2171 = vmatpush1.bf16.msra.mxu0 0
        %2172 = vmatprep.mubr.bf16.mxu0 0
        %2173 = vmatmul.mubr.bf16.gmra.mrb[0].mxu0 %v2138
        %v2174 = vpop.f32.mrb[0].mxu0
        %v2175 = vadd.f32 0.0, %v2174
        %v2176 = vpop.f32.mrb[0].mxu0
        %v2177 = vpop.f32.mrb[0].mxu0
        %v2178 = vpop.f32.mrb[0].mxu0
        %2179 = vdwg.mxu0
        %v2180 = vadd.f32 %v2009, %v2175
        %v2181 = vld [vmem:[%s11] sm:$0x1]
        %v2182 = vmul.f32 %v2180, %v2180
        %v2183 = vsel %vm587, %v2182, 0.0
        %2184 = vadd.xlane.f32.xlu0 %v2183
        %v2185 = vpop.xlane.xlu0 %2184
        %v2186 = vmul.f32 %v2185, %v591
        %v2187 = vadd.f32 %v2186, 1e-06
        %v2188 = vrsqrt.pop %v2187
        %v2189 = vmul.f32 %v2180, %v2188
        %v2190 = vadd.f32 %v2181, 1.0
        %v2192 = vlaneseq
        %v2193 = vshrl.u32 %v2192, 7
        %v2194 = vsub.s32 0, %v2193
        %v2195 = vrot.slane %v2190, %v2194
        %v2197 = vmul.f32 %v2189, %v2195
        %v2198 = vpack.c.bf16 %v2197, %v2197
        %v2199 = vld [vmem:[%s12] sm:$0xf]
        %v2200 = vld [vmem:[%s12 + $0x4] sm:$0xf]
        %v2201 = vld [vmem:[%s12 + $0x8] sm:$0xf]
        %v2202 = vld [vmem:[%s12 + $0xc] sm:$0xf]
        %v2207 = vunpack.c.l.b16 %v2199
        %v2208 = vunpack.c.l.b16 %v2200
        %v2209 = vunpack.c.l.b16 %v2201
        %v2210 = vunpack.c.l.b16 %v2202
        %v2211 = vpack.c.b16 %v2208, %v2207
        %v2212 = vpack.c.b16 %v2210, %v2209
        %v2216 = vsel %vm587, %v2198, 0
        %2218 = vmatprep.subr.bf16.mxu0 0
        %2219 = vmatpush1.bf16.msra.mxu0 %v2211
        %2220 = vmatprep.subr.bf16.mxu0 0
        %2221 = vmatpush1.bf16.msra.mxu0 %v2212
        %2222 = vmatprep.subr.bf16.mxu0 0
        %2223 = vmatpush1.bf16.msra.mxu0 0
        %2224 = vmatprep.subr.bf16.mxu0 0
        %2225 = vmatpush1.bf16.msra.mxu0 0
        %2226 = vmatprep.subr.bf16.mxu0 0
        %2227 = vmatpush1.bf16.msra.mxu0 0
        %2228 = vmatprep.subr.bf16.mxu0 0
        %2229 = vmatpush1.bf16.msra.mxu0 0
        %2230 = vmatprep.subr.bf16.mxu0 0
        %2231 = vmatpush1.bf16.msra.mxu0 0
        %2232 = vmatprep.subr.bf16.mxu0 0
        %2233 = vmatpush1.bf16.msra.mxu0 0
        %2234 = vmatprep.subr.bf16.mxu0 0
        %2235 = vmatpush1.bf16.msra.mxu0 0
        %2236 = vmatprep.subr.bf16.mxu0 0
        %2237 = vmatpush1.bf16.msra.mxu0 0
        %2238 = vmatprep.subr.bf16.mxu0 0
        %2239 = vmatpush1.bf16.msra.mxu0 0
        %2240 = vmatprep.subr.bf16.mxu0 0
        %2241 = vmatpush1.bf16.msra.mxu0 0
        %2242 = vmatprep.subr.bf16.mxu0 0
        %2243 = vmatpush1.bf16.msra.mxu0 0
        %2244 = vmatprep.subr.bf16.mxu0 0
        %2245 = vmatpush1.bf16.msra.mxu0 0
        %2246 = vmatprep.subr.bf16.mxu0 0
        %2247 = vmatpush1.bf16.msra.mxu0 0
        %2248 = vmatprep.subr.bf16.mxu0 0
        %2249 = vmatpush1.bf16.msra.mxu0 0
        %2250 = vmatprep.mubr.bf16.mxu0 0
        %2251 = vmatmul.mubr.bf16.gmra.mrb[0].mxu0 %v2216
        %v2252 = vpop.f32.mrb[0].mxu0
        %v2253 = vadd.f32 0.0, %v2252
        %v2254 = vpop.f32.mrb[0].mxu0
        %v2255 = vpop.f32.mrb[0].mxu0
        %v2256 = vpop.f32.mrb[0].mxu0
        %2257 = vdwg.mxu0
        %2258 = vst [vmem:[%s509] sm:$0xff] %v2253
        %vm2259 = vcmp.lt.s32.totalorder %v574, 64
        %v2260 = vsel %vm2259, %v2253, -1e+09
        %2261 = vmax.xlane.f32.xlu0 %v2260
        %v2262 = vpop.xlane.xlu0 %2261
        %v2263 = vsub.f32 %v2260, %v2262
        %v2264 = vmul.f32 %v2263, 1.442695
        %v2265 = vpow.pop %v2264
        %2266 = vadd.xlane.f32.xlu0 %v2265
        %v2267 = vpop.xlane.xlu0 %2266
        %v2268 = vlog2.pop %v2267
        %v2269 = vmul.f32 %v2268, 0.6931472
        %v2270 = vadd.f32 %v2269, %v2262
        %v2271 = vld [vmem:[%s533] sm:$0xff]
        %2272 = vset.pattern.permute.xlu0 0
        %2273 = vperm.xlu0 %2272, %v2271
        %v2274 = vpop.permute.xlu0 %2273
        %vm2275 = vcmp.eq.s32.totalorder %v574, %v2274
        %v2276 = vsel %vm2275, %v2253, 0.0
        %2277 = vadd.xlane.f32.xlu0 %v2276
        %v2278 = vpop.xlane.xlu0 %2277
        %vm2279 = vcmp.ge.s32.totalorder %v2271, 0
        %v2280 = vsel %vm2279, 1, 0
        %v2281 = vcvt.s32.f32 %v2280
        %v2282 = vsub.f32 %v2270, %v2278
        %v2283 = vmul.f32 %v2282, %v2281
        %vm2284 = vcmask 7168
        %v2285 = vsel %vm2284, %v2283, 0.0
        %2286 = vadd.xlane.f32.xlu0 %v2285
        %v2287 = vpop.xlane.xlu0 %2286
        %v2288 = vrot.slane %v2287, 4
        %v2289 = vadd.f32 %v2287, %v2288
        %v2290 = vrot.slane %v2289, 2
        %v2291 = vadd.f32 %v2289, %v2290
        %v2292 = vrot.slane %v2291, 1
        %v2293 = vadd.f32 %v2291, %v2292
        %s2294 = vtos %v2293
        %v2295 = vstv %s2294
        %v2296 = vsel %vm2284, %v2281, 0.0
        %2297 = vadd.xlane.f32.xlu0 %v2296
        %v2298 = vpop.xlane.xlu0 %2297
        %v2299 = vrot.slane %v2298, 4
        %v2300 = vadd.f32 %v2298, %v2299
        %v2301 = vrot.slane %v2300, 2
        %v2302 = vadd.f32 %v2300, %v2301
        %v2303 = vrot.slane %v2302, 1
        %v2304 = vadd.f32 %v2302, %v2303
        %s2305 = vtos %v2304
        %v2306 = vstv %s2305
        %v2307 = vsel %vm2284, %v2295, %v2306
        %vm2308 = vcmask 8192
        %2309 = vst.msk [vmem:[%s536] sm:$0x1] %vm2308, %v2307
        %s2310 = sand.u32 %s335, 1
        %s2311 = scalar_lea.sflag [#allocation3], %s2310
        %s2312 = sand.u32 %s335, 1
        %s2313 = smul.addr %s2312, 8
        %s2314 = scalar_lea.vmem [#allocation2], %s2313
        %p2315 = scmp.lt.s32.totalorder %s29, 1
        %s2316 = scalar_select %p2315, %s29, 1
        %s2317 = scalar_lea.vmem %s14, %s2316
        // Predicated region
        $region73: #{gemma_forward.1} parent=71 // pred_check
          %p2318 = pneg %p345
        $region74: #{gemma_forward.1} parent=71 // pred_check_branch
          %2320 = sbr.rel (%p2318) target = $region76
        $region75: #{gemma_forward.1} parent=71 // pred_region
          %s2322 = ssub.s32 128, 128
          %2323 = vsyncadd %s2311, %s2322
          %s2324 = smul.addr %s29, 128
          %s2325 = scalar_lea.hbm %s13, %s2324
          %s2327 = sshll.u32 %s2314, 4
          %s2328 = int_to_ptr.vmem [resolvable:$true] %s2327
          %2330 = dma.vmem_to_hbm [thread:$0]  %s2328, 128, %s2325, %s2311
        $region76: #{gemma_forward.1} parent=71 // pred_fallthru
          _
        // Predicated region
        $region77: #{gemma_forward.1} parent=71 // pred_check
          %p2331 = pneg %p371
        $region78: #{gemma_forward.1} parent=71 // pred_check_branch
          %2333 = sbr.rel (%p2331) target = $region80
        $region79: #{gemma_forward.1} parent=71 // pred_region
          _
        $region80: #{gemma_forward.1} parent=71 // pred_fallthru
          _
      $region72: #{gemma_forward.1} parent=5 // pred_fallthru
        _
      %p2334 = scmp.le.s32.totalorder 2, %s24
      // Predicated region
      $region81: #{gemma_forward.1} parent=5 // pred_check
        %p2335 = pneg %p2334
      $region82: #{gemma_forward.1} parent=5 // pred_check_branch
        %2337 = sbr.rel (%p2335) target = $region84
      $region83: #{gemma_forward.1} parent=5 // pred_region
        %s2338 = ssub.s32 %s24, 2
        // Predicated region
        $region85: #{gemma_forward.1} parent=83 // pred_check
          %p2339 = pneg %p351
        $region86: #{gemma_forward.1} parent=83 // pred_check_branch
          %2341 = sbr.rel (%p2339) target = $region88
        $region87: #{gemma_forward.1} parent=83 // pred_region
          %s2342 = sand.u32 %s336, 1
          %s2343 = scalar_lea.sflag [#allocation3], %s2342
          %s2344 = sand.u32 %s336, 1
          %s2345 = smul.addr %s2344, 8
          %s2346 = scalar_lea.vmem [#allocation2], %s2345
          %2347 = dma.done %s2343, 128
        $region88: #{gemma_forward.1} parent=83 // pred_fallthru
          _
        // Predicated region
        $region89: #{gemma_forward.1} parent=83 // pred_check
          %p2348 = pneg %p377
        $region90: #{gemma_forward.1} parent=83 // pred_check_branch
          %2350 = sbr.rel (%p2348) target = $region92
        $region91: #{gemma_forward.1} parent=83 // pred_region
          %p2351 = scmp.lt.s32.totalorder %s30, 1
          %s2352 = scalar_select %p2351, %s30, 1
          %s2353 = scalar_lea.vmem %s14, %s2352
        $region92: #{gemma_forward.1} parent=83 // pred_fallthru
          _
      $region84: #{gemma_forward.1} parent=5 // pred_fallthru
        _
    $region6: #{gemma_forward.1} parent=1 // loop_footer
      %s28 = sadd.s32 1, %s24
    $region7: #{gemma_forward.1} parent=1 // loop_footer_branch
      %23 = sbr.rel target = $region3
    $region8: #{gemma_forward.1} parent=1 // loop_exit
      _
    %2354 = vsyncpa [#allocation3], 1
    %s2355 = scalar_lea.sflag [#allocation3], 1
    %2356 = vsyncpa %s2355, 1

</llo_original>
